<compile_context>
chip_gen: v7x
topology: tpu7x:2x2x1
jax: 0.10.0
libtpu: 0.0.40
codegen_flags: <defaults>
</compile_context>

<pallas_src>
import functools

import jax
import jax.numpy as jnp
from jax.experimental import pallas as pl
from jax.experimental.pallas import tpu as pltpu

NEG_SLOPE = 0.2
DROP_P = 0.1
BN_EPS = 1e-5
LANE = 128


def _round_up(x, m):
    return (x + m - 1) // m * m


def _leaky_relu(h):
    return jnp.where(h > 0, h, NEG_SLOPE * h)


# -----------------------------------------------------------------------------
# Stage A: Linear1 -> LeakyReLU -> Dropout -> Linear2, plus full-batch BN stats.
# -----------------------------------------------------------------------------
def _stage_a_kernel(x_ref, w1_ref, b1_ref, m1_ref, w2_ref, b2_ref,
                    h2_ref, sum_ref, sumsq_ref, *, tile_b, batch):
    i = pl.program_id(0)

    @pl.when(i == 0)
    def _():
        sum_ref[...] = jnp.zeros_like(sum_ref)
        sumsq_ref[...] = jnp.zeros_like(sumsq_ref)

    # Linear(input_dim -> hidden)  (bf16 MXU inputs, f32 accumulation)
    h = jnp.dot(x_ref[...], w1_ref[...],
                preferred_element_type=jnp.float32) + b1_ref[...]
    h = _leaky_relu(h)
    h = h * m1_ref[...]                       # dropout: mask pre-scaled by 1/(1-p)

    # Linear(hidden -> hidden)
    h2 = jnp.dot(h.astype(jnp.bfloat16), w2_ref[...],
                 preferred_element_type=jnp.float32) + b2_ref[...]
    h2_ref[...] = h2

    # BatchNorm1d batch statistics over the REAL batch only (mask padded rows).
    row = jax.lax.broadcasted_iota(jnp.int32, h2.shape, 0) + i * tile_b
    valid = (row < batch).astype(jnp.float32)
    h2v = h2 * valid
    sum_ref[...] += jnp.sum(h2v, axis=0, keepdims=True)
    sumsq_ref[...] += jnp.sum(h2v * h2v, axis=0, keepdims=True)


# -----------------------------------------------------------------------------
# Stage B: BatchNorm (folded scale/shift) -> LeakyReLU -> Dropout -> Linear3
#          -> Sigmoid, with lane-dense (padded-to-128) output.
# -----------------------------------------------------------------------------
def _stage_b_kernel(h2_ref, scale_ref, shift_ref, m2_ref, w3_ref, b3_ref,
                    out_ref):
    h = h2_ref[...] * scale_ref[...] + shift_ref[...]    # BN with batch stats
    h = _leaky_relu(h)
    h = h * m2_ref[...]                                  # dropout (pre-scaled)
    logits = jnp.dot(h.astype(jnp.bfloat16), w3_ref[...],
                     preferred_element_type=jnp.float32) + b3_ref[...]
    out_ref[...] = jax.nn.sigmoid(logits)


# -----------------------------------------------------------------------------
# Parameters (torch-style init: U(-1/sqrt(fan_in), 1/sqrt(fan_in)))
# -----------------------------------------------------------------------------
def init_discriminator_params(key, input_dim, hidden_dim, output_dim):
    def linear(k, fan_in, fan_out):
        kw, kb = jax.random.split(k)
        bound = 1.0 / jnp.sqrt(fan_in)
        w = jax.random.uniform(kw, (fan_in, fan_out), jnp.float32, -bound, bound)
        b = jax.random.uniform(kb, (1, fan_out), jnp.float32, -bound, bound)
        return w, b

    k1, k2, k3 = jax.random.split(key, 3)
    w1, b1 = linear(k1, input_dim, hidden_dim)
    w2, b2 = linear(k2, hidden_dim, hidden_dim)
    w3, b3 = linear(k3, hidden_dim, output_dim)
    gamma = jnp.ones((1, hidden_dim), jnp.float32)   # BatchNorm1d weight
    beta = jnp.zeros((1, hidden_dim), jnp.float32)   # BatchNorm1d bias
    return (w1, b1, w2, b2, gamma, beta, w3, b3)


# -----------------------------------------------------------------------------
# Wrapper
# -----------------------------------------------------------------------------
def discriminator_forward(x, params, key, *, tile_b=256, training=True):
    """x: (B, ...) array, flattened to (B, input_dim) like torch's flatten(1)."""
    w1, b1, w2, b2, gamma, beta, w3, b3 = params
    B = x.shape[0]
    x2d = x.reshape(B, -1).astype(jnp.float32)
    d_in = x2d.shape[1]
    hidden = w1.shape[1]
    out_dim = w3.shape[1]
    out_pad = _round_up(out_dim, LANE)               # lane-dense output columns

    # Batch tiling: up to 256-row M tiles (MXU-friendly on all generations).
    tile_b = min(tile_b, _round_up(B, 8))
    b_pad = _round_up(B, tile_b)
    n_tiles = b_pad // tile_b

    # Cheap host/XLA-side prep (trace time): bf16 weights/inputs, padded batch,
    # lane-dense padded final layer.
    x_p = jnp.pad(x2d, ((0, b_pad - B), (0, 0))).astype(jnp.bfloat16)
    w1_b = w1.astype(jnp.bfloat16)
    w2_b = w2.astype(jnp.bfloat16)
    w3_p = jnp.pad(w3, ((0, 0), (0, out_pad - out_dim))).astype(jnp.bfloat16)
    b3_p = jnp.pad(b3, ((0, 0), (0, out_pad - out_dim)))

    # Training-mode dropout masks, pre-scaled by 1/(1-p).
    # TODO(synk): RNG stream is jax.random, not torch's generator, so exact mask
    # bits cannot match torch; only the distributional semantics do.
    if training:
        keep = 1.0 - DROP_P
        k1, k2 = jax.random.split(key)
        m1 = jax.random.bernoulli(k1, keep, (b_pad, hidden)).astype(jnp.float32) / keep
        m2 = jax.random.bernoulli(k2, keep, (b_pad, hidden)).astype(jnp.float32) / keep
    else:
        m1 = jnp.ones((b_pad, hidden), jnp.float32)
        m2 = jnp.ones((b_pad, hidden), jnp.float32)

    def tile_spec(cols):                      # batch-tiled activations
        return pl.BlockSpec((tile_b, cols), lambda i: (i, 0))

    def res_spec(shape):                      # VMEM-resident weights / vectors
        return pl.BlockSpec(shape, lambda i: (0, 0))

    # ---- Stage A: up to pre-BN activations + full-batch sum / sumsq ----------
    h2, s, sq = pl.pallas_call(
        functools.partial(_stage_a_kernel, tile_b=tile_b, batch=B),
        grid=(n_tiles,),
        in_specs=[tile_spec(d_in),
                  res_spec((d_in, hidden)), res_spec((1, hidden)),
                  tile_spec(hidden),
                  res_spec((hidden, hidden)), res_spec((1, hidden))],
        out_specs=[tile_spec(hidden), res_spec((1, hidden)), res_spec((1, hidden))],
        out_shape=[jax.ShapeDtypeStruct((b_pad, hidden), jnp.float32),
                   jax.ShapeDtypeStruct((1, hidden), jnp.float32),
                   jax.ShapeDtypeStruct((1, hidden), jnp.float32)],
        compiler_params=pltpu.CompilerParams(
            dimension_semantics=("arbitrary",)),   # stats accumulate across tiles
    )(x_p, w1_b, b1, m1, w2_b, b2)

    # Finalize BatchNorm1d batch statistics (biased variance, like torch training
    # mode) and fold gamma/beta into a single scale/shift — tiny (1, hidden) math.
    mean = s / B
    var = jnp.maximum(sq / B - mean * mean, 0.0)
    scale = gamma * jax.lax.rsqrt(var + BN_EPS)
    shift = beta - mean * scale

    # ---- Stage B: BN + LeakyReLU + Dropout + Linear3 + Sigmoid ---------------
    out = pl.pallas_call(
        _stage_b_kernel,
        grid=(n_tiles,),
        in_specs=[tile_spec(hidden),
                  res_spec((1, hidden)), res_spec((1, hidden)),
                  tile_spec(hidden),
                  res_spec((hidden, out_pad)), res_spec((1, out_pad))],
        out_specs=tile_spec(out_pad),
        out_shape=jax.ShapeDtypeStruct((b_pad, out_pad), jnp.float32),
        compiler_params=pltpu.CompilerParams(
            dimension_semantics=("parallel",)),    # independent tiles -> megacore
    )(h2, scale, shift, m2, w3_p, b3_p)

    return out[:B, :out_dim]


if __name__ == "__main__":
    # Module defaults: input_dim = 28*28, hidden_dim = 240, output_dim = 1.
    # B = 300 exercises multi-tile grid, the BN-stats accumulator, and the
    # padded-row masking path (pads to 512 = 2 x 256-row tiles).
    B, C, HW = 300, 1, 28
    input_dim = C * HW * HW
    hidden_dim = 240
    output_dim = 1

    key = jax.random.PRNGKey(0)
    kx, kp, kd = jax.random.split(key, 3)
    x = jax.random.normal(kx, (B, C, HW, HW), dtype=jnp.float32)  # NCHW like torch
    params = init_discriminator_params(kp, input_dim, hidden_dim, output_dim)

    out = discriminator_forward(x, params, kd)
    out = jax.block_until_ready(out)

    assert out.shape == (B, output_dim)
    assert bool(jnp.all(jnp.isfinite(out)))
    assert bool(jnp.all((out >= 0.0) & (out <= 1.0)))
    print("KERNEL_OK")
</pallas_src>

<mosaic_0001>
module attributes {stable_mosaic.version = 11 : i64} {
  func.func @_stage_a_kernel(%arg0: i32, %arg1: memref<256x784xbf16, #tpu.memory_space<vmem>>, %arg2: memref<784x240xbf16, #tpu.memory_space<vmem>>, %arg3: memref<1x240xf32, #tpu.memory_space<vmem>>, %arg4: memref<256x240xf32, #tpu.memory_space<vmem>>, %arg5: memref<240x240xbf16, #tpu.memory_space<vmem>>, %arg6: memref<1x240xf32, #tpu.memory_space<vmem>>, %arg7: memref<256x240xf32, #tpu.memory_space<vmem>>, %arg8: memref<1x240xf32, #tpu.memory_space<vmem>>, %arg9: memref<1x240xf32, #tpu.memory_space<vmem>>) attributes {dimension_semantics = [#tpu.dimension_semantics<arbitrary>], iteration_bounds = array<i64: 2>, scalar_prefetch = 0 : i64, scratch_operands = 0 : i64, tpu.core_type = #tpu.core_type<tc>, window_params = [{transform_indices = @transform_0, window_bounds = array<i64: 256, 784>}, {pipeline_mode = #tpu.pipeline_mode<synchronous>, transform_indices = @transform_1, window_bounds = array<i64: 784, 240>}, {pipeline_mode = #tpu.pipeline_mode<synchronous>, transform_indices = @transform_2, window_bounds = array<i64: 1, 240>}, {transform_indices = @transform_3, window_bounds = array<i64: 256, 240>}, {pipeline_mode = #tpu.pipeline_mode<synchronous>, transform_indices = @transform_4, window_bounds = array<i64: 240, 240>}, {pipeline_mode = #tpu.pipeline_mode<synchronous>, transform_indices = @transform_5, window_bounds = array<i64: 1, 240>}, {transform_indices = @transform_6, window_bounds = array<i64: 256, 240>}, {pipeline_mode = #tpu.pipeline_mode<synchronous>, transform_indices = @transform_7, window_bounds = array<i64: 1, 240>}, {pipeline_mode = #tpu.pipeline_mode<synchronous>, transform_indices = @transform_8, window_bounds = array<i64: 1, 240>}]} {
    %c0_i32 = arith.constant 0 : i32
    %0 = arith.cmpi eq, %arg0, %c0_i32 : i32
    %1 = arith.extui %0 : i1 to i32
    %c0_i32_0 = arith.constant 0 : i32
    %2 = arith.cmpi ne, %1, %c0_i32_0 : i32
    scf.if %2 {
      %cst_27 = arith.constant 0.000000e+00 : f32
      %43 = vector.broadcast %cst_27 : f32 to vector<1x240xf32>
      %c0_28 = arith.constant 0 : index
      %c0_29 = arith.constant 0 : index
      %44 = vector.load %arg8[%c0_28, %c0_29] : memref<1x240xf32, #tpu.memory_space<vmem>>, vector<1x240xf32>
      tpu.vector_store %arg8[%c0_28, %c0_29], %43 {strides = array<i32>} : memref<1x240xf32, #tpu.memory_space<vmem>>, vector<1x240xf32>,
      %cst_30 = arith.constant 0.000000e+00 : f32
      %45 = vector.broadcast %cst_30 : f32 to vector<1x240xf32>
      %c0_31 = arith.constant 0 : index
      %c0_32 = arith.constant 0 : index
      %46 = vector.load %arg9[%c0_31, %c0_32] : memref<1x240xf32, #tpu.memory_space<vmem>>, vector<1x240xf32>
      tpu.vector_store %arg9[%c0_31, %c0_32], %45 {strides = array<i32>} : memref<1x240xf32, #tpu.memory_space<vmem>>, vector<1x240xf32>,
    } else {
    }
    %c0 = arith.constant 0 : index
    %c0_1 = arith.constant 0 : index
    %3 = vector.load %arg1[%c0, %c0_1] : memref<256x784xbf16, #tpu.memory_space<vmem>>, vector<256x784xbf16>
    %c0_2 = arith.constant 0 : index
    %c0_3 = arith.constant 0 : index
    %4 = vector.load %arg2[%c0_2, %c0_3] : memref<784x240xbf16, #tpu.memory_space<vmem>>, vector<784x240xbf16>
    %cst = arith.constant dense<0.000000e+00> : vector<256x240xf32>
    %5 = tpu.matmul %3, %4, %cst {dimension_numbers = #tpu.dot_dimension_numbers<[1], [0], [0], [1], [0, 0, 1, 1], [], []>} : vector<256x784xbf16>, vector<784x240xbf16>, vector<256x240xf32> -> vector<256x240xf32>
    %c0_4 = arith.constant 0 : index
    %c0_5 = arith.constant 0 : index
    %6 = vector.load %arg3[%c0_4, %c0_5] : memref<1x240xf32, #tpu.memory_space<vmem>>, vector<1x240xf32>
    %7 = vector.broadcast %6 : vector<1x240xf32> to vector<256x240xf32>
    %8 = arith.addf %5, %7 : vector<256x240xf32>
    %cst_6 = arith.constant 0.000000e+00 : f32
    %9 = vector.broadcast %cst_6 : f32 to vector<256x240xf32>
    %10 = arith.cmpf ogt, %8, %9 : vector<256x240xf32>
    %cst_7 = arith.constant 2.000000e-01 : f32
    %11 = vector.broadcast %cst_7 : f32 to vector<256x240xf32>
    %12 = arith.mulf %11, %8 : vector<256x240xf32>
    %13 = arith.select %10, %8, %12 : vector<256x240xi1>, vector<256x240xf32>
    %c0_8 = arith.constant 0 : index
    %c0_9 = arith.constant 0 : index
    %14 = vector.load %arg4[%c0_8, %c0_9] : memref<256x240xf32, #tpu.memory_space<vmem>>, vector<256x240xf32>
    %15 = arith.mulf %13, %14 : vector<256x240xf32>
    %16 = arith.truncf %15 : vector<256x240xf32> to vector<256x240xbf16>
    %c0_10 = arith.constant 0 : index
    %c0_11 = arith.constant 0 : index
    %17 = vector.load %arg5[%c0_10, %c0_11] : memref<240x240xbf16, #tpu.memory_space<vmem>>, vector<240x240xbf16>
    %cst_12 = arith.constant dense<0.000000e+00> : vector<256x240xf32>
    %18 = tpu.matmul %16, %17, %cst_12 {dimension_numbers = #tpu.dot_dimension_numbers<[1], [0], [0], [1], [0, 0, 1, 1], [], []>} : vector<256x240xbf16>, vector<240x240xbf16>, vector<256x240xf32> -> vector<256x240xf32>
    %c0_13 = arith.constant 0 : index
    %c0_14 = arith.constant 0 : index
    %19 = vector.load %arg6[%c0_13, %c0_14] : memref<1x240xf32, #tpu.memory_space<vmem>>, vector<1x240xf32>
    %20 = vector.broadcast %19 : vector<1x240xf32> to vector<256x240xf32>
    %21 = arith.addf %18, %20 : vector<256x240xf32>
    %c0_15 = arith.constant 0 : index
    %c0_16 = arith.constant 0 : index
    %22 = vector.load %arg7[%c0_15, %c0_16] : memref<256x240xf32, #tpu.memory_space<vmem>>, vector<256x240xf32>
    tpu.vector_store %arg7[%c0_15, %c0_16], %21 {strides = array<i32>} : memref<256x240xf32, #tpu.memory_space<vmem>>, vector<256x240xf32>,
    %23 = tpu.iota {dimensions = array<i32: 0>} : vector<256x240xi32>
    %c256_i32 = arith.constant 256 : i32
    %24 = arith.muli %arg0, %c256_i32 : i32
    %25 = vector.broadcast %24 : i32 to vector<256x240xi32>
    %26 = arith.addi %23, %25 : vector<256x240xi32>
    %c300_i32 = arith.constant 300 : i32
    %27 = vector.broadcast %c300_i32 : i32 to vector<256x240xi32>
    %28 = arith.cmpi slt, %26, %27 : vector<256x240xi32>
    %29 = arith.extui %28 : vector<256x240xi1> to vector<256x240xi32>
    %30 = arith.sitofp %29 : vector<256x240xi32> to vector<256x240xf32>
    %31 = arith.mulf %21, %30 : vector<256x240xf32>
    %c0_17 = arith.constant 0 : index
    %c0_18 = arith.constant 0 : index
    %32 = vector.load %arg8[%c0_17, %c0_18] : memref<1x240xf32, #tpu.memory_space<vmem>>, vector<1x240xf32>
    %cst_19 = arith.constant dense<0.000000e+00> : vector<240xf32>
    %33 = vector.multi_reduction <add>, %31, %cst_19 [0] : vector<256x240xf32> to vector<240xf32>
    %34 = vector.shape_cast %33 : vector<240xf32> to vector<1x240xf32>
    %35 = arith.addf %32, %34 : vector<1x240xf32>
    %c0_20 = arith.constant 0 : index
    %c0_21 = arith.constant 0 : index
    %36 = vector.load %arg8[%c0_20, %c0_21] : memref<1x240xf32, #tpu.memory_space<vmem>>, vector<1x240xf32>
    tpu.vector_store %arg8[%c0_20, %c0_21], %35 {strides = array<i32>} : memref<1x240xf32, #tpu.memory_space<vmem>>, vector<1x240xf32>,
    %c0_22 = arith.constant 0 : index
    %c0_23 = arith.constant 0 : index
    %37 = vector.load %arg9[%c0_22, %c0_23] : memref<1x240xf32, #tpu.memory_space<vmem>>, vector<1x240xf32>
    %38 = arith.mulf %31, %31 : vector<256x240xf32>
    %cst_24 = arith.constant dense<0.000000e+00> : vector<240xf32>
    %39 = vector.multi_reduction <add>, %38, %cst_24 [0] : vector<256x240xf32> to vector<240xf32>
    %40 = vector.shape_cast %39 : vector<240xf32> to vector<1x240xf32>
    %41 = arith.addf %37, %40 : vector<1x240xf32>
    %c0_25 = arith.constant 0 : index
    %c0_26 = arith.constant 0 : index
    %42 = vector.load %arg9[%c0_25, %c0_26] : memref<1x240xf32, #tpu.memory_space<vmem>>, vector<1x240xf32>
    tpu.vector_store %arg9[%c0_25, %c0_26], %41 {strides = array<i32>} : memref<1x240xf32, #tpu.memory_space<vmem>>, vector<1x240xf32>,
    return
  }
  func.func @transform_0(%arg0: i32) -> (i32, i32) {
    %c0_i32 = arith.constant 0 : i32
    %c0_i32_0 = arith.constant 0 : i32
    return %arg0, %c0_i32 : i32, i32
  }
  func.func @transform_1(%arg0: i32) -> (i32, i32) {
    %c0_i32 = arith.constant 0 : i32
    %c0_i32_0 = arith.constant 0 : i32
    %c0_i32_1 = arith.constant 0 : i32
    return %c0_i32, %c0_i32_0 : i32, i32
  }
  func.func @transform_2(%arg0: i32) -> (i32, i32) {
    %c0_i32 = arith.constant 0 : i32
    %c0_i32_0 = arith.constant 0 : i32
    %c0_i32_1 = arith.constant 0 : i32
    return %c0_i32, %c0_i32_0 : i32, i32
  }
  func.func @transform_3(%arg0: i32) -> (i32, i32) {
    %c0_i32 = arith.constant 0 : i32
    %c0_i32_0 = arith.constant 0 : i32
    return %arg0, %c0_i32 : i32, i32
  }
  func.func @transform_4(%arg0: i32) -> (i32, i32) {
    %c0_i32 = arith.constant 0 : i32
    %c0_i32_0 = arith.constant 0 : i32
    %c0_i32_1 = arith.constant 0 : i32
    return %c0_i32, %c0_i32_0 : i32, i32
  }
  func.func @transform_5(%arg0: i32) -> (i32, i32) {
    %c0_i32 = arith.constant 0 : i32
    %c0_i32_0 = arith.constant 0 : i32
    %c0_i32_1 = arith.constant 0 : i32
    return %c0_i32, %c0_i32_0 : i32, i32
  }
  func.func @transform_6(%arg0: i32) -> (i32, i32) {
    %c0_i32 = arith.constant 0 : i32
    %c0_i32_0 = arith.constant 0 : i32
    return %arg0, %c0_i32 : i32, i32
  }
  func.func @transform_7(%arg0: i32) -> (i32, i32) {
    %c0_i32 = arith.constant 0 : i32
    %c0_i32_0 = arith.constant 0 : i32
    %c0_i32_1 = arith.constant 0 : i32
    return %c0_i32, %c0_i32_0 : i32, i32
  }
  func.func @transform_8(%arg0: i32) -> (i32, i32) {
    %c0_i32 = arith.constant 0 : i32
    %c0_i32_0 = arith.constant 0 : i32
    %c0_i32_1 = arith.constant 0 : i32
    return %c0_i32, %c0_i32_0 : i32, i32
  }
}

</mosaic_0001>

<llo_original>
// kernel: tpu_custom_call.1
$region0: #{tpu_custom_call.1}
  #allocation0 [shape = 'u32[]', space=smem, size = 0x4, offset = 0x4, fixed_abs, tag = 'smem constant byte address 0x4 - core index']
  #allocation1 [shape = 'u32[144,128]{1,0:T(1,128)}', space=vmem, size = 0x12000, scoped, tag = 'internal scratch']
  %s0 = inlined_call_operand.vmem [shape: bf16[512,784], index: 0, kind: input, shape index: {}]
  %s1 = inlined_call_operand.vmem [shape: bf16[784,240], index: 1, kind: input, shape index: {}]
  %s2 = inlined_call_operand.vmem [shape: f32[1,240], index: 2, kind: input, shape index: {}]
  %s3 = inlined_call_operand.vmem [shape: f32[512,240], index: 3, kind: input, shape index: {}]
  %s4 = inlined_call_operand.vmem [shape: bf16[240,240], index: 4, kind: input, shape index: {}]
  %s5 = inlined_call_operand.vmem [shape: f32[1,240], index: 5, kind: input, shape index: {}]
  %s6 = inlined_call_operand.vmem [shape: f32[512,240], index: 6, kind: output, shape index: {0}]
  %s7 = inlined_call_operand.hbm [shape: f32[1,240], index: 7, kind: output, shape index: {1}]
  %s8 = inlined_call_operand.hbm [shape: f32[1,240], index: 8, kind: output, shape index: {2}]
  %9 = xla_tuple %s6, %s7, %s8
  %s10 = sld [smem:[#allocation0]]
  $region77: #{tpu_custom_call.1} parent=0
    _
  %s12 = ssub.s32 1, %s10
  %s13 = scalar_select 0, %s12, %s10
  $region1: #{tpu_custom_call.1} parent=0
    #allocation2 [shape = 'u8[1024]{0}', space=vmem, size = 0x400, scoped, tag = 'output window, operand 1, single buffered']
    #allocation3 [shape = 's32[2]{0}', space=sflag, size = 0x8, scoped, tag = 'scoped memory for tpu_custom_call.1']
    #allocation4 [shape = 'u8[1024]{0}', space=vmem, size = 0x400, scoped, tag = 'output window, operand 2, single buffered']
    #allocation5 [shape = 's32[1]{0}', space=sflag, size = 0x4, scoped, tag = 'scoped memory for tpu_custom_call.1']
    %14 = vsyncpa [#allocation3], 0
    %15 = vsyncpa [#allocation5], 0
    loop: start=0, step=1, limit=4
    $region2: #{tpu_custom_call.1} parent=1 // loop_pre_header
      _
    $region3: #{tpu_custom_call.1} parent=1 // loop_header
      %s17 = sphi 0, %s21
      %p18 = scmp.ge.s32.totalorder %s17, 4
      %s27 = sphi 0, %s29
      %s30 = sphi 0, %s27
      %s31 = sphi 0, %s30
      %s47 = sphi 0, %s31
      %s51 = sphi 0, %s51
      %s53 = sphi 0, %s51
      %s54 = sphi 0, %s53
      %s68 = sphi 0, %s54
      %s72 = sphi 0, %s72
      %s74 = sphi 0, %s72
      %s75 = sphi 0, %s74
      %s89 = sphi 0, %s75
      %s95 = sphi 0, %s97
      %s98 = sphi 0, %s95
      %s99 = sphi 0, %s98
      %s115 = sphi 0, %s99
      %s119 = sphi 0, %s119
      %s121 = sphi 0, %s119
      %s122 = sphi 0, %s121
      %s136 = sphi 0, %s122
      %s140 = sphi 0, %s140
      %s142 = sphi 0, %s140
      %s143 = sphi 0, %s142
      %s157 = sphi 0, %s143
      %s163 = sphi 0, %s165
      %s166 = sphi 0, %s163
      %s167 = sphi 0, %s166
      %s183 = sphi 0, %s167
      %s187 = sphi 0, %s187
      %s189 = sphi 0, %s187
      %s190 = sphi 0, %s189
      %s204 = sphi 0, %s190
      %s208 = sphi 0, %s208
      %s210 = sphi 0, %s208
      %s211 = sphi 0, %s210
      %s225 = sphi 0, %s211
    $region4: #{tpu_custom_call.1} parent=1 // loop_header_branch
      %20 = sbr.rel (%p18) target = $region8
    $region5: #{tpu_custom_call.1} parent=1 // loop_body
      %s22 = ssub.s32 %s17, 1
      %s23 = ssub.s32 %s17, 2
      %s24 = sadd.s32 %s17, 1
      %s25 = ssub.s32 %s17, %s24
      %p26 = scmp.eq.s32.totalorder %s25, 0
      %s28 = sadd.s32 %s27, 1
      %s29 = scalar_select %p26, %s27, %s28
      %p32 = pneg %p26
      %p33 = scmp.eq.s32.totalorder %s17, 1
      %p34 = por %p32, %p33
      %p35 = scmp.ne.s32.totalorder %s27, %s30
      %p36 = scmp.eq.s32.totalorder %s17, 0
      %p37 = por %p35, %p36
      %p38 = scmp.ne.s32.totalorder %s27, %s30
      %p39 = scmp.eq.s32.totalorder %s22, 1
      %p40 = por %p38, %p39
      %p41 = scmp.ne.s32.totalorder %s30, %s31
      %p42 = scmp.eq.s32.totalorder %s22, 0
      %p43 = por %p41, %p42
      %p44 = scmp.ne.s32.totalorder %s30, %s31
      %p45 = scmp.eq.s32.totalorder %s23, 1
      %p46 = por %p44, %p45
      %p48 = scmp.ne.s32.totalorder %s31, %s47
      %p49 = scmp.eq.s32.totalorder %s23, 0
      %p50 = por %p48, %p49
      %s52 = sadd.s32 %s51, 1
      %p55 = scmp.eq.s32.totalorder %s17, 1
      %p56 = scmp.ne.s32.totalorder %s51, %s53
      %p57 = scmp.eq.s32.totalorder %s17, 0
      %p58 = por %p56, %p57
      %p59 = scmp.ne.s32.totalorder %s51, %s53
      %p60 = scmp.eq.s32.totalorder %s22, 1
      %p61 = por %p59, %p60
      %p62 = scmp.ne.s32.totalorder %s53, %s54
      %p63 = scmp.eq.s32.totalorder %s22, 0
      %p64 = por %p62, %p63
      %p65 = scmp.ne.s32.totalorder %s53, %s54
      %p66 = scmp.eq.s32.totalorder %s23, 1
      %p67 = por %p65, %p66
      %p69 = scmp.ne.s32.totalorder %s54, %s68
      %p70 = scmp.eq.s32.totalorder %s23, 0
      %p71 = por %p69, %p70
      %s73 = sadd.s32 %s72, 1
      %p76 = scmp.eq.s32.totalorder %s17, 1
      %p77 = scmp.ne.s32.totalorder %s72, %s74
      %p78 = scmp.eq.s32.totalorder %s17, 0
      %p79 = por %p77, %p78
      %p80 = scmp.ne.s32.totalorder %s72, %s74
      %p81 = scmp.eq.s32.totalorder %s22, 1
      %p82 = por %p80, %p81
      %p83 = scmp.ne.s32.totalorder %s74, %s75
      %p84 = scmp.eq.s32.totalorder %s22, 0
      %p85 = por %p83, %p84
      %p86 = scmp.ne.s32.totalorder %s74, %s75
      %p87 = scmp.eq.s32.totalorder %s23, 1
      %p88 = por %p86, %p87
      %p90 = scmp.ne.s32.totalorder %s75, %s89
      %p91 = scmp.eq.s32.totalorder %s23, 0
      %p92 = por %p90, %p91
      %s93 = ssub.s32 %s17, %s24
      %p94 = scmp.eq.s32.totalorder %s93, 0
      %s96 = sadd.s32 %s95, 1
      %s97 = scalar_select %p94, %s95, %s96
      %p100 = pneg %p94
      %p101 = scmp.eq.s32.totalorder %s17, 1
      %p102 = por %p100, %p101
      %p103 = scmp.ne.s32.totalorder %s95, %s98
      %p104 = scmp.eq.s32.totalorder %s17, 0
      %p105 = por %p103, %p104
      %p106 = scmp.ne.s32.totalorder %s95, %s98
      %p107 = scmp.eq.s32.totalorder %s22, 1
      %p108 = por %p106, %p107
      %p109 = scmp.ne.s32.totalorder %s98, %s99
      %p110 = scmp.eq.s32.totalorder %s22, 0
      %p111 = por %p109, %p110
      %p112 = scmp.ne.s32.totalorder %s98, %s99
      %p113 = scmp.eq.s32.totalorder %s23, 1
      %p114 = por %p112, %p113
      %p116 = scmp.ne.s32.totalorder %s99, %s115
      %p117 = scmp.eq.s32.totalorder %s23, 0
      %p118 = por %p116, %p117
      %s120 = sadd.s32 %s119, 1
      %p123 = scmp.eq.s32.totalorder %s17, 1
      %p124 = scmp.ne.s32.totalorder %s119, %s121
      %p125 = scmp.eq.s32.totalorder %s17, 0
      %p126 = por %p124, %p125
      %p127 = scmp.ne.s32.totalorder %s119, %s121
      %p128 = scmp.eq.s32.totalorder %s22, 1
      %p129 = por %p127, %p128
      %p130 = scmp.ne.s32.totalorder %s121, %s122
      %p131 = scmp.eq.s32.totalorder %s22, 0
      %p132 = por %p130, %p131
      %p133 = scmp.ne.s32.totalorder %s121, %s122
      %p134 = scmp.eq.s32.totalorder %s23, 1
      %p135 = por %p133, %p134
      %p137 = scmp.ne.s32.totalorder %s122, %s136
      %p138 = scmp.eq.s32.totalorder %s23, 0
      %p139 = por %p137, %p138
      %s141 = sadd.s32 %s140, 1
      %p144 = scmp.eq.s32.totalorder %s17, 1
      %p145 = scmp.ne.s32.totalorder %s140, %s142
      %p146 = scmp.eq.s32.totalorder %s17, 0
      %p147 = por %p145, %p146
      %p148 = scmp.ne.s32.totalorder %s140, %s142
      %p149 = scmp.eq.s32.totalorder %s22, 1
      %p150 = por %p148, %p149
      %p151 = scmp.ne.s32.totalorder %s142, %s143
      %p152 = scmp.eq.s32.totalorder %s22, 0
      %p153 = por %p151, %p152
      %p154 = scmp.ne.s32.totalorder %s142, %s143
      %p155 = scmp.eq.s32.totalorder %s23, 1
      %p156 = por %p154, %p155
      %p158 = scmp.ne.s32.totalorder %s143, %s157
      %p159 = scmp.eq.s32.totalorder %s23, 0
      %p160 = por %p158, %p159
      %s161 = ssub.s32 %s17, %s24
      %p162 = scmp.eq.s32.totalorder %s161, 0
      %s164 = sadd.s32 %s163, 1
      %s165 = scalar_select %p162, %s163, %s164
      %p168 = pneg %p162
      %p169 = scmp.eq.s32.totalorder %s17, 1
      %p170 = por %p168, %p169
      %p171 = scmp.ne.s32.totalorder %s163, %s166
      %p172 = scmp.eq.s32.totalorder %s17, 0
      %p173 = por %p171, %p172
      %p174 = scmp.ne.s32.totalorder %s163, %s166
      %p175 = scmp.eq.s32.totalorder %s22, 1
      %p176 = por %p174, %p175
      %p177 = scmp.ne.s32.totalorder %s166, %s167
      %p178 = scmp.eq.s32.totalorder %s22, 0
      %p179 = por %p177, %p178
      %p180 = scmp.ne.s32.totalorder %s166, %s167
      %p181 = scmp.eq.s32.totalorder %s23, 1
      %p182 = por %p180, %p181
      %p184 = scmp.ne.s32.totalorder %s167, %s183
      %p185 = scmp.eq.s32.totalorder %s23, 0
      %p186 = por %p184, %p185
      %s188 = sadd.s32 %s187, 1
      %p191 = scmp.eq.s32.totalorder %s17, 1
      %p192 = scmp.ne.s32.totalorder %s187, %s189
      %p193 = scmp.eq.s32.totalorder %s17, 0
      %p194 = por %p192, %p193
      %p195 = scmp.ne.s32.totalorder %s187, %s189
      %p196 = scmp.eq.s32.totalorder %s22, 1
      %p197 = por %p195, %p196
      %p198 = scmp.ne.s32.totalorder %s189, %s190
      %p199 = scmp.eq.s32.totalorder %s22, 0
      %p200 = por %p198, %p199
      %p201 = scmp.ne.s32.totalorder %s189, %s190
      %p202 = scmp.eq.s32.totalorder %s23, 1
      %p203 = por %p201, %p202
      %p205 = scmp.ne.s32.totalorder %s190, %s204
      %p206 = scmp.eq.s32.totalorder %s23, 0
      %p207 = por %p205, %p206
      %s209 = sadd.s32 %s208, 1
      %p212 = scmp.eq.s32.totalorder %s17, 1
      %p213 = scmp.ne.s32.totalorder %s208, %s210
      %p214 = scmp.eq.s32.totalorder %s17, 0
      %p215 = por %p213, %p214
      %p216 = scmp.ne.s32.totalorder %s208, %s210
      %p217 = scmp.eq.s32.totalorder %s22, 1
      %p218 = por %p216, %p217
      %p219 = scmp.ne.s32.totalorder %s210, %s211
      %p220 = scmp.eq.s32.totalorder %s22, 0
      %p221 = por %p219, %p220
      %p222 = scmp.ne.s32.totalorder %s210, %s211
      %p223 = scmp.eq.s32.totalorder %s23, 1
      %p224 = por %p222, %p223
      %p226 = scmp.ne.s32.totalorder %s211, %s225
      %p227 = scmp.eq.s32.totalorder %s23, 0
      %p228 = por %p226, %p227
      %p229 = scmp.le.s32.totalorder 1, %s17
      %p230 = scmp.lt.s32.totalorder %s17, 3
      %p231 = pnand %p229, %p230
      %p232 = pneg %p231
      // Predicated region
      $region9: #{tpu_custom_call.1} parent=5 // pred_check
        _
      $region10: #{tpu_custom_call.1} parent=5 // pred_check_branch
        %234 = sbr.rel (%p231) target = $region12
      $region11: #{tpu_custom_call.1} parent=5 // pred_region
        %s235 = ssub.s32 %s17, 1
        // Predicated region
        $region13: #{tpu_custom_call.1} parent=11 // pred_check
          %p236 = pneg %p64
        $region14: #{tpu_custom_call.1} parent=11 // pred_check_branch
          %238 = sbr.rel (%p236) target = $region16
        $region15: #{tpu_custom_call.1} parent=11 // pred_region
          _
        $region16: #{tpu_custom_call.1} parent=11 // pred_fallthru
          _
        // Predicated region
        $region17: #{tpu_custom_call.1} parent=11 // pred_check
          %p239 = pneg %p85
        $region18: #{tpu_custom_call.1} parent=11 // pred_check_branch
          %241 = sbr.rel (%p239) target = $region20
        $region19: #{tpu_custom_call.1} parent=11 // pred_region
          _
        $region20: #{tpu_custom_call.1} parent=11 // pred_fallthru
          _
        // Predicated region
        $region21: #{tpu_custom_call.1} parent=11 // pred_check
          %p242 = pneg %p132
        $region22: #{tpu_custom_call.1} parent=11 // pred_check_branch
          %244 = sbr.rel (%p242) target = $region24
        $region23: #{tpu_custom_call.1} parent=11 // pred_region
          _
        $region24: #{tpu_custom_call.1} parent=11 // pred_fallthru
          _
        // Predicated region
        $region25: #{tpu_custom_call.1} parent=11 // pred_check
          %p245 = pneg %p153
        $region26: #{tpu_custom_call.1} parent=11 // pred_check_branch
          %247 = sbr.rel (%p245) target = $region28
        $region27: #{tpu_custom_call.1} parent=11 // pred_region
          _
        $region28: #{tpu_custom_call.1} parent=11 // pred_fallthru
          _
      $region12: #{tpu_custom_call.1} parent=5 // pred_fallthru
        _
      %p248 = scmp.lt.s32.totalorder %s17, 2
      // Predicated region
      $region29: #{tpu_custom_call.1} parent=5 // pred_check
        %p249 = pneg %p248
      $region30: #{tpu_custom_call.1} parent=5 // pred_check_branch
        %251 = sbr.rel (%p249) target = $region32
      $region31: #{tpu_custom_call.1} parent=5 // pred_region
        // Predicated region
        $region33: #{tpu_custom_call.1} parent=31 // pred_check
          %p252 = pneg %p37
        $region34: #{tpu_custom_call.1} parent=31 // pred_check_branch
          %254 = sbr.rel (%p252) target = $region36
        $region35: #{tpu_custom_call.1} parent=31 // pred_region
          %s255 = smul.u32 32, %s17
          %p256 = scmp.lt.s32.totalorder %s255, 63
          %s257 = scalar_select %p256, %s255, 63
          %s258 = smul.addr %s257, 7
          %s259 = smul.addr %s258, 4
          %s260 = scalar_lea.vmem %s0, %s259
          %s261 = smul.u32 32, %s17
        $region36: #{tpu_custom_call.1} parent=31 // pred_fallthru
          _
        // Predicated region
        $region37: #{tpu_custom_call.1} parent=31 // pred_check
          %p262 = pneg %p105
        $region38: #{tpu_custom_call.1} parent=31 // pred_check_branch
          %264 = sbr.rel (%p262) target = $region40
        $region39: #{tpu_custom_call.1} parent=31 // pred_region
          %s265 = smul.u32 32, %s17
          %p266 = scmp.lt.s32.totalorder %s265, 63
          %s267 = scalar_select %p266, %s265, 63
          %s268 = smul.addr %s267, 2
          %s269 = smul.addr %s268, 8
          %s270 = scalar_lea.vmem %s3, %s269
          %s271 = smul.u32 32, %s17
        $region40: #{tpu_custom_call.1} parent=31 // pred_fallthru
          _
      $region32: #{tpu_custom_call.1} parent=5 // pred_fallthru
        _
      %p272 = scmp.le.s32.totalorder 1, %s17
      %p273 = scmp.lt.s32.totalorder %s17, 3
      %p274 = pnand %p272, %p273
      %p275 = pneg %p274
      // Predicated region
      $region41: #{tpu_custom_call.1} parent=5 // pred_check
        _
      $region42: #{tpu_custom_call.1} parent=5 // pred_check_branch
        %277 = sbr.rel (%p274) target = $region44
      $region43: #{tpu_custom_call.1} parent=5 // pred_region
        %s278 = ssub.s32 %s17, 1
        %s279 = smul.u32 32, %s22
        %p280 = scmp.lt.s32.totalorder %s279, 63
        %s281 = scalar_select %p280, %s279, 63
        %s282 = smul.addr %s281, 7
        %s283 = smul.addr %s282, 4
        %s284 = scalar_lea.vmem %s0, %s283
        %p285 = pneg %p43
        %p286 = pneg %p40
        %p287 = pneg %p64
        %p288 = pneg %p61
        %p289 = pneg %p85
        %p290 = pneg %p82
        %s291 = smul.u32 32, %s22
        %p292 = scmp.lt.s32.totalorder %s291, 63
        %s293 = scalar_select %p292, %s291, 63
        %s294 = smul.addr %s293, 2
        %s295 = smul.addr %s294, 8
        %s296 = scalar_lea.vmem %s3, %s295
        %p297 = pneg %p111
        %p298 = pneg %p108
        %p299 = pneg %p132
        %p300 = pneg %p129
        %p301 = pneg %p153
        %p302 = pneg %p150
        %p303 = pneg %p179
        %p304 = pneg %p176
        %s305 = smul.u32 32, %s22
        %p306 = scmp.lt.s32.totalorder %s305, 63
        %s307 = scalar_select %p306, %s305, 63
        %s308 = smul.addr %s307, 2
        %s309 = smul.addr %s308, 8
        %s310 = scalar_lea.vmem %s6, %s309
        %p311 = pneg %p200
        %p312 = pneg %p197
        %p313 = pneg %p221
        %p314 = pneg %p218
        %s315 = smul.u32 32, %s22
        %p316 = scmp.lt.s32.totalorder %s315, 63
        %s317 = scalar_select %p316, %s315, 63
        %s318 = smul.addr %s317, 7
        %s319 = smul.addr %s318, 4
        %s320 = scalar_lea.vmem %s0, %s319
        %s321 = smul.u32 32, %s22
        %s322 = smul.u32 32, %s22
        %p323 = scmp.lt.s32.totalorder %s322, 63
        %s324 = scalar_select %p323, %s322, 63
        %s325 = smul.addr %s324, 2
        %s326 = smul.addr %s325, 8
        %s327 = scalar_lea.vmem %s3, %s326
        %s328 = smul.u32 32, %s22
        %s329 = smul.u32 32, %s22
        %p330 = scmp.lt.s32.totalorder %s329, 63
        %s331 = scalar_select %p330, %s329, 63
        %s332 = smul.addr %s331, 2
        %s333 = smul.addr %s332, 8
        %s334 = scalar_lea.vmem %s6, %s333
        %s335 = smul.u32 32, %s22
        %p337 = scmp.eq.s32.totalorder %s22, 0
        // Predicated region
        $region45: #{tpu_custom_call.1} parent=43 // pred_check
          %p338 = pneg %p337
        $region46: #{tpu_custom_call.1} parent=43 // pred_check_branch
          %340 = sbr.rel (%p338) target = $region48
        $region47: #{tpu_custom_call.1} parent=43 // pred_region
          %v341 = vlaneseq
          %vm342 = vcmp.ge.s32.totalorder %v341, 0
          %vm343 = vcmp.lt.s32.totalorder %v341, 240
          %vm344 = vmand %vm342, %vm343
          %345 = vst.msk [vmem:[#allocation2] sm:$0x3] %vm344, 0.0
          %346 = vst.msk [vmem:[#allocation4] sm:$0x3] %vm344, 0.0
        $region48: #{tpu_custom_call.1} parent=43 // pred_fallthru
          _
        %v347 = vld [vmem:[%s320] sm:$0xff]
        %v348 = vld [vmem:[%s320 + $0x8] sm:$0xff]
        %v349 = vld [vmem:[%s320 + $0x10] sm:$0xff]
        %v350 = vld [vmem:[%s320 + $0x18] sm:$0xf]
        %v351 = vld [vmem:[%s320 + $0x1c] sm:$0xff]
        %v352 = vld [vmem:[%s320 + $0x24] sm:$0xff]
        %v353 = vld [vmem:[%s320 + $0x2c] sm:$0xff]
        %v354 = vld [vmem:[%s320 + $0x34] sm:$0xf]
        %v355 = vld [vmem:[%s320 + $0x38] sm:$0xff]
        %v356 = vld [vmem:[%s320 + $0x40] sm:$0xff]
        %v357 = vld [vmem:[%s320 + $0x48] sm:$0xff]
        %v358 = vld [vmem:[%s320 + $0x50] sm:$0xf]
        %v359 = vld [vmem:[%s320 + $0x54] sm:$0xff]
        %v360 = vld [vmem:[%s320 + $0x5c] sm:$0xff]
        %v361 = vld [vmem:[%s320 + $0x64] sm:$0xff]
        %v362 = vld [vmem:[%s320 + $0x6c] sm:$0xf]
        %v363 = vld [vmem:[%s320 + $0x70] sm:$0xff]
        %v364 = vld [vmem:[%s320 + $0x78] sm:$0xff]
        %v365 = vld [vmem:[%s320 + $0x80] sm:$0xff]
        %v366 = vld [vmem:[%s320 + $0x88] sm:$0xf]
        %v367 = vld [vmem:[%s320 + $0x8c] sm:$0xff]
        %v368 = vld [vmem:[%s320 + $0x94] sm:$0xff]
        %v369 = vld [vmem:[%s320 + $0x9c] sm:$0xff]
        %v370 = vld [vmem:[%s320 + $0xa4] sm:$0xf]
        %v371 = vld [vmem:[%s320 + $0xa8] sm:$0xff]
        %v372 = vld [vmem:[%s320 + $0xb0] sm:$0xff]
        %v373 = vld [vmem:[%s320 + $0xb8] sm:$0xff]
        %v374 = vld [vmem:[%s320 + $0xc0] sm:$0xf]
        %v375 = vld [vmem:[%s320 + $0xc4] sm:$0xff]
        %v376 = vld [vmem:[%s320 + $0xcc] sm:$0xff]
        %v377 = vld [vmem:[%s320 + $0xd4] sm:$0xff]
        %v378 = vld [vmem:[%s320 + $0xdc] sm:$0xf]
        %v379 = vld [vmem:[%s320 + $0xe0] sm:$0xff]
        %v380 = vld [vmem:[%s320 + $0xe8] sm:$0xff]
        %v381 = vld [vmem:[%s320 + $0xf0] sm:$0xff]
        %v382 = vld [vmem:[%s320 + $0xf8] sm:$0xf]
        %v383 = vld [vmem:[%s320 + $0xfc] sm:$0xff]
        %v384 = vld [vmem:[%s320 + $0x104] sm:$0xff]
        %v385 = vld [vmem:[%s320 + $0x10c] sm:$0xff]
        %v386 = vld [vmem:[%s320 + $0x114] sm:$0xf]
        %v387 = vld [vmem:[%s320 + $0x118] sm:$0xff]
        %v388 = vld [vmem:[%s320 + $0x120] sm:$0xff]
        %v389 = vld [vmem:[%s320 + $0x128] sm:$0xff]
        %v390 = vld [vmem:[%s320 + $0x130] sm:$0xf]
        %v391 = vld [vmem:[%s320 + $0x134] sm:$0xff]
        %v392 = vld [vmem:[%s320 + $0x13c] sm:$0xff]
        %v393 = vld [vmem:[%s320 + $0x144] sm:$0xff]
        %v394 = vld [vmem:[%s320 + $0x14c] sm:$0xf]
        %v395 = vld [vmem:[%s320 + $0x150] sm:$0xff]
        %v396 = vld [vmem:[%s320 + $0x158] sm:$0xff]
        %v397 = vld [vmem:[%s320 + $0x160] sm:$0xff]
        %v398 = vld [vmem:[%s320 + $0x168] sm:$0xf]
        %v399 = vld [vmem:[%s320 + $0x16c] sm:$0xff]
        %v400 = vld [vmem:[%s320 + $0x174] sm:$0xff]
        %v401 = vld [vmem:[%s320 + $0x17c] sm:$0xff]
        %v402 = vld [vmem:[%s320 + $0x184] sm:$0xf]
        %v403 = vld [vmem:[%s320 + $0x188] sm:$0xff]
        %v404 = vld [vmem:[%s320 + $0x190] sm:$0xff]
        %v405 = vld [vmem:[%s320 + $0x198] sm:$0xff]
        %v406 = vld [vmem:[%s320 + $0x1a0] sm:$0xf]
        %v407 = vld [vmem:[%s320 + $0x1a4] sm:$0xff]
        %v408 = vld [vmem:[%s320 + $0x1ac] sm:$0xff]
        %v409 = vld [vmem:[%s320 + $0x1b4] sm:$0xff]
        %v410 = vld [vmem:[%s320 + $0x1bc] sm:$0xf]
        %v411 = vld [vmem:[%s320 + $0x1c0] sm:$0xff]
        %v412 = vld [vmem:[%s320 + $0x1c8] sm:$0xff]
        %v413 = vld [vmem:[%s320 + $0x1d0] sm:$0xff]
        %v414 = vld [vmem:[%s320 + $0x1d8] sm:$0xf]
        %v415 = vld [vmem:[%s320 + $0x1dc] sm:$0xff]
        %v416 = vld [vmem:[%s320 + $0x1e4] sm:$0xff]
        %v417 = vld [vmem:[%s320 + $0x1ec] sm:$0xff]
        %v418 = vld [vmem:[%s320 + $0x1f4] sm:$0xf]
        %v419 = vld [vmem:[%s320 + $0x1f8] sm:$0xff]
        %v420 = vld [vmem:[%s320 + $0x200] sm:$0xff]
        %v421 = vld [vmem:[%s320 + $0x208] sm:$0xff]
        %v422 = vld [vmem:[%s320 + $0x210] sm:$0xf]
        %v423 = vld [vmem:[%s320 + $0x214] sm:$0xff]
        %v424 = vld [vmem:[%s320 + $0x21c] sm:$0xff]
        %v425 = vld [vmem:[%s320 + $0x224] sm:$0xff]
        %v426 = vld [vmem:[%s320 + $0x22c] sm:$0xf]
        %v427 = vld [vmem:[%s320 + $0x230] sm:$0xff]
        %v428 = vld [vmem:[%s320 + $0x238] sm:$0xff]
        %v429 = vld [vmem:[%s320 + $0x240] sm:$0xff]
        %v430 = vld [vmem:[%s320 + $0x248] sm:$0xf]
        %v431 = vld [vmem:[%s320 + $0x24c] sm:$0xff]
        %v432 = vld [vmem:[%s320 + $0x254] sm:$0xff]
        %v433 = vld [vmem:[%s320 + $0x25c] sm:$0xff]
        %v434 = vld [vmem:[%s320 + $0x264] sm:$0xf]
        %v435 = vld [vmem:[%s320 + $0x268] sm:$0xff]
        %v436 = vld [vmem:[%s320 + $0x270] sm:$0xff]
        %v437 = vld [vmem:[%s320 + $0x278] sm:$0xff]
        %v438 = vld [vmem:[%s320 + $0x280] sm:$0xf]
        %v439 = vld [vmem:[%s320 + $0x284] sm:$0xff]
        %v440 = vld [vmem:[%s320 + $0x28c] sm:$0xff]
        %v441 = vld [vmem:[%s320 + $0x294] sm:$0xff]
        %v442 = vld [vmem:[%s320 + $0x29c] sm:$0xf]
        %v443 = vld [vmem:[%s320 + $0x2a0] sm:$0xff]
        %v444 = vld [vmem:[%s320 + $0x2a8] sm:$0xff]
        %v445 = vld [vmem:[%s320 + $0x2b0] sm:$0xff]
        %v446 = vld [vmem:[%s320 + $0x2b8] sm:$0xf]
        %v447 = vld [vmem:[%s320 + $0x2bc] sm:$0xff]
        %v448 = vld [vmem:[%s320 + $0x2c4] sm:$0xff]
        %v449 = vld [vmem:[%s320 + $0x2cc] sm:$0xff]
        %v450 = vld [vmem:[%s320 + $0x2d4] sm:$0xf]
        %v451 = vld [vmem:[%s320 + $0x2d8] sm:$0xff]
        %v452 = vld [vmem:[%s320 + $0x2e0] sm:$0xff]
        %v453 = vld [vmem:[%s320 + $0x2e8] sm:$0xff]
        %v454 = vld [vmem:[%s320 + $0x2f0] sm:$0xf]
        %v455 = vld [vmem:[%s320 + $0x2f4] sm:$0xff]
        %v456 = vld [vmem:[%s320 + $0x2fc] sm:$0xff]
        %v457 = vld [vmem:[%s320 + $0x304] sm:$0xff]
        %v458 = vld [vmem:[%s320 + $0x30c] sm:$0xf]
        %v459 = vld [vmem:[%s320 + $0x310] sm:$0xff]
        %v460 = vld [vmem:[%s320 + $0x318] sm:$0xff]
        %v461 = vld [vmem:[%s320 + $0x320] sm:$0xff]
        %v462 = vld [vmem:[%s320 + $0x328] sm:$0xf]
        %v463 = vld [vmem:[%s320 + $0x32c] sm:$0xff]
        %v464 = vld [vmem:[%s320 + $0x334] sm:$0xff]
        %v465 = vld [vmem:[%s320 + $0x33c] sm:$0xff]
        %v466 = vld [vmem:[%s320 + $0x344] sm:$0xf]
        %v467 = vld [vmem:[%s320 + $0x348] sm:$0xff]
        %v468 = vld [vmem:[%s320 + $0x350] sm:$0xff]
        %v469 = vld [vmem:[%s320 + $0x358] sm:$0xff]
        %v470 = vld [vmem:[%s320 + $0x360] sm:$0xf]
        %v471 = vld [vmem:[%s320 + $0x364] sm:$0xff]
        %v472 = vld [vmem:[%s320 + $0x36c] sm:$0xff]
        %v473 = vld [vmem:[%s320 + $0x374] sm:$0xff]
        %v474 = vld [vmem:[%s320 + $0x37c] sm:$0xf]
        %v475 = vld [vmem:[%s1] sm:$0xff]
        %v476 = vld [vmem:[%s1 + $0x8] sm:$0xff]
        %v477 = vld [vmem:[%s1 + $0x10] sm:$0xff]
        %v478 = vld [vmem:[%s1 + $0x18] sm:$0xff]
        %v479 = vld [vmem:[%s1 + $0x20] sm:$0xff]
        %v480 = vld [vmem:[%s1 + $0x28] sm:$0xff]
        %v481 = vld [vmem:[%s1 + $0x30] sm:$0xff]
        %v482 = vld [vmem:[%s1 + $0x38] sm:$0xff]
        %v483 = vld [vmem:[%s1 + $0x40] sm:$0xff]
        %v484 = vld [vmem:[%s1 + $0x48] sm:$0xff]
        %v485 = vld [vmem:[%s1 + $0x50] sm:$0xff]
        %v486 = vld [vmem:[%s1 + $0x58] sm:$0xff]
        %v487 = vld [vmem:[%s1 + $0x60] sm:$0xff]
        %v488 = vld [vmem:[%s1 + $0x68] sm:$0xff]
        %v489 = vld [vmem:[%s1 + $0x70] sm:$0xff]
        %v490 = vld [vmem:[%s1 + $0x78] sm:$0xff]
        %v491 = vld [vmem:[%s1 + $0x80] sm:$0xff]
        %v492 = vld [vmem:[%s1 + $0x88] sm:$0xff]
        %v493 = vld [vmem:[%s1 + $0x90] sm:$0xff]
        %v494 = vld [vmem:[%s1 + $0x98] sm:$0xff]
        %v495 = vld [vmem:[%s1 + $0xa0] sm:$0xff]
        %v496 = vld [vmem:[%s1 + $0xa8] sm:$0xff]
        %v497 = vld [vmem:[%s1 + $0xb0] sm:$0xff]
        %v498 = vld [vmem:[%s1 + $0xb8] sm:$0xff]
        %v499 = vld [vmem:[%s1 + $0xc0] sm:$0xff]
        %v500 = vld [vmem:[%s1 + $0xc8] sm:$0xff]
        %v501 = vld [vmem:[%s1 + $0xd0] sm:$0xff]
        %v502 = vld [vmem:[%s1 + $0xd8] sm:$0xff]
        %v503 = vld [vmem:[%s1 + $0xe0] sm:$0xff]
        %v504 = vld [vmem:[%s1 + $0xe8] sm:$0xff]
        %v505 = vld [vmem:[%s1 + $0xf0] sm:$0xff]
        %v506 = vld [vmem:[%s1 + $0xf8] sm:$0xff]
        %v507 = vld [vmem:[%s1 + $0x100] sm:$0xff]
        %v508 = vld [vmem:[%s1 + $0x108] sm:$0xff]
        %v509 = vld [vmem:[%s1 + $0x110] sm:$0xff]
        %v510 = vld [vmem:[%s1 + $0x118] sm:$0xff]
        %v511 = vld [vmem:[%s1 + $0x120] sm:$0xff]
        %v512 = vld [vmem:[%s1 + $0x128] sm:$0xff]
        %v513 = vld [vmem:[%s1 + $0x130] sm:$0xff]
        %v514 = vld [vmem:[%s1 + $0x138] sm:$0xff]
        %v515 = vld [vmem:[%s1 + $0x140] sm:$0xff]
        %v516 = vld [vmem:[%s1 + $0x148] sm:$0xff]
        %v517 = vld [vmem:[%s1 + $0x150] sm:$0xff]
        %v518 = vld [vmem:[%s1 + $0x158] sm:$0xff]
        %v519 = vld [vmem:[%s1 + $0x160] sm:$0xff]
        %v520 = vld [vmem:[%s1 + $0x168] sm:$0xff]
        %v521 = vld [vmem:[%s1 + $0x170] sm:$0xff]
        %v522 = vld [vmem:[%s1 + $0x178] sm:$0xff]
        %v523 = vld [vmem:[%s1 + $0x180] sm:$0xff]
        %v524 = vld [vmem:[%s1 + $0x188] sm:$0xff]
        %v525 = vld [vmem:[%s1 + $0x190] sm:$0xff]
        %v526 = vld [vmem:[%s1 + $0x198] sm:$0xff]
        %v527 = vld [vmem:[%s1 + $0x1a0] sm:$0xff]
        %v528 = vld [vmem:[%s1 + $0x1a8] sm:$0xff]
        %v529 = vld [vmem:[%s1 + $0x1b0] sm:$0xff]
        %v530 = vld [vmem:[%s1 + $0x1b8] sm:$0xff]
        %v531 = vld [vmem:[%s1 + $0x1c0] sm:$0xff]
        %v532 = vld [vmem:[%s1 + $0x1c8] sm:$0xff]
        %v533 = vld [vmem:[%s1 + $0x1d0] sm:$0xff]
        %v534 = vld [vmem:[%s1 + $0x1d8] sm:$0xff]
        %v535 = vld [vmem:[%s1 + $0x1e0] sm:$0xff]
        %v536 = vld [vmem:[%s1 + $0x1e8] sm:$0xff]
        %v537 = vld [vmem:[%s1 + $0x1f0] sm:$0xff]
        %v538 = vld [vmem:[%s1 + $0x1f8] sm:$0xff]
        %v539 = vld [vmem:[%s1 + $0x200] sm:$0xff]
        %v540 = vld [vmem:[%s1 + $0x208] sm:$0xff]
        %v541 = vld [vmem:[%s1 + $0x210] sm:$0xff]
        %v542 = vld [vmem:[%s1 + $0x218] sm:$0xff]
        %v543 = vld [vmem:[%s1 + $0x220] sm:$0xff]
        %v544 = vld [vmem:[%s1 + $0x228] sm:$0xff]
        %v545 = vld [vmem:[%s1 + $0x230] sm:$0xff]
        %v546 = vld [vmem:[%s1 + $0x238] sm:$0xff]
        %v547 = vld [vmem:[%s1 + $0x240] sm:$0xff]
        %v548 = vld [vmem:[%s1 + $0x248] sm:$0xff]
        %v549 = vld [vmem:[%s1 + $0x250] sm:$0xff]
        %v550 = vld [vmem:[%s1 + $0x258] sm:$0xff]
        %v551 = vld [vmem:[%s1 + $0x260] sm:$0xff]
        %v552 = vld [vmem:[%s1 + $0x268] sm:$0xff]
        %v553 = vld [vmem:[%s1 + $0x270] sm:$0xff]
        %v554 = vld [vmem:[%s1 + $0x278] sm:$0xff]
        %v555 = vld [vmem:[%s1 + $0x280] sm:$0xff]
        %v556 = vld [vmem:[%s1 + $0x288] sm:$0xff]
        %v557 = vld [vmem:[%s1 + $0x290] sm:$0xff]
        %v558 = vld [vmem:[%s1 + $0x298] sm:$0xff]
        %v559 = vld [vmem:[%s1 + $0x2a0] sm:$0xff]
        %v560 = vld [vmem:[%s1 + $0x2a8] sm:$0xff]
        %v561 = vld [vmem:[%s1 + $0x2b0] sm:$0xff]
        %v562 = vld [vmem:[%s1 + $0x2b8] sm:$0xff]
        %v563 = vld [vmem:[%s1 + $0x2c0] sm:$0xff]
        %v564 = vld [vmem:[%s1 + $0x2c8] sm:$0xff]
        %v565 = vld [vmem:[%s1 + $0x2d0] sm:$0xff]
        %v566 = vld [vmem:[%s1 + $0x2d8] sm:$0xff]
        %v567 = vld [vmem:[%s1 + $0x2e0] sm:$0xff]
        %v568 = vld [vmem:[%s1 + $0x2e8] sm:$0xff]
        %v569 = vld [vmem:[%s1 + $0x2f0] sm:$0xff]
        %v570 = vld [vmem:[%s1 + $0x2f8] sm:$0xff]
        %v571 = vld [vmem:[%s1 + $0x300] sm:$0xff]
        %v572 = vld [vmem:[%s1 + $0x308] sm:$0xff]
        %v573 = vld [vmem:[%s2] sm:$0x3]
        %v575 = vlaneseq
        %v576 = vshrl.u32 %v575, 7
        %v577 = vsub.s32 0, %v576
        %v578 = vrot.slane %v573, %v577
        %v579 = vlaneseq
        %v580 = vshrl.u32 %v579, 7
        %v581 = vsub.s32 1, %v580
        %v582 = vrot.slane %v573, %v581
        %v713 = vunpack.c.l.b16 %v347
        %v714 = vunpack.c.h.b16 %v347
        %v715 = vunpack.c.l.b16 %v348
        %v716 = vunpack.c.h.b16 %v348
        %v717 = vunpack.c.l.b16 %v349
        %v718 = vunpack.c.h.b16 %v349
        %v719 = vunpack.c.l.b16 %v350
        %v720 = vunpack.c.l.b16 %v351
        %v721 = vunpack.c.h.b16 %v351
        %v722 = vunpack.c.l.b16 %v352
        %v723 = vunpack.c.h.b16 %v352
        %v724 = vunpack.c.l.b16 %v353
        %v725 = vunpack.c.h.b16 %v353
        %v726 = vunpack.c.l.b16 %v354
        %v727 = vunpack.c.l.b16 %v355
        %v728 = vunpack.c.h.b16 %v355
        %v729 = vunpack.c.l.b16 %v356
        %v730 = vunpack.c.h.b16 %v356
        %v731 = vunpack.c.l.b16 %v357
        %v732 = vunpack.c.h.b16 %v357
        %v733 = vunpack.c.l.b16 %v358
        %v734 = vunpack.c.l.b16 %v359
        %v735 = vunpack.c.h.b16 %v359
        %v736 = vunpack.c.l.b16 %v360
        %v737 = vunpack.c.h.b16 %v360
        %v738 = vunpack.c.l.b16 %v361
        %v739 = vunpack.c.h.b16 %v361
        %v740 = vunpack.c.l.b16 %v362
        %v741 = vunpack.c.l.b16 %v363
        %v742 = vunpack.c.h.b16 %v363
        %v743 = vunpack.c.l.b16 %v364
        %v744 = vunpack.c.h.b16 %v364
        %v745 = vunpack.c.l.b16 %v365
        %v746 = vunpack.c.h.b16 %v365
        %v747 = vunpack.c.l.b16 %v366
        %v748 = vunpack.c.l.b16 %v367
        %v749 = vunpack.c.h.b16 %v367
        %v750 = vunpack.c.l.b16 %v368
        %v751 = vunpack.c.h.b16 %v368
        %v752 = vunpack.c.l.b16 %v369
        %v753 = vunpack.c.h.b16 %v369
        %v754 = vunpack.c.l.b16 %v370
        %v755 = vunpack.c.l.b16 %v371
        %v756 = vunpack.c.h.b16 %v371
        %v757 = vunpack.c.l.b16 %v372
        %v758 = vunpack.c.h.b16 %v372
        %v759 = vunpack.c.l.b16 %v373
        %v760 = vunpack.c.h.b16 %v373
        %v761 = vunpack.c.l.b16 %v374
        %v762 = vunpack.c.l.b16 %v375
        %v763 = vunpack.c.h.b16 %v375
        %v764 = vunpack.c.l.b16 %v376
        %v765 = vunpack.c.h.b16 %v376
        %v766 = vunpack.c.l.b16 %v377
        %v767 = vunpack.c.h.b16 %v377
        %v768 = vunpack.c.l.b16 %v378
        %v769 = vunpack.c.l.b16 %v379
        %v770 = vunpack.c.h.b16 %v379
        %v771 = vunpack.c.l.b16 %v380
        %v772 = vunpack.c.h.b16 %v380
        %v773 = vunpack.c.l.b16 %v381
        %v774 = vunpack.c.h.b16 %v381
        %v775 = vunpack.c.l.b16 %v382
        %v776 = vunpack.c.l.b16 %v383
        %v777 = vunpack.c.h.b16 %v383
        %v778 = vunpack.c.l.b16 %v384
        %v779 = vunpack.c.h.b16 %v384
        %v780 = vunpack.c.l.b16 %v385
        %v781 = vunpack.c.h.b16 %v385
        %v782 = vunpack.c.l.b16 %v386
        %v783 = vunpack.c.l.b16 %v387
        %v784 = vunpack.c.h.b16 %v387
        %v785 = vunpack.c.l.b16 %v388
        %v786 = vunpack.c.h.b16 %v388
        %v787 = vunpack.c.l.b16 %v389
        %v788 = vunpack.c.h.b16 %v389
        %v789 = vunpack.c.l.b16 %v390
        %v790 = vunpack.c.l.b16 %v391
        %v791 = vunpack.c.h.b16 %v391
        %v792 = vunpack.c.l.b16 %v392
        %v793 = vunpack.c.h.b16 %v392
        %v794 = vunpack.c.l.b16 %v393
        %v795 = vunpack.c.h.b16 %v393
        %v796 = vunpack.c.l.b16 %v394
        %v797 = vunpack.c.l.b16 %v395
        %v798 = vunpack.c.h.b16 %v395
        %v799 = vunpack.c.l.b16 %v396
        %v800 = vunpack.c.h.b16 %v396
        %v801 = vunpack.c.l.b16 %v397
        %v802 = vunpack.c.h.b16 %v397
        %v803 = vunpack.c.l.b16 %v398
        %v804 = vunpack.c.l.b16 %v399
        %v805 = vunpack.c.h.b16 %v399
        %v806 = vunpack.c.l.b16 %v400
        %v807 = vunpack.c.h.b16 %v400
        %v808 = vunpack.c.l.b16 %v401
        %v809 = vunpack.c.h.b16 %v401
        %v810 = vunpack.c.l.b16 %v402
        %v811 = vunpack.c.l.b16 %v403
        %v812 = vunpack.c.h.b16 %v403
        %v813 = vunpack.c.l.b16 %v404
        %v814 = vunpack.c.h.b16 %v404
        %v815 = vunpack.c.l.b16 %v405
        %v816 = vunpack.c.h.b16 %v405
        %v817 = vunpack.c.l.b16 %v406
        %v818 = vunpack.c.l.b16 %v407
        %v819 = vunpack.c.h.b16 %v407
        %v820 = vunpack.c.l.b16 %v408
        %v821 = vunpack.c.h.b16 %v408
        %v822 = vunpack.c.l.b16 %v409
        %v823 = vunpack.c.h.b16 %v409
        %v824 = vunpack.c.l.b16 %v410
        %v825 = vunpack.c.l.b16 %v411
        %v826 = vunpack.c.h.b16 %v411
        %v827 = vunpack.c.l.b16 %v412
        %v828 = vunpack.c.h.b16 %v412
        %v829 = vunpack.c.l.b16 %v413
        %v830 = vunpack.c.h.b16 %v413
        %v831 = vunpack.c.l.b16 %v414
        %v832 = vunpack.c.l.b16 %v415
        %v833 = vunpack.c.h.b16 %v415
        %v834 = vunpack.c.l.b16 %v416
        %v835 = vunpack.c.h.b16 %v416
        %v836 = vunpack.c.l.b16 %v417
        %v837 = vunpack.c.h.b16 %v417
        %v838 = vunpack.c.l.b16 %v418
        %v839 = vunpack.c.l.b16 %v419
        %v840 = vunpack.c.h.b16 %v419
        %v841 = vunpack.c.l.b16 %v420
        %v842 = vunpack.c.h.b16 %v420
        %v843 = vunpack.c.l.b16 %v421
        %v844 = vunpack.c.h.b16 %v421
        %v845 = vunpack.c.l.b16 %v422
        %v846 = vunpack.c.l.b16 %v423
        %v847 = vunpack.c.h.b16 %v423
        %v848 = vunpack.c.l.b16 %v424
        %v849 = vunpack.c.h.b16 %v424
        %v850 = vunpack.c.l.b16 %v425
        %v851 = vunpack.c.h.b16 %v425
        %v852 = vunpack.c.l.b16 %v426
        %v853 = vunpack.c.l.b16 %v427
        %v854 = vunpack.c.h.b16 %v427
        %v855 = vunpack.c.l.b16 %v428
        %v856 = vunpack.c.h.b16 %v428
        %v857 = vunpack.c.l.b16 %v429
        %v858 = vunpack.c.h.b16 %v429
        %v859 = vunpack.c.l.b16 %v430
        %v860 = vunpack.c.l.b16 %v431
        %v861 = vunpack.c.h.b16 %v431
        %v862 = vunpack.c.l.b16 %v432
        %v863 = vunpack.c.h.b16 %v432
        %v864 = vunpack.c.l.b16 %v433
        %v865 = vunpack.c.h.b16 %v433
        %v866 = vunpack.c.l.b16 %v434
        %v867 = vunpack.c.l.b16 %v435
        %v868 = vunpack.c.h.b16 %v435
        %v869 = vunpack.c.l.b16 %v436
        %v870 = vunpack.c.h.b16 %v436
        %v871 = vunpack.c.l.b16 %v437
        %v872 = vunpack.c.h.b16 %v437
        %v873 = vunpack.c.l.b16 %v438
        %v874 = vunpack.c.l.b16 %v439
        %v875 = vunpack.c.h.b16 %v439
        %v876 = vunpack.c.l.b16 %v440
        %v877 = vunpack.c.h.b16 %v440
        %v878 = vunpack.c.l.b16 %v441
        %v879 = vunpack.c.h.b16 %v441
        %v880 = vunpack.c.l.b16 %v442
        %v881 = vunpack.c.l.b16 %v443
        %v882 = vunpack.c.h.b16 %v443
        %v883 = vunpack.c.l.b16 %v444
        %v884 = vunpack.c.h.b16 %v444
        %v885 = vunpack.c.l.b16 %v445
        %v886 = vunpack.c.h.b16 %v445
        %v887 = vunpack.c.l.b16 %v446
        %v888 = vunpack.c.l.b16 %v447
        %v889 = vunpack.c.h.b16 %v447
        %v890 = vunpack.c.l.b16 %v448
        %v891 = vunpack.c.h.b16 %v448
        %v892 = vunpack.c.l.b16 %v449
        %v893 = vunpack.c.h.b16 %v449
        %v894 = vunpack.c.l.b16 %v450
        %v895 = vunpack.c.l.b16 %v451
        %v896 = vunpack.c.h.b16 %v451
        %v897 = vunpack.c.l.b16 %v452
        %v898 = vunpack.c.h.b16 %v452
        %v899 = vunpack.c.l.b16 %v453
        %v900 = vunpack.c.h.b16 %v453
        %v901 = vunpack.c.l.b16 %v454
        %v902 = vunpack.c.l.b16 %v455
        %v903 = vunpack.c.h.b16 %v455
        %v904 = vunpack.c.l.b16 %v456
        %v905 = vunpack.c.h.b16 %v456
        %v906 = vunpack.c.l.b16 %v457
        %v907 = vunpack.c.h.b16 %v457
        %v908 = vunpack.c.l.b16 %v458
        %v909 = vunpack.c.l.b16 %v459
        %v910 = vunpack.c.h.b16 %v459
        %v911 = vunpack.c.l.b16 %v460
        %v912 = vunpack.c.h.b16 %v460
        %v913 = vunpack.c.l.b16 %v461
        %v914 = vunpack.c.h.b16 %v461
        %v915 = vunpack.c.l.b16 %v462
        %v916 = vunpack.c.l.b16 %v463
        %v917 = vunpack.c.h.b16 %v463
        %v918 = vunpack.c.l.b16 %v464
        %v919 = vunpack.c.h.b16 %v464
        %v920 = vunpack.c.l.b16 %v465
        %v921 = vunpack.c.h.b16 %v465
        %v922 = vunpack.c.l.b16 %v466
        %v923 = vunpack.c.l.b16 %v467
        %v924 = vunpack.c.h.b16 %v467
        %v925 = vunpack.c.l.b16 %v468
        %v926 = vunpack.c.h.b16 %v468
        %v927 = vunpack.c.l.b16 %v469
        %v928 = vunpack.c.h.b16 %v469
        %v929 = vunpack.c.l.b16 %v470
        %v930 = vunpack.c.l.b16 %v471
        %v931 = vunpack.c.h.b16 %v471
        %v932 = vunpack.c.l.b16 %v472
        %v933 = vunpack.c.h.b16 %v472
        %v934 = vunpack.c.l.b16 %v473
        %v935 = vunpack.c.h.b16 %v473
        %v936 = vunpack.c.l.b16 %v474
        %v937 = vpack.c.b16 %v720, %v713
        %v938 = vpack.c.b16 %v721, %v714
        %v939 = vpack.c.b16 %v722, %v715
        %v940 = vpack.c.b16 %v723, %v716
        %v941 = vpack.c.b16 %v724, %v717
        %v942 = vpack.c.b16 %v725, %v718
        %v943 = vpack.c.b16 %v726, %v719
        %v944 = vpack.c.b16 %v734, %v727
        %v945 = vpack.c.b16 %v735, %v728
        %v946 = vpack.c.b16 %v736, %v729
        %v947 = vpack.c.b16 %v737, %v730
        %v948 = vpack.c.b16 %v738, %v731
        %v949 = vpack.c.b16 %v739, %v732
        %v950 = vpack.c.b16 %v740, %v733
        %v951 = vpack.c.b16 %v748, %v741
        %v952 = vpack.c.b16 %v749, %v742
        %v953 = vpack.c.b16 %v750, %v743
        %v954 = vpack.c.b16 %v751, %v744
        %v955 = vpack.c.b16 %v752, %v745
        %v956 = vpack.c.b16 %v753, %v746
        %v957 = vpack.c.b16 %v754, %v747
        %v958 = vpack.c.b16 %v762, %v755
        %v959 = vpack.c.b16 %v763, %v756
        %v960 = vpack.c.b16 %v764, %v757
        %v961 = vpack.c.b16 %v765, %v758
        %v962 = vpack.c.b16 %v766, %v759
        %v963 = vpack.c.b16 %v767, %v760
        %v964 = vpack.c.b16 %v768, %v761
        %v965 = vpack.c.b16 %v776, %v769
        %v966 = vpack.c.b16 %v777, %v770
        %v967 = vpack.c.b16 %v778, %v771
        %v968 = vpack.c.b16 %v779, %v772
        %v969 = vpack.c.b16 %v780, %v773
        %v970 = vpack.c.b16 %v781, %v774
        %v971 = vpack.c.b16 %v782, %v775
        %v972 = vpack.c.b16 %v790, %v783
        %v973 = vpack.c.b16 %v791, %v784
        %v974 = vpack.c.b16 %v792, %v785
        %v975 = vpack.c.b16 %v793, %v786
        %v976 = vpack.c.b16 %v794, %v787
        %v977 = vpack.c.b16 %v795, %v788
        %v978 = vpack.c.b16 %v796, %v789
        %v979 = vpack.c.b16 %v804, %v797
        %v980 = vpack.c.b16 %v805, %v798
        %v981 = vpack.c.b16 %v806, %v799
        %v982 = vpack.c.b16 %v807, %v800
        %v983 = vpack.c.b16 %v808, %v801
        %v984 = vpack.c.b16 %v809, %v802
        %v985 = vpack.c.b16 %v810, %v803
        %v986 = vpack.c.b16 %v818, %v811
        %v987 = vpack.c.b16 %v819, %v812
        %v988 = vpack.c.b16 %v820, %v813
        %v989 = vpack.c.b16 %v821, %v814
        %v990 = vpack.c.b16 %v822, %v815
        %v991 = vpack.c.b16 %v823, %v816
        %v992 = vpack.c.b16 %v824, %v817
        %v993 = vpack.c.b16 %v832, %v825
        %v994 = vpack.c.b16 %v833, %v826
        %v995 = vpack.c.b16 %v834, %v827
        %v996 = vpack.c.b16 %v835, %v828
        %v997 = vpack.c.b16 %v836, %v829
        %v998 = vpack.c.b16 %v837, %v830
        %v999 = vpack.c.b16 %v838, %v831
        %v1000 = vpack.c.b16 %v846, %v839
        %v1001 = vpack.c.b16 %v847, %v840
        %v1002 = vpack.c.b16 %v848, %v841
        %v1003 = vpack.c.b16 %v849, %v842
        %v1004 = vpack.c.b16 %v850, %v843
        %v1005 = vpack.c.b16 %v851, %v844
        %v1006 = vpack.c.b16 %v852, %v845
        %v1007 = vpack.c.b16 %v860, %v853
        %v1008 = vpack.c.b16 %v861, %v854
        %v1009 = vpack.c.b16 %v862, %v855
        %v1010 = vpack.c.b16 %v863, %v856
        %v1011 = vpack.c.b16 %v864, %v857
        %v1012 = vpack.c.b16 %v865, %v858
        %v1013 = vpack.c.b16 %v866, %v859
        %v1014 = vpack.c.b16 %v874, %v867
        %v1015 = vpack.c.b16 %v875, %v868
        %v1016 = vpack.c.b16 %v876, %v869
        %v1017 = vpack.c.b16 %v877, %v870
        %v1018 = vpack.c.b16 %v878, %v871
        %v1019 = vpack.c.b16 %v879, %v872
        %v1020 = vpack.c.b16 %v880, %v873
        %v1021 = vpack.c.b16 %v888, %v881
        %v1022 = vpack.c.b16 %v889, %v882
        %v1023 = vpack.c.b16 %v890, %v883
        %v1024 = vpack.c.b16 %v891, %v884
        %v1025 = vpack.c.b16 %v892, %v885
        %v1026 = vpack.c.b16 %v893, %v886
        %v1027 = vpack.c.b16 %v894, %v887
        %v1028 = vpack.c.b16 %v902, %v895
        %v1029 = vpack.c.b16 %v903, %v896
        %v1030 = vpack.c.b16 %v904, %v897
        %v1031 = vpack.c.b16 %v905, %v898
        %v1032 = vpack.c.b16 %v906, %v899
        %v1033 = vpack.c.b16 %v907, %v900
        %v1034 = vpack.c.b16 %v908, %v901
        %v1035 = vpack.c.b16 %v916, %v909
        %v1036 = vpack.c.b16 %v917, %v910
        %v1037 = vpack.c.b16 %v918, %v911
        %v1038 = vpack.c.b16 %v919, %v912
        %v1039 = vpack.c.b16 %v920, %v913
        %v1040 = vpack.c.b16 %v921, %v914
        %v1041 = vpack.c.b16 %v922, %v915
        %v1042 = vpack.c.b16 %v930, %v923
        %v1043 = vpack.c.b16 %v931, %v924
        %v1044 = vpack.c.b16 %v932, %v925
        %v1045 = vpack.c.b16 %v933, %v926
        %v1046 = vpack.c.b16 %v934, %v927
        %v1047 = vpack.c.b16 %v935, %v928
        %v1048 = vpack.c.b16 %v936, %v929
        %v1243 = vunpack.c.l.b16 %v475
        %v1244 = vunpack.c.h.b16 %v475
        %v1245 = vunpack.c.l.b16 %v476
        %v1246 = vunpack.c.h.b16 %v476
        %v1247 = vunpack.c.l.b16 %v477
        %v1248 = vunpack.c.h.b16 %v477
        %v1249 = vunpack.c.l.b16 %v478
        %v1250 = vunpack.c.h.b16 %v478
        %v1251 = vunpack.c.l.b16 %v479
        %v1252 = vunpack.c.h.b16 %v479
        %v1253 = vunpack.c.l.b16 %v480
        %v1254 = vunpack.c.h.b16 %v480
        %v1255 = vunpack.c.l.b16 %v481
        %v1256 = vunpack.c.h.b16 %v481
        %v1257 = vunpack.c.l.b16 %v482
        %v1258 = vunpack.c.h.b16 %v482
        %v1259 = vunpack.c.l.b16 %v483
        %v1260 = vunpack.c.h.b16 %v483
        %v1261 = vunpack.c.l.b16 %v484
        %v1262 = vunpack.c.h.b16 %v484
        %v1263 = vunpack.c.l.b16 %v485
        %v1264 = vunpack.c.h.b16 %v485
        %v1265 = vunpack.c.l.b16 %v486
        %v1266 = vunpack.c.h.b16 %v486
        %v1267 = vunpack.c.l.b16 %v487
        %v1268 = vunpack.c.h.b16 %v487
        %v1269 = vunpack.c.l.b16 %v488
        %v1270 = vunpack.c.h.b16 %v488
        %v1271 = vunpack.c.l.b16 %v489
        %v1272 = vunpack.c.h.b16 %v489
        %v1273 = vunpack.c.l.b16 %v490
        %v1274 = vunpack.c.h.b16 %v490
        %v1275 = vunpack.c.l.b16 %v491
        %v1276 = vunpack.c.h.b16 %v491
        %v1277 = vunpack.c.l.b16 %v492
        %v1278 = vunpack.c.h.b16 %v492
        %v1279 = vunpack.c.l.b16 %v493
        %v1280 = vunpack.c.h.b16 %v493
        %v1281 = vunpack.c.l.b16 %v494
        %v1282 = vunpack.c.h.b16 %v494
        %v1283 = vunpack.c.l.b16 %v495
        %v1284 = vunpack.c.h.b16 %v495
        %v1285 = vunpack.c.l.b16 %v496
        %v1286 = vunpack.c.h.b16 %v496
        %v1287 = vunpack.c.l.b16 %v497
        %v1288 = vunpack.c.h.b16 %v497
        %v1289 = vunpack.c.l.b16 %v498
        %v1290 = vunpack.c.h.b16 %v498
        %v1291 = vunpack.c.l.b16 %v499
        %v1292 = vunpack.c.h.b16 %v499
        %v1293 = vunpack.c.l.b16 %v500
        %v1294 = vunpack.c.h.b16 %v500
        %v1295 = vunpack.c.l.b16 %v501
        %v1296 = vunpack.c.h.b16 %v501
        %v1297 = vunpack.c.l.b16 %v502
        %v1298 = vunpack.c.h.b16 %v502
        %v1299 = vunpack.c.l.b16 %v503
        %v1300 = vunpack.c.h.b16 %v503
        %v1301 = vunpack.c.l.b16 %v504
        %v1302 = vunpack.c.h.b16 %v504
        %v1303 = vunpack.c.l.b16 %v505
        %v1304 = vunpack.c.h.b16 %v505
        %v1305 = vunpack.c.l.b16 %v506
        %v1306 = vunpack.c.h.b16 %v506
        %v1307 = vunpack.c.l.b16 %v507
        %v1308 = vunpack.c.h.b16 %v507
        %v1309 = vunpack.c.l.b16 %v508
        %v1310 = vunpack.c.h.b16 %v508
        %v1311 = vunpack.c.l.b16 %v509
        %v1312 = vunpack.c.h.b16 %v509
        %v1313 = vunpack.c.l.b16 %v510
        %v1314 = vunpack.c.h.b16 %v510
        %v1315 = vunpack.c.l.b16 %v511
        %v1316 = vunpack.c.h.b16 %v511
        %v1317 = vunpack.c.l.b16 %v512
        %v1318 = vunpack.c.h.b16 %v512
        %v1319 = vunpack.c.l.b16 %v513
        %v1320 = vunpack.c.h.b16 %v513
        %v1321 = vunpack.c.l.b16 %v514
        %v1322 = vunpack.c.h.b16 %v514
        %v1323 = vunpack.c.l.b16 %v515
        %v1324 = vunpack.c.h.b16 %v515
        %v1325 = vunpack.c.l.b16 %v516
        %v1326 = vunpack.c.h.b16 %v516
        %v1327 = vunpack.c.l.b16 %v517
        %v1328 = vunpack.c.h.b16 %v517
        %v1329 = vunpack.c.l.b16 %v518
        %v1330 = vunpack.c.h.b16 %v518
        %v1331 = vunpack.c.l.b16 %v519
        %v1332 = vunpack.c.h.b16 %v519
        %v1333 = vunpack.c.l.b16 %v520
        %v1334 = vunpack.c.h.b16 %v520
        %v1335 = vunpack.c.l.b16 %v521
        %v1336 = vunpack.c.h.b16 %v521
        %v1337 = vunpack.c.l.b16 %v522
        %v1338 = vunpack.c.h.b16 %v522
        %v1339 = vunpack.c.l.b16 %v523
        %v1340 = vunpack.c.h.b16 %v523
        %v1341 = vunpack.c.l.b16 %v524
        %v1342 = vunpack.c.h.b16 %v524
        %v1343 = vunpack.c.l.b16 %v525
        %v1344 = vunpack.c.h.b16 %v525
        %v1345 = vunpack.c.l.b16 %v526
        %v1346 = vunpack.c.h.b16 %v526
        %v1347 = vunpack.c.l.b16 %v527
        %v1348 = vunpack.c.h.b16 %v527
        %v1349 = vunpack.c.l.b16 %v528
        %v1350 = vunpack.c.h.b16 %v528
        %v1351 = vunpack.c.l.b16 %v529
        %v1352 = vunpack.c.h.b16 %v529
        %v1353 = vunpack.c.l.b16 %v530
        %v1354 = vunpack.c.h.b16 %v530
        %v1355 = vunpack.c.l.b16 %v531
        %v1356 = vunpack.c.h.b16 %v531
        %v1357 = vunpack.c.l.b16 %v532
        %v1358 = vunpack.c.h.b16 %v532
        %v1359 = vunpack.c.l.b16 %v533
        %v1360 = vunpack.c.h.b16 %v533
        %v1361 = vunpack.c.l.b16 %v534
        %v1362 = vunpack.c.h.b16 %v534
        %v1363 = vunpack.c.l.b16 %v535
        %v1364 = vunpack.c.h.b16 %v535
        %v1365 = vunpack.c.l.b16 %v536
        %v1366 = vunpack.c.h.b16 %v536
        %v1367 = vunpack.c.l.b16 %v537
        %v1368 = vunpack.c.h.b16 %v537
        %v1369 = vunpack.c.l.b16 %v538
        %v1370 = vunpack.c.h.b16 %v538
        %v1371 = vunpack.c.l.b16 %v539
        %v1372 = vunpack.c.h.b16 %v539
        %v1373 = vunpack.c.l.b16 %v540
        %v1374 = vunpack.c.h.b16 %v540
        %v1375 = vunpack.c.l.b16 %v541
        %v1376 = vunpack.c.h.b16 %v541
        %v1377 = vunpack.c.l.b16 %v542
        %v1378 = vunpack.c.h.b16 %v542
        %v1379 = vunpack.c.l.b16 %v543
        %v1380 = vunpack.c.h.b16 %v543
        %v1381 = vunpack.c.l.b16 %v544
        %v1382 = vunpack.c.h.b16 %v544
        %v1383 = vunpack.c.l.b16 %v545
        %v1384 = vunpack.c.h.b16 %v545
        %v1385 = vunpack.c.l.b16 %v546
        %v1386 = vunpack.c.h.b16 %v546
        %v1387 = vunpack.c.l.b16 %v547
        %v1388 = vunpack.c.h.b16 %v547
        %v1389 = vunpack.c.l.b16 %v548
        %v1390 = vunpack.c.h.b16 %v548
        %v1391 = vunpack.c.l.b16 %v549
        %v1392 = vunpack.c.h.b16 %v549
        %v1393 = vunpack.c.l.b16 %v550
        %v1394 = vunpack.c.h.b16 %v550
        %v1395 = vunpack.c.l.b16 %v551
        %v1396 = vunpack.c.h.b16 %v551
        %v1397 = vunpack.c.l.b16 %v552
        %v1398 = vunpack.c.h.b16 %v552
        %v1399 = vunpack.c.l.b16 %v553
        %v1400 = vunpack.c.h.b16 %v553
        %v1401 = vunpack.c.l.b16 %v554
        %v1402 = vunpack.c.h.b16 %v554
        %v1403 = vunpack.c.l.b16 %v555
        %v1404 = vunpack.c.h.b16 %v555
        %v1405 = vunpack.c.l.b16 %v556
        %v1406 = vunpack.c.h.b16 %v556
        %v1407 = vunpack.c.l.b16 %v557
        %v1408 = vunpack.c.h.b16 %v557
        %v1409 = vunpack.c.l.b16 %v558
        %v1410 = vunpack.c.h.b16 %v558
        %v1411 = vunpack.c.l.b16 %v559
        %v1412 = vunpack.c.h.b16 %v559
        %v1413 = vunpack.c.l.b16 %v560
        %v1414 = vunpack.c.h.b16 %v560
        %v1415 = vunpack.c.l.b16 %v561
        %v1416 = vunpack.c.h.b16 %v561
        %v1417 = vunpack.c.l.b16 %v562
        %v1418 = vunpack.c.h.b16 %v562
        %v1419 = vunpack.c.l.b16 %v563
        %v1420 = vunpack.c.h.b16 %v563
        %v1421 = vunpack.c.l.b16 %v564
        %v1422 = vunpack.c.h.b16 %v564
        %v1423 = vunpack.c.l.b16 %v565
        %v1424 = vunpack.c.h.b16 %v565
        %v1425 = vunpack.c.l.b16 %v566
        %v1426 = vunpack.c.h.b16 %v566
        %v1427 = vunpack.c.l.b16 %v567
        %v1428 = vunpack.c.h.b16 %v567
        %v1429 = vunpack.c.l.b16 %v568
        %v1430 = vunpack.c.h.b16 %v568
        %v1431 = vunpack.c.l.b16 %v569
        %v1432 = vunpack.c.h.b16 %v569
        %v1433 = vunpack.c.l.b16 %v570
        %v1434 = vunpack.c.h.b16 %v570
        %v1435 = vunpack.c.l.b16 %v571
        %v1436 = vunpack.c.h.b16 %v571
        %v1437 = vunpack.c.l.b16 %v572
        %v1438 = vunpack.c.h.b16 %v572
        %v1439 = vpack.c.b16 %v1245, %v1243
        %v1440 = vpack.c.b16 %v1246, %v1244
        %v1441 = vpack.c.b16 %v1249, %v1247
        %v1442 = vpack.c.b16 %v1250, %v1248
        %v1443 = vpack.c.b16 %v1253, %v1251
        %v1444 = vpack.c.b16 %v1254, %v1252
        %v1445 = vpack.c.b16 %v1257, %v1255
        %v1446 = vpack.c.b16 %v1258, %v1256
        %v1447 = vpack.c.b16 %v1261, %v1259
        %v1448 = vpack.c.b16 %v1262, %v1260
        %v1449 = vpack.c.b16 %v1265, %v1263
        %v1450 = vpack.c.b16 %v1266, %v1264
        %v1451 = vpack.c.b16 %v1269, %v1267
        %v1452 = vpack.c.b16 %v1270, %v1268
        %v1453 = vpack.c.b16 %v1273, %v1271
        %v1454 = vpack.c.b16 %v1274, %v1272
        %v1455 = vpack.c.b16 %v1277, %v1275
        %v1456 = vpack.c.b16 %v1278, %v1276
        %v1457 = vpack.c.b16 %v1281, %v1279
        %v1458 = vpack.c.b16 %v1282, %v1280
        %v1459 = vpack.c.b16 %v1285, %v1283
        %v1460 = vpack.c.b16 %v1286, %v1284
        %v1461 = vpack.c.b16 %v1289, %v1287
        %v1462 = vpack.c.b16 %v1290, %v1288
        %v1463 = vpack.c.b16 %v1293, %v1291
        %v1464 = vpack.c.b16 %v1294, %v1292
        %v1465 = vpack.c.b16 %v1297, %v1295
        %v1466 = vpack.c.b16 %v1298, %v1296
        %v1467 = vpack.c.b16 %v1301, %v1299
        %v1468 = vpack.c.b16 %v1302, %v1300
        %v1469 = vpack.c.b16 %v1305, %v1303
        %v1470 = vpack.c.b16 %v1306, %v1304
        %v1471 = vpack.c.b16 %v1309, %v1307
        %v1472 = vpack.c.b16 %v1310, %v1308
        %v1473 = vpack.c.b16 %v1313, %v1311
        %v1474 = vpack.c.b16 %v1314, %v1312
        %v1475 = vpack.c.b16 %v1317, %v1315
        %v1476 = vpack.c.b16 %v1318, %v1316
        %v1477 = vpack.c.b16 %v1321, %v1319
        %v1478 = vpack.c.b16 %v1322, %v1320
        %v1479 = vpack.c.b16 %v1325, %v1323
        %v1480 = vpack.c.b16 %v1326, %v1324
        %v1481 = vpack.c.b16 %v1329, %v1327
        %v1482 = vpack.c.b16 %v1330, %v1328
        %v1483 = vpack.c.b16 %v1333, %v1331
        %v1484 = vpack.c.b16 %v1334, %v1332
        %v1485 = vpack.c.b16 %v1337, %v1335
        %v1486 = vpack.c.b16 %v1338, %v1336
        %v1487 = vpack.c.b16 %v1341, %v1339
        %v1488 = vpack.c.b16 %v1342, %v1340
        %v1489 = vpack.c.b16 %v1345, %v1343
        %v1490 = vpack.c.b16 %v1346, %v1344
        %v1491 = vpack.c.b16 %v1349, %v1347
        %v1492 = vpack.c.b16 %v1350, %v1348
        %v1493 = vpack.c.b16 %v1353, %v1351
        %v1494 = vpack.c.b16 %v1354, %v1352
        %v1495 = vpack.c.b16 %v1357, %v1355
        %v1496 = vpack.c.b16 %v1358, %v1356
        %v1497 = vpack.c.b16 %v1361, %v1359
        %v1498 = vpack.c.b16 %v1362, %v1360
        %v1499 = vpack.c.b16 %v1365, %v1363
        %v1500 = vpack.c.b16 %v1366, %v1364
        %v1501 = vpack.c.b16 %v1369, %v1367
        %v1502 = vpack.c.b16 %v1370, %v1368
        %v1503 = vpack.c.b16 %v1373, %v1371
        %v1504 = vpack.c.b16 %v1374, %v1372
        %v1505 = vpack.c.b16 %v1377, %v1375
        %v1506 = vpack.c.b16 %v1378, %v1376
        %v1507 = vpack.c.b16 %v1381, %v1379
        %v1508 = vpack.c.b16 %v1382, %v1380
        %v1509 = vpack.c.b16 %v1385, %v1383
        %v1510 = vpack.c.b16 %v1386, %v1384
        %v1511 = vpack.c.b16 %v1389, %v1387
        %v1512 = vpack.c.b16 %v1390, %v1388
        %v1513 = vpack.c.b16 %v1393, %v1391
        %v1514 = vpack.c.b16 %v1394, %v1392
        %v1515 = vpack.c.b16 %v1397, %v1395
        %v1516 = vpack.c.b16 %v1398, %v1396
        %v1517 = vpack.c.b16 %v1401, %v1399
        %v1518 = vpack.c.b16 %v1402, %v1400
        %v1519 = vpack.c.b16 %v1405, %v1403
        %v1520 = vpack.c.b16 %v1406, %v1404
        %v1521 = vpack.c.b16 %v1409, %v1407
        %v1522 = vpack.c.b16 %v1410, %v1408
        %v1523 = vpack.c.b16 %v1413, %v1411
        %v1524 = vpack.c.b16 %v1414, %v1412
        %v1525 = vpack.c.b16 %v1417, %v1415
        %v1526 = vpack.c.b16 %v1418, %v1416
        %v1527 = vpack.c.b16 %v1421, %v1419
        %v1528 = vpack.c.b16 %v1422, %v1420
        %v1529 = vpack.c.b16 %v1425, %v1423
        %v1530 = vpack.c.b16 %v1426, %v1424
        %v1531 = vpack.c.b16 %v1429, %v1427
        %v1532 = vpack.c.b16 %v1430, %v1428
        %v1533 = vpack.c.b16 %v1433, %v1431
        %v1534 = vpack.c.b16 %v1434, %v1432
        %v1535 = vpack.c.b16 %v1437, %v1435
        %v1536 = vpack.c.b16 %v1438, %v1436
        %vm1635 = vcmask 130048
        %v1637 = vsel %vm1635, %v943, 0
        %v1640 = vsel %vm1635, %v950, 0
        %v1643 = vsel %vm1635, %v957, 0
        %v1646 = vsel %vm1635, %v964, 0
        %v1649 = vsel %vm1635, %v971, 0
        %v1652 = vsel %vm1635, %v978, 0
        %v1655 = vsel %vm1635, %v985, 0
        %v1658 = vsel %vm1635, %v992, 0
        %v1661 = vsel %vm1635, %v999, 0
        %v1664 = vsel %vm1635, %v1006, 0
        %v1667 = vsel %vm1635, %v1013, 0
        %v1670 = vsel %vm1635, %v1020, 0
        %v1673 = vsel %vm1635, %v1027, 0
        %v1676 = vsel %vm1635, %v1034, 0
        %v1679 = vsel %vm1635, %v1041, 0
        %v1682 = vsel %vm1635, %v1048, 0
        %1684 = vmatprep.subr.bf16.mxu0 %v1440
        %1685 = vmatpush1.bf16.msra.mxu0 %v1439
        %1686 = vmatprep.subr.bf16.mxu0 %v1442
        %1687 = vmatpush1.bf16.msra.mxu0 %v1441
        %1688 = vmatprep.subr.bf16.mxu0 %v1444
        %1689 = vmatpush1.bf16.msra.mxu0 %v1443
        %1690 = vmatprep.subr.bf16.mxu0 %v1446
        %1691 = vmatpush1.bf16.msra.mxu0 %v1445
        %1692 = vmatprep.subr.bf16.mxu0 %v1448
        %1693 = vmatpush1.bf16.msra.mxu0 %v1447
        %1694 = vmatprep.subr.bf16.mxu0 %v1450
        %1695 = vmatpush1.bf16.msra.mxu0 %v1449
        %1696 = vmatprep.subr.bf16.mxu0 %v1452
        %1697 = vmatpush1.bf16.msra.mxu0 %v1451
        %1698 = vmatprep.subr.bf16.mxu0 %v1454
        %1699 = vmatpush1.bf16.msra.mxu0 %v1453
        %1700 = vmatprep.subr.bf16.mxu0 %v1456
        %1701 = vmatpush1.bf16.msra.mxu0 %v1455
        %1702 = vmatprep.subr.bf16.mxu0 %v1458
        %1703 = vmatpush1.bf16.msra.mxu0 %v1457
        %1704 = vmatprep.subr.bf16.mxu0 %v1460
        %1705 = vmatpush1.bf16.msra.mxu0 %v1459
        %1706 = vmatprep.subr.bf16.mxu0 %v1462
        %1707 = vmatpush1.bf16.msra.mxu0 %v1461
        %1708 = vmatprep.subr.bf16.mxu0 %v1464
        %1709 = vmatpush1.bf16.msra.mxu0 %v1463
        %1710 = vmatprep.subr.bf16.mxu0 %v1466
        %1711 = vmatpush1.bf16.msra.mxu0 %v1465
        %1712 = vmatprep.subr.bf16.mxu0 %v1468
        %1713 = vmatpush1.bf16.msra.mxu0 %v1467
        %1714 = vmatprep.subr.bf16.mxu0 %v1470
        %1715 = vmatpush1.bf16.msra.mxu0 %v1469
        %1716 = vmatprep.mubr.bf16.mxu0 %v938
        %1717 = vmatmul.mubr.bf16.gmra.mrb[0].mxu0 %v937
        %v1718 = vpop.f32.mrb[0].mxu0
        %v1719 = vadd.f32 %v578, %v1718
        %v1720 = vpop.f32.mrb[0].mxu0
        %v1721 = vadd.f32 %v582, %v1720
        %v1722 = vpop.f32.mrb[0].mxu0
        %v1723 = vadd.f32 %v578, %v1722
        %v1724 = vpop.f32.mrb[0].mxu0
        %v1725 = vadd.f32 %v582, %v1724
        %1726 = vmatprep.mubr.bf16.mxu0 %v945
        %1727 = vmatmul.mubr.bf16.gmra.mrb[0].mxu0 %v944
        %v1728 = vpop.f32.mrb[0].mxu0
        %v1729 = vadd.f32 %v578, %v1728
        %v1730 = vpop.f32.mrb[0].mxu0
        %v1731 = vadd.f32 %v582, %v1730
        %v1732 = vpop.f32.mrb[0].mxu0
        %v1733 = vadd.f32 %v578, %v1732
        %v1734 = vpop.f32.mrb[0].mxu0
        %v1735 = vadd.f32 %v582, %v1734
        %1736 = vmatprep.mubr.bf16.mxu0 %v952
        %1737 = vmatmul.mubr.bf16.gmra.mrb[0].mxu0 %v951
        %v1738 = vpop.f32.mrb[0].mxu0
        %v1739 = vadd.f32 %v578, %v1738
        %v1740 = vpop.f32.mrb[0].mxu0
        %v1741 = vadd.f32 %v582, %v1740
        %v1742 = vpop.f32.mrb[0].mxu0
        %v1743 = vadd.f32 %v578, %v1742
        %v1744 = vpop.f32.mrb[0].mxu0
        %v1745 = vadd.f32 %v582, %v1744
        %1746 = vmatprep.mubr.bf16.mxu0 %v959
        %1747 = vmatmul.mubr.bf16.gmra.mrb[0].mxu0 %v958
        %v1748 = vpop.f32.mrb[0].mxu0
        %v1749 = vadd.f32 %v578, %v1748
        %v1750 = vpop.f32.mrb[0].mxu0
        %v1751 = vadd.f32 %v582, %v1750
        %v1752 = vpop.f32.mrb[0].mxu0
        %v1753 = vadd.f32 %v578, %v1752
        %v1754 = vpop.f32.mrb[0].mxu0
        %v1755 = vadd.f32 %v582, %v1754
        %1756 = vmatprep.mubr.bf16.mxu0 %v966
        %1757 = vmatmul.mubr.bf16.gmra.mrb[0].mxu0 %v965
        %v1758 = vpop.f32.mrb[0].mxu0
        %v1759 = vadd.f32 %v578, %v1758
        %v1760 = vpop.f32.mrb[0].mxu0
        %v1761 = vadd.f32 %v582, %v1760
        %v1762 = vpop.f32.mrb[0].mxu0
        %v1763 = vadd.f32 %v578, %v1762
        %v1764 = vpop.f32.mrb[0].mxu0
        %v1765 = vadd.f32 %v582, %v1764
        %1766 = vmatprep.mubr.bf16.mxu0 %v973
        %1767 = vmatmul.mubr.bf16.gmra.mrb[0].mxu0 %v972
        %v1768 = vpop.f32.mrb[0].mxu0
        %v1769 = vadd.f32 %v578, %v1768
        %v1770 = vpop.f32.mrb[0].mxu0
        %v1771 = vadd.f32 %v582, %v1770
        %v1772 = vpop.f32.mrb[0].mxu0
        %v1773 = vadd.f32 %v578, %v1772
        %v1774 = vpop.f32.mrb[0].mxu0
        %v1775 = vadd.f32 %v582, %v1774
        %1776 = vmatprep.mubr.bf16.mxu0 %v980
        %1777 = vmatmul.mubr.bf16.gmra.mrb[0].mxu0 %v979
        %v1778 = vpop.f32.mrb[0].mxu0
        %v1779 = vadd.f32 %v578, %v1778
        %v1780 = vpop.f32.mrb[0].mxu0
        %v1781 = vadd.f32 %v582, %v1780
        %v1782 = vpop.f32.mrb[0].mxu0
        %v1783 = vadd.f32 %v578, %v1782
        %v1784 = vpop.f32.mrb[0].mxu0
        %v1785 = vadd.f32 %v582, %v1784
        %1786 = vmatprep.mubr.bf16.mxu0 %v987
        %1787 = vmatmul.mubr.bf16.gmra.mrb[0].mxu0 %v986
        %v1788 = vpop.f32.mrb[0].mxu0
        %v1789 = vadd.f32 %v578, %v1788
        %v1790 = vpop.f32.mrb[0].mxu0
        %v1791 = vadd.f32 %v582, %v1790
        %v1792 = vpop.f32.mrb[0].mxu0
        %v1793 = vadd.f32 %v578, %v1792
        %v1794 = vpop.f32.mrb[0].mxu0
        %v1795 = vadd.f32 %v582, %v1794
        %1796 = vmatprep.mubr.bf16.mxu0 %v994
        %1797 = vmatmul.mubr.bf16.gmra.mrb[0].mxu0 %v993
        %v1798 = vpop.f32.mrb[0].mxu0
        %v1799 = vadd.f32 %v578, %v1798
        %v1800 = vpop.f32.mrb[0].mxu0
        %v1801 = vadd.f32 %v582, %v1800
        %v1802 = vpop.f32.mrb[0].mxu0
        %v1803 = vadd.f32 %v578, %v1802
        %v1804 = vpop.f32.mrb[0].mxu0
        %v1805 = vadd.f32 %v582, %v1804
        %1806 = vmatprep.mubr.bf16.mxu0 %v1001
        %1807 = vmatmul.mubr.bf16.gmra.mrb[0].mxu0 %v1000
        %v1808 = vpop.f32.mrb[0].mxu0
        %v1809 = vadd.f32 %v578, %v1808
        %v1810 = vpop.f32.mrb[0].mxu0
        %v1811 = vadd.f32 %v582, %v1810
        %v1812 = vpop.f32.mrb[0].mxu0
        %v1813 = vadd.f32 %v578, %v1812
        %v1814 = vpop.f32.mrb[0].mxu0
        %v1815 = vadd.f32 %v582, %v1814
        %1816 = vmatprep.mubr.bf16.mxu0 %v1008
        %1817 = vmatmul.mubr.bf16.gmra.mrb[0].mxu0 %v1007
        %v1818 = vpop.f32.mrb[0].mxu0
        %v1819 = vadd.f32 %v578, %v1818
        %v1820 = vpop.f32.mrb[0].mxu0
        %v1821 = vadd.f32 %v582, %v1820
        %v1822 = vpop.f32.mrb[0].mxu0
        %v1823 = vadd.f32 %v578, %v1822
        %v1824 = vpop.f32.mrb[0].mxu0
        %v1825 = vadd.f32 %v582, %v1824
        %1826 = vmatprep.mubr.bf16.mxu0 %v1015
        %1827 = vmatmul.mubr.bf16.gmra.mrb[0].mxu0 %v1014
        %v1828 = vpop.f32.mrb[0].mxu0
        %v1829 = vadd.f32 %v578, %v1828
        %v1830 = vpop.f32.mrb[0].mxu0
        %v1831 = vadd.f32 %v582, %v1830
        %v1832 = vpop.f32.mrb[0].mxu0
        %v1833 = vadd.f32 %v578, %v1832
        %v1834 = vpop.f32.mrb[0].mxu0
        %v1835 = vadd.f32 %v582, %v1834
        %1836 = vmatprep.mubr.bf16.mxu0 %v1022
        %1837 = vmatmul.mubr.bf16.gmra.mrb[0].mxu0 %v1021
        %v1838 = vpop.f32.mrb[0].mxu0
        %v1839 = vadd.f32 %v578, %v1838
        %v1840 = vpop.f32.mrb[0].mxu0
        %v1841 = vadd.f32 %v582, %v1840
        %v1842 = vpop.f32.mrb[0].mxu0
        %v1843 = vadd.f32 %v578, %v1842
        %v1844 = vpop.f32.mrb[0].mxu0
        %v1845 = vadd.f32 %v582, %v1844
        %1846 = vmatprep.mubr.bf16.mxu0 %v1029
        %1847 = vmatmul.mubr.bf16.gmra.mrb[0].mxu0 %v1028
        %v1848 = vpop.f32.mrb[0].mxu0
        %v1849 = vadd.f32 %v578, %v1848
        %v1850 = vpop.f32.mrb[0].mxu0
        %v1851 = vadd.f32 %v582, %v1850
        %v1852 = vpop.f32.mrb[0].mxu0
        %v1853 = vadd.f32 %v578, %v1852
        %v1854 = vpop.f32.mrb[0].mxu0
        %v1855 = vadd.f32 %v582, %v1854
        %1856 = vmatprep.mubr.bf16.mxu0 %v1036
        %1857 = vmatmul.mubr.bf16.gmra.mrb[0].mxu0 %v1035
        %v1858 = vpop.f32.mrb[0].mxu0
        %v1859 = vadd.f32 %v578, %v1858
        %v1860 = vpop.f32.mrb[0].mxu0
        %v1861 = vadd.f32 %v582, %v1860
        %v1862 = vpop.f32.mrb[0].mxu0
        %v1863 = vadd.f32 %v578, %v1862
        %v1864 = vpop.f32.mrb[0].mxu0
        %v1865 = vadd.f32 %v582, %v1864
        %1866 = vmatprep.mubr.bf16.mxu0 %v1043
        %1867 = vmatmul.mubr.bf16.gmra.mrb[0].mxu0 %v1042
        %v1868 = vpop.f32.mrb[0].mxu0
        %v1869 = vadd.f32 %v578, %v1868
        %v1870 = vpop.f32.mrb[0].mxu0
        %v1871 = vadd.f32 %v582, %v1870
        %v1872 = vpop.f32.mrb[0].mxu0
        %v1873 = vadd.f32 %v578, %v1872
        %v1874 = vpop.f32.mrb[0].mxu0
        %v1875 = vadd.f32 %v582, %v1874
        %1876 = vdwg.mxu0
        %1877 = vmatprep.subr.bf16.mxu0 %v1472
        %1878 = vmatpush1.bf16.msra.mxu0 %v1471
        %1879 = vmatprep.subr.bf16.mxu0 %v1474
        %1880 = vmatpush1.bf16.msra.mxu0 %v1473
        %1881 = vmatprep.subr.bf16.mxu0 %v1476
        %1882 = vmatpush1.bf16.msra.mxu0 %v1475
        %1883 = vmatprep.subr.bf16.mxu0 %v1478
        %1884 = vmatpush1.bf16.msra.mxu0 %v1477
        %1885 = vmatprep.subr.bf16.mxu0 %v1480
        %1886 = vmatpush1.bf16.msra.mxu0 %v1479
        %1887 = vmatprep.subr.bf16.mxu0 %v1482
        %1888 = vmatpush1.bf16.msra.mxu0 %v1481
        %1889 = vmatprep.subr.bf16.mxu0 %v1484
        %1890 = vmatpush1.bf16.msra.mxu0 %v1483
        %1891 = vmatprep.subr.bf16.mxu0 %v1486
        %1892 = vmatpush1.bf16.msra.mxu0 %v1485
        %1893 = vmatprep.subr.bf16.mxu0 %v1488
        %1894 = vmatpush1.bf16.msra.mxu0 %v1487
        %1895 = vmatprep.subr.bf16.mxu0 %v1490
        %1896 = vmatpush1.bf16.msra.mxu0 %v1489
        %1897 = vmatprep.subr.bf16.mxu0 %v1492
        %1898 = vmatpush1.bf16.msra.mxu0 %v1491
        %1899 = vmatprep.subr.bf16.mxu0 %v1494
        %1900 = vmatpush1.bf16.msra.mxu0 %v1493
        %1901 = vmatprep.subr.bf16.mxu0 %v1496
        %1902 = vmatpush1.bf16.msra.mxu0 %v1495
        %1903 = vmatprep.subr.bf16.mxu0 %v1498
        %1904 = vmatpush1.bf16.msra.mxu0 %v1497
        %1905 = vmatprep.subr.bf16.mxu0 %v1500
        %1906 = vmatpush1.bf16.msra.mxu0 %v1499
        %1907 = vmatprep.subr.bf16.mxu0 %v1502
        %1908 = vmatpush1.bf16.msra.mxu0 %v1501
        %1909 = vmatprep.mubr.bf16.mxu0 %v940
        %1910 = vmatmul.mubr.bf16.gmra.mrb[0].mxu0 %v939
        %v1911 = vpop.f32.mrb[0].mxu0
        %v1912 = vadd.f32 %v1719, %v1911
        %v1913 = vpop.f32.mrb[0].mxu0
        %v1914 = vadd.f32 %v1721, %v1913
        %v1915 = vpop.f32.mrb[0].mxu0
        %v1916 = vadd.f32 %v1723, %v1915
        %v1917 = vpop.f32.mrb[0].mxu0
        %v1918 = vadd.f32 %v1725, %v1917
        %1919 = vmatprep.mubr.bf16.mxu0 %v947
        %1920 = vmatmul.mubr.bf16.gmra.mrb[0].mxu0 %v946
        %v1921 = vpop.f32.mrb[0].mxu0
        %v1922 = vadd.f32 %v1729, %v1921
        %v1923 = vpop.f32.mrb[0].mxu0
        %v1924 = vadd.f32 %v1731, %v1923
        %v1925 = vpop.f32.mrb[0].mxu0
        %v1926 = vadd.f32 %v1733, %v1925
        %v1927 = vpop.f32.mrb[0].mxu0
        %v1928 = vadd.f32 %v1735, %v1927
        %1929 = vmatprep.mubr.bf16.mxu0 %v954
        %1930 = vmatmul.mubr.bf16.gmra.mrb[0].mxu0 %v953
        %v1931 = vpop.f32.mrb[0].mxu0
        %v1932 = vadd.f32 %v1739, %v1931
        %v1933 = vpop.f32.mrb[0].mxu0
        %v1934 = vadd.f32 %v1741, %v1933
        %v1935 = vpop.f32.mrb[0].mxu0
        %v1936 = vadd.f32 %v1743, %v1935
        %v1937 = vpop.f32.mrb[0].mxu0
        %v1938 = vadd.f32 %v1745, %v1937
        %1939 = vmatprep.mubr.bf16.mxu0 %v961
        %1940 = vmatmul.mubr.bf16.gmra.mrb[0].mxu0 %v960
        %v1941 = vpop.f32.mrb[0].mxu0
        %v1942 = vadd.f32 %v1749, %v1941
        %v1943 = vpop.f32.mrb[0].mxu0
        %v1944 = vadd.f32 %v1751, %v1943
        %v1945 = vpop.f32.mrb[0].mxu0
        %v1946 = vadd.f32 %v1753, %v1945
        %v1947 = vpop.f32.mrb[0].mxu0
        %v1948 = vadd.f32 %v1755, %v1947
        %1949 = vmatprep.mubr.bf16.mxu0 %v968
        %1950 = vmatmul.mubr.bf16.gmra.mrb[0].mxu0 %v967
        %v1951 = vpop.f32.mrb[0].mxu0
        %v1952 = vadd.f32 %v1759, %v1951
        %v1953 = vpop.f32.mrb[0].mxu0
        %v1954 = vadd.f32 %v1761, %v1953
        %v1955 = vpop.f32.mrb[0].mxu0
        %v1956 = vadd.f32 %v1763, %v1955
        %v1957 = vpop.f32.mrb[0].mxu0
        %v1958 = vadd.f32 %v1765, %v1957
        %1959 = vmatprep.mubr.bf16.mxu0 %v975
        %1960 = vmatmul.mubr.bf16.gmra.mrb[0].mxu0 %v974
        %v1961 = vpop.f32.mrb[0].mxu0
        %v1962 = vadd.f32 %v1769, %v1961
        %v1963 = vpop.f32.mrb[0].mxu0
        %v1964 = vadd.f32 %v1771, %v1963
        %v1965 = vpop.f32.mrb[0].mxu0
        %v1966 = vadd.f32 %v1773, %v1965
        %v1967 = vpop.f32.mrb[0].mxu0
        %v1968 = vadd.f32 %v1775, %v1967
        %1969 = vmatprep.mubr.bf16.mxu0 %v982
        %1970 = vmatmul.mubr.bf16.gmra.mrb[0].mxu0 %v981
        %v1971 = vpop.f32.mrb[0].mxu0
        %v1972 = vadd.f32 %v1779, %v1971
        %v1973 = vpop.f32.mrb[0].mxu0
        %v1974 = vadd.f32 %v1781, %v1973
        %v1975 = vpop.f32.mrb[0].mxu0
        %v1976 = vadd.f32 %v1783, %v1975
        %v1977 = vpop.f32.mrb[0].mxu0
        %v1978 = vadd.f32 %v1785, %v1977
        %1979 = vmatprep.mubr.bf16.mxu0 %v989
        %1980 = vmatmul.mubr.bf16.gmra.mrb[0].mxu0 %v988
        %v1981 = vpop.f32.mrb[0].mxu0
        %v1982 = vadd.f32 %v1789, %v1981
        %v1983 = vpop.f32.mrb[0].mxu0
        %v1984 = vadd.f32 %v1791, %v1983
        %v1985 = vpop.f32.mrb[0].mxu0
        %v1986 = vadd.f32 %v1793, %v1985
        %v1987 = vpop.f32.mrb[0].mxu0
        %v1988 = vadd.f32 %v1795, %v1987
        %1989 = vmatprep.mubr.bf16.mxu0 %v996
        %1990 = vmatmul.mubr.bf16.gmra.mrb[0].mxu0 %v995
        %v1991 = vpop.f32.mrb[0].mxu0
        %v1992 = vadd.f32 %v1799, %v1991
        %v1993 = vpop.f32.mrb[0].mxu0
        %v1994 = vadd.f32 %v1801, %v1993
        %v1995 = vpop.f32.mrb[0].mxu0
        %v1996 = vadd.f32 %v1803, %v1995
        %v1997 = vpop.f32.mrb[0].mxu0
        %v1998 = vadd.f32 %v1805, %v1997
        %1999 = vmatprep.mubr.bf16.mxu0 %v1003
        %2000 = vmatmul.mubr.bf16.gmra.mrb[0].mxu0 %v1002
        %v2001 = vpop.f32.mrb[0].mxu0
        %v2002 = vadd.f32 %v1809, %v2001
        %v2003 = vpop.f32.mrb[0].mxu0
        %v2004 = vadd.f32 %v1811, %v2003
        %v2005 = vpop.f32.mrb[0].mxu0
        %v2006 = vadd.f32 %v1813, %v2005
        %v2007 = vpop.f32.mrb[0].mxu0
        %v2008 = vadd.f32 %v1815, %v2007
        %2009 = vmatprep.mubr.bf16.mxu0 %v1010
        %2010 = vmatmul.mubr.bf16.gmra.mrb[0].mxu0 %v1009
        %v2011 = vpop.f32.mrb[0].mxu0
        %v2012 = vadd.f32 %v1819, %v2011
        %v2013 = vpop.f32.mrb[0].mxu0
        %v2014 = vadd.f32 %v1821, %v2013
        %v2015 = vpop.f32.mrb[0].mxu0
        %v2016 = vadd.f32 %v1823, %v2015
        %v2017 = vpop.f32.mrb[0].mxu0
        %v2018 = vadd.f32 %v1825, %v2017
        %2019 = vmatprep.mubr.bf16.mxu0 %v1017
        %2020 = vmatmul.mubr.bf16.gmra.mrb[0].mxu0 %v1016
        %v2021 = vpop.f32.mrb[0].mxu0
        %v2022 = vadd.f32 %v1829, %v2021
        %v2023 = vpop.f32.mrb[0].mxu0
        %v2024 = vadd.f32 %v1831, %v2023
        %v2025 = vpop.f32.mrb[0].mxu0
        %v2026 = vadd.f32 %v1833, %v2025
        %v2027 = vpop.f32.mrb[0].mxu0
        %v2028 = vadd.f32 %v1835, %v2027
        %2029 = vmatprep.mubr.bf16.mxu0 %v1024
        %2030 = vmatmul.mubr.bf16.gmra.mrb[0].mxu0 %v1023
        %v2031 = vpop.f32.mrb[0].mxu0
        %v2032 = vadd.f32 %v1839, %v2031
        %v2033 = vpop.f32.mrb[0].mxu0
        %v2034 = vadd.f32 %v1841, %v2033
        %v2035 = vpop.f32.mrb[0].mxu0
        %v2036 = vadd.f32 %v1843, %v2035
        %v2037 = vpop.f32.mrb[0].mxu0
        %v2038 = vadd.f32 %v1845, %v2037
        %2039 = vmatprep.mubr.bf16.mxu0 %v1031
        %2040 = vmatmul.mubr.bf16.gmra.mrb[0].mxu0 %v1030
        %v2041 = vpop.f32.mrb[0].mxu0
        %v2042 = vadd.f32 %v1849, %v2041
        %v2043 = vpop.f32.mrb[0].mxu0
        %v2044 = vadd.f32 %v1851, %v2043
        %v2045 = vpop.f32.mrb[0].mxu0
        %v2046 = vadd.f32 %v1853, %v2045
        %v2047 = vpop.f32.mrb[0].mxu0
        %v2048 = vadd.f32 %v1855, %v2047
        %2049 = vmatprep.mubr.bf16.mxu0 %v1038
        %2050 = vmatmul.mubr.bf16.gmra.mrb[0].mxu0 %v1037
        %v2051 = vpop.f32.mrb[0].mxu0
        %v2052 = vadd.f32 %v1859, %v2051
        %v2053 = vpop.f32.mrb[0].mxu0
        %v2054 = vadd.f32 %v1861, %v2053
        %v2055 = vpop.f32.mrb[0].mxu0
        %v2056 = vadd.f32 %v1863, %v2055
        %v2057 = vpop.f32.mrb[0].mxu0
        %v2058 = vadd.f32 %v1865, %v2057
        %2059 = vmatprep.mubr.bf16.mxu0 %v1045
        %2060 = vmatmul.mubr.bf16.gmra.mrb[0].mxu0 %v1044
        %v2061 = vpop.f32.mrb[0].mxu0
        %v2062 = vadd.f32 %v1869, %v2061
        %v2063 = vpop.f32.mrb[0].mxu0
        %v2064 = vadd.f32 %v1871, %v2063
        %v2065 = vpop.f32.mrb[0].mxu0
        %v2066 = vadd.f32 %v1873, %v2065
        %v2067 = vpop.f32.mrb[0].mxu0
        %v2068 = vadd.f32 %v1875, %v2067
        %2069 = vdwg.mxu0
        %2070 = vmatprep.subr.bf16.mxu0 %v1504
        %2071 = vmatpush1.bf16.msra.mxu0 %v1503
        %2072 = vmatprep.subr.bf16.mxu0 %v1506
        %2073 = vmatpush1.bf16.msra.mxu0 %v1505
        %2074 = vmatprep.subr.bf16.mxu0 %v1508
        %2075 = vmatpush1.bf16.msra.mxu0 %v1507
        %2076 = vmatprep.subr.bf16.mxu0 %v1510
        %2077 = vmatpush1.bf16.msra.mxu0 %v1509
        %2078 = vmatprep.subr.bf16.mxu0 %v1512
        %2079 = vmatpush1.bf16.msra.mxu0 %v1511
        %2080 = vmatprep.subr.bf16.mxu0 %v1514
        %2081 = vmatpush1.bf16.msra.mxu0 %v1513
        %2082 = vmatprep.subr.bf16.mxu0 %v1516
        %2083 = vmatpush1.bf16.msra.mxu0 %v1515
        %2084 = vmatprep.subr.bf16.mxu0 %v1518
        %2085 = vmatpush1.bf16.msra.mxu0 %v1517
        %2086 = vmatprep.subr.bf16.mxu0 %v1520
        %2087 = vmatpush1.bf16.msra.mxu0 %v1519
        %2088 = vmatprep.subr.bf16.mxu0 %v1522
        %2089 = vmatpush1.bf16.msra.mxu0 %v1521
        %2090 = vmatprep.subr.bf16.mxu0 %v1524
        %2091 = vmatpush1.bf16.msra.mxu0 %v1523
        %2092 = vmatprep.subr.bf16.mxu0 %v1526
        %2093 = vmatpush1.bf16.msra.mxu0 %v1525
        %2094 = vmatprep.subr.bf16.mxu0 %v1528
        %2095 = vmatpush1.bf16.msra.mxu0 %v1527
        %2096 = vmatprep.subr.bf16.mxu0 %v1530
        %2097 = vmatpush1.bf16.msra.mxu0 %v1529
        %2098 = vmatprep.subr.bf16.mxu0 %v1532
        %2099 = vmatpush1.bf16.msra.mxu0 %v1531
        %2100 = vmatprep.subr.bf16.mxu0 %v1534
        %2101 = vmatpush1.bf16.msra.mxu0 %v1533
        %2102 = vmatprep.mubr.bf16.mxu0 %v942
        %2103 = vmatmul.mubr.bf16.gmra.mrb[0].mxu0 %v941
        %v2104 = vpop.f32.mrb[0].mxu0
        %v2105 = vadd.f32 %v1912, %v2104
        %v2106 = vpop.f32.mrb[0].mxu0
        %v2107 = vadd.f32 %v1914, %v2106
        %v2108 = vpop.f32.mrb[0].mxu0
        %v2109 = vadd.f32 %v1916, %v2108
        %v2110 = vpop.f32.mrb[0].mxu0
        %v2111 = vadd.f32 %v1918, %v2110
        %2112 = vmatprep.mubr.bf16.mxu0 %v949
        %2113 = vmatmul.mubr.bf16.gmra.mrb[0].mxu0 %v948
        %v2114 = vpop.f32.mrb[0].mxu0
        %v2115 = vadd.f32 %v1922, %v2114
        %v2116 = vpop.f32.mrb[0].mxu0
        %v2117 = vadd.f32 %v1924, %v2116
        %v2118 = vpop.f32.mrb[0].mxu0
        %v2119 = vadd.f32 %v1926, %v2118
        %v2120 = vpop.f32.mrb[0].mxu0
        %v2121 = vadd.f32 %v1928, %v2120
        %2122 = vmatprep.mubr.bf16.mxu0 %v956
        %2123 = vmatmul.mubr.bf16.gmra.mrb[0].mxu0 %v955
        %v2124 = vpop.f32.mrb[0].mxu0
        %v2125 = vadd.f32 %v1932, %v2124
        %v2126 = vpop.f32.mrb[0].mxu0
        %v2127 = vadd.f32 %v1934, %v2126
        %v2128 = vpop.f32.mrb[0].mxu0
        %v2129 = vadd.f32 %v1936, %v2128
        %v2130 = vpop.f32.mrb[0].mxu0
        %v2131 = vadd.f32 %v1938, %v2130
        %2132 = vmatprep.mubr.bf16.mxu0 %v963
        %2133 = vmatmul.mubr.bf16.gmra.mrb[0].mxu0 %v962
        %v2134 = vpop.f32.mrb[0].mxu0
        %v2135 = vadd.f32 %v1942, %v2134
        %v2136 = vpop.f32.mrb[0].mxu0
        %v2137 = vadd.f32 %v1944, %v2136
        %v2138 = vpop.f32.mrb[0].mxu0
        %v2139 = vadd.f32 %v1946, %v2138
        %v2140 = vpop.f32.mrb[0].mxu0
        %v2141 = vadd.f32 %v1948, %v2140
        %2142 = vmatprep.mubr.bf16.mxu0 %v970
        %2143 = vmatmul.mubr.bf16.gmra.mrb[0].mxu0 %v969
        %v2144 = vpop.f32.mrb[0].mxu0
        %v2145 = vadd.f32 %v1952, %v2144
        %v2146 = vpop.f32.mrb[0].mxu0
        %v2147 = vadd.f32 %v1954, %v2146
        %v2148 = vpop.f32.mrb[0].mxu0
        %v2149 = vadd.f32 %v1956, %v2148
        %v2150 = vpop.f32.mrb[0].mxu0
        %v2151 = vadd.f32 %v1958, %v2150
        %2152 = vmatprep.mubr.bf16.mxu0 %v977
        %2153 = vmatmul.mubr.bf16.gmra.mrb[0].mxu0 %v976
        %v2154 = vpop.f32.mrb[0].mxu0
        %v2155 = vadd.f32 %v1962, %v2154
        %v2156 = vpop.f32.mrb[0].mxu0
        %v2157 = vadd.f32 %v1964, %v2156
        %v2158 = vpop.f32.mrb[0].mxu0
        %v2159 = vadd.f32 %v1966, %v2158
        %v2160 = vpop.f32.mrb[0].mxu0
        %v2161 = vadd.f32 %v1968, %v2160
        %2162 = vmatprep.mubr.bf16.mxu0 %v984
        %2163 = vmatmul.mubr.bf16.gmra.mrb[0].mxu0 %v983
        %v2164 = vpop.f32.mrb[0].mxu0
        %v2165 = vadd.f32 %v1972, %v2164
        %v2166 = vpop.f32.mrb[0].mxu0
        %v2167 = vadd.f32 %v1974, %v2166
        %v2168 = vpop.f32.mrb[0].mxu0
        %v2169 = vadd.f32 %v1976, %v2168
        %v2170 = vpop.f32.mrb[0].mxu0
        %v2171 = vadd.f32 %v1978, %v2170
        %2172 = vmatprep.mubr.bf16.mxu0 %v991
        %2173 = vmatmul.mubr.bf16.gmra.mrb[0].mxu0 %v990
        %v2174 = vpop.f32.mrb[0].mxu0
        %v2175 = vadd.f32 %v1982, %v2174
        %v2176 = vpop.f32.mrb[0].mxu0
        %v2177 = vadd.f32 %v1984, %v2176
        %v2178 = vpop.f32.mrb[0].mxu0
        %v2179 = vadd.f32 %v1986, %v2178
        %v2180 = vpop.f32.mrb[0].mxu0
        %v2181 = vadd.f32 %v1988, %v2180
        %2182 = vmatprep.mubr.bf16.mxu0 %v998
        %2183 = vmatmul.mubr.bf16.gmra.mrb[0].mxu0 %v997
        %v2184 = vpop.f32.mrb[0].mxu0
        %v2185 = vadd.f32 %v1992, %v2184
        %v2186 = vpop.f32.mrb[0].mxu0
        %v2187 = vadd.f32 %v1994, %v2186
        %v2188 = vpop.f32.mrb[0].mxu0
        %v2189 = vadd.f32 %v1996, %v2188
        %v2190 = vpop.f32.mrb[0].mxu0
        %v2191 = vadd.f32 %v1998, %v2190
        %2192 = vmatprep.mubr.bf16.mxu0 %v1005
        %2193 = vmatmul.mubr.bf16.gmra.mrb[0].mxu0 %v1004
        %v2194 = vpop.f32.mrb[0].mxu0
        %v2195 = vadd.f32 %v2002, %v2194
        %v2196 = vpop.f32.mrb[0].mxu0
        %v2197 = vadd.f32 %v2004, %v2196
        %v2198 = vpop.f32.mrb[0].mxu0
        %v2199 = vadd.f32 %v2006, %v2198
        %v2200 = vpop.f32.mrb[0].mxu0
        %v2201 = vadd.f32 %v2008, %v2200
        %2202 = vmatprep.mubr.bf16.mxu0 %v1012
        %2203 = vmatmul.mubr.bf16.gmra.mrb[0].mxu0 %v1011
        %v2204 = vpop.f32.mrb[0].mxu0
        %v2205 = vadd.f32 %v2012, %v2204
        %v2206 = vpop.f32.mrb[0].mxu0
        %v2207 = vadd.f32 %v2014, %v2206
        %v2208 = vpop.f32.mrb[0].mxu0
        %v2209 = vadd.f32 %v2016, %v2208
        %v2210 = vpop.f32.mrb[0].mxu0
        %v2211 = vadd.f32 %v2018, %v2210
        %2212 = vmatprep.mubr.bf16.mxu0 %v1019
        %2213 = vmatmul.mubr.bf16.gmra.mrb[0].mxu0 %v1018
        %v2214 = vpop.f32.mrb[0].mxu0
        %v2215 = vadd.f32 %v2022, %v2214
        %v2216 = vpop.f32.mrb[0].mxu0
        %v2217 = vadd.f32 %v2024, %v2216
        %v2218 = vpop.f32.mrb[0].mxu0
        %v2219 = vadd.f32 %v2026, %v2218
        %v2220 = vpop.f32.mrb[0].mxu0
        %v2221 = vadd.f32 %v2028, %v2220
        %2222 = vmatprep.mubr.bf16.mxu0 %v1026
        %2223 = vmatmul.mubr.bf16.gmra.mrb[0].mxu0 %v1025
        %v2224 = vpop.f32.mrb[0].mxu0
        %v2225 = vadd.f32 %v2032, %v2224
        %v2226 = vpop.f32.mrb[0].mxu0
        %v2227 = vadd.f32 %v2034, %v2226
        %v2228 = vpop.f32.mrb[0].mxu0
        %v2229 = vadd.f32 %v2036, %v2228
        %v2230 = vpop.f32.mrb[0].mxu0
        %v2231 = vadd.f32 %v2038, %v2230
        %2232 = vmatprep.mubr.bf16.mxu0 %v1033
        %2233 = vmatmul.mubr.bf16.gmra.mrb[0].mxu0 %v1032
        %v2234 = vpop.f32.mrb[0].mxu0
        %v2235 = vadd.f32 %v2042, %v2234
        %v2236 = vpop.f32.mrb[0].mxu0
        %v2237 = vadd.f32 %v2044, %v2236
        %v2238 = vpop.f32.mrb[0].mxu0
        %v2239 = vadd.f32 %v2046, %v2238
        %v2240 = vpop.f32.mrb[0].mxu0
        %v2241 = vadd.f32 %v2048, %v2240
        %2242 = vmatprep.mubr.bf16.mxu0 %v1040
        %2243 = vmatmul.mubr.bf16.gmra.mrb[0].mxu0 %v1039
        %v2244 = vpop.f32.mrb[0].mxu0
        %v2245 = vadd.f32 %v2052, %v2244
        %v2246 = vpop.f32.mrb[0].mxu0
        %v2247 = vadd.f32 %v2054, %v2246
        %v2248 = vpop.f32.mrb[0].mxu0
        %v2249 = vadd.f32 %v2056, %v2248
        %v2250 = vpop.f32.mrb[0].mxu0
        %v2251 = vadd.f32 %v2058, %v2250
        %2252 = vmatprep.mubr.bf16.mxu0 %v1047
        %2253 = vmatmul.mubr.bf16.gmra.mrb[0].mxu0 %v1046
        %v2254 = vpop.f32.mrb[0].mxu0
        %v2255 = vadd.f32 %v2062, %v2254
        %v2256 = vpop.f32.mrb[0].mxu0
        %v2257 = vadd.f32 %v2064, %v2256
        %v2258 = vpop.f32.mrb[0].mxu0
        %v2259 = vadd.f32 %v2066, %v2258
        %v2260 = vpop.f32.mrb[0].mxu0
        %v2261 = vadd.f32 %v2068, %v2260
        %2262 = vdwg.mxu0
        %2263 = vmatprep.subr.bf16.mxu0 %v1536
        %2264 = vmatpush1.bf16.msra.mxu0 %v1535
        %2265 = vmatprep.subr.bf16.mxu0 0
        %2266 = vmatpush1.bf16.msra.mxu0 0
        %2267 = vmatprep.subr.bf16.mxu0 0
        %2268 = vmatpush1.bf16.msra.mxu0 0
        %2269 = vmatprep.subr.bf16.mxu0 0
        %2270 = vmatpush1.bf16.msra.mxu0 0
        %2271 = vmatprep.subr.bf16.mxu0 0
        %2272 = vmatpush1.bf16.msra.mxu0 0
        %2273 = vmatprep.subr.bf16.mxu0 0
        %2274 = vmatpush1.bf16.msra.mxu0 0
        %2275 = vmatprep.subr.bf16.mxu0 0
        %2276 = vmatpush1.bf16.msra.mxu0 0
        %2277 = vmatprep.subr.bf16.mxu0 0
        %2278 = vmatpush1.bf16.msra.mxu0 0
        %2279 = vmatprep.subr.bf16.mxu0 0
        %2280 = vmatpush1.bf16.msra.mxu0 0
        %2281 = vmatprep.subr.bf16.mxu0 0
        %2282 = vmatpush1.bf16.msra.mxu0 0
        %2283 = vmatprep.subr.bf16.mxu0 0
        %2284 = vmatpush1.bf16.msra.mxu0 0
        %2285 = vmatprep.subr.bf16.mxu0 0
        %2286 = vmatpush1.bf16.msra.mxu0 0
        %2287 = vmatprep.subr.bf16.mxu0 0
        %2288 = vmatpush1.bf16.msra.mxu0 0
        %2289 = vmatprep.subr.bf16.mxu0 0
        %2290 = vmatpush1.bf16.msra.mxu0 0
        %2291 = vmatprep.subr.bf16.mxu0 0
        %2292 = vmatpush1.bf16.msra.mxu0 0
        %2293 = vmatprep.subr.bf16.mxu0 0
        %2294 = vmatpush1.bf16.msra.mxu0 0
        %2295 = vmatprep.mubr.bf16.mxu0 0
        %2296 = vmatmul.mubr.bf16.gmra.mrb[0].mxu0 %v1637
        %v2297 = vpop.f32.mrb[0].mxu0
        %v2298 = vadd.f32 %v2105, %v2297
        %v2299 = vpop.f32.mrb[0].mxu0
        %v2300 = vadd.f32 %v2107, %v2299
        %v2301 = vpop.f32.mrb[0].mxu0
        %v2302 = vadd.f32 %v2109, %v2301
        %v2303 = vpop.f32.mrb[0].mxu0
        %v2304 = vadd.f32 %v2111, %v2303
        %2305 = vmatprep.mubr.bf16.mxu0 0
        %2306 = vmatmul.mubr.bf16.gmra.mrb[0].mxu0 %v1640
        %v2307 = vpop.f32.mrb[0].mxu0
        %v2308 = vadd.f32 %v2115, %v2307
        %v2309 = vpop.f32.mrb[0].mxu0
        %v2310 = vadd.f32 %v2117, %v2309
        %v2311 = vpop.f32.mrb[0].mxu0
        %v2312 = vadd.f32 %v2119, %v2311
        %v2313 = vpop.f32.mrb[0].mxu0
        %v2314 = vadd.f32 %v2121, %v2313
        %2315 = vmatprep.mubr.bf16.mxu0 0
        %2316 = vmatmul.mubr.bf16.gmra.mrb[0].mxu0 %v1643
        %v2317 = vpop.f32.mrb[0].mxu0
        %v2318 = vadd.f32 %v2125, %v2317
        %v2319 = vpop.f32.mrb[0].mxu0
        %v2320 = vadd.f32 %v2127, %v2319
        %v2321 = vpop.f32.mrb[0].mxu0
        %v2322 = vadd.f32 %v2129, %v2321
        %v2323 = vpop.f32.mrb[0].mxu0
        %v2324 = vadd.f32 %v2131, %v2323
        %2325 = vmatprep.mubr.bf16.mxu0 0
        %2326 = vmatmul.mubr.bf16.gmra.mrb[0].mxu0 %v1646
        %v2327 = vpop.f32.mrb[0].mxu0
        %v2328 = vadd.f32 %v2135, %v2327
        %v2329 = vpop.f32.mrb[0].mxu0
        %v2330 = vadd.f32 %v2137, %v2329
        %v2331 = vpop.f32.mrb[0].mxu0
        %v2332 = vadd.f32 %v2139, %v2331
        %v2333 = vpop.f32.mrb[0].mxu0
        %v2334 = vadd.f32 %v2141, %v2333
        %2335 = vmatprep.mubr.bf16.mxu0 0
        %2336 = vmatmul.mubr.bf16.gmra.mrb[0].mxu0 %v1649
        %v2337 = vpop.f32.mrb[0].mxu0
        %v2338 = vadd.f32 %v2145, %v2337
        %v2339 = vpop.f32.mrb[0].mxu0
        %v2340 = vadd.f32 %v2147, %v2339
        %v2341 = vpop.f32.mrb[0].mxu0
        %v2342 = vadd.f32 %v2149, %v2341
        %v2343 = vpop.f32.mrb[0].mxu0
        %v2344 = vadd.f32 %v2151, %v2343
        %2345 = vmatprep.mubr.bf16.mxu0 0
        %2346 = vmatmul.mubr.bf16.gmra.mrb[0].mxu0 %v1652
        %v2347 = vpop.f32.mrb[0].mxu0
        %v2348 = vadd.f32 %v2155, %v2347
        %v2349 = vpop.f32.mrb[0].mxu0
        %v2350 = vadd.f32 %v2157, %v2349
        %v2351 = vpop.f32.mrb[0].mxu0
        %v2352 = vadd.f32 %v2159, %v2351
        %v2353 = vpop.f32.mrb[0].mxu0
        %v2354 = vadd.f32 %v2161, %v2353
        %2355 = vmatprep.mubr.bf16.mxu0 0
        %2356 = vmatmul.mubr.bf16.gmra.mrb[0].mxu0 %v1655
        %v2357 = vpop.f32.mrb[0].mxu0
        %v2358 = vadd.f32 %v2165, %v2357
        %v2359 = vpop.f32.mrb[0].mxu0
        %v2360 = vadd.f32 %v2167, %v2359
        %v2361 = vpop.f32.mrb[0].mxu0
        %v2362 = vadd.f32 %v2169, %v2361
        %v2363 = vpop.f32.mrb[0].mxu0
        %v2364 = vadd.f32 %v2171, %v2363
        %2365 = vmatprep.mubr.bf16.mxu0 0
        %2366 = vmatmul.mubr.bf16.gmra.mrb[0].mxu0 %v1658
        %v2367 = vpop.f32.mrb[0].mxu0
        %v2368 = vadd.f32 %v2175, %v2367
        %v2369 = vpop.f32.mrb[0].mxu0
        %v2370 = vadd.f32 %v2177, %v2369
        %v2371 = vpop.f32.mrb[0].mxu0
        %v2372 = vadd.f32 %v2179, %v2371
        %v2373 = vpop.f32.mrb[0].mxu0
        %v2374 = vadd.f32 %v2181, %v2373
        %2375 = vmatprep.mubr.bf16.mxu0 0
        %2376 = vmatmul.mubr.bf16.gmra.mrb[0].mxu0 %v1661
        %v2377 = vpop.f32.mrb[0].mxu0
        %v2378 = vadd.f32 %v2185, %v2377
        %v2379 = vpop.f32.mrb[0].mxu0
        %v2380 = vadd.f32 %v2187, %v2379
        %v2381 = vpop.f32.mrb[0].mxu0
        %v2382 = vadd.f32 %v2189, %v2381
        %v2383 = vpop.f32.mrb[0].mxu0
        %v2384 = vadd.f32 %v2191, %v2383
        %2385 = vmatprep.mubr.bf16.mxu0 0
        %2386 = vmatmul.mubr.bf16.gmra.mrb[0].mxu0 %v1664
        %v2387 = vpop.f32.mrb[0].mxu0
        %v2388 = vadd.f32 %v2195, %v2387
        %v2389 = vpop.f32.mrb[0].mxu0
        %v2390 = vadd.f32 %v2197, %v2389
        %v2391 = vpop.f32.mrb[0].mxu0
        %v2392 = vadd.f32 %v2199, %v2391
        %v2393 = vpop.f32.mrb[0].mxu0
        %v2394 = vadd.f32 %v2201, %v2393
        %2395 = vmatprep.mubr.bf16.mxu0 0
        %2396 = vmatmul.mubr.bf16.gmra.mrb[0].mxu0 %v1667
        %v2397 = vpop.f32.mrb[0].mxu0
        %v2398 = vadd.f32 %v2205, %v2397
        %v2399 = vpop.f32.mrb[0].mxu0
        %v2400 = vadd.f32 %v2207, %v2399
        %v2401 = vpop.f32.mrb[0].mxu0
        %v2402 = vadd.f32 %v2209, %v2401
        %v2403 = vpop.f32.mrb[0].mxu0
        %v2404 = vadd.f32 %v2211, %v2403
        %2405 = vmatprep.mubr.bf16.mxu0 0
        %2406 = vmatmul.mubr.bf16.gmra.mrb[0].mxu0 %v1670
        %v2407 = vpop.f32.mrb[0].mxu0
        %v2408 = vadd.f32 %v2215, %v2407
        %v2409 = vpop.f32.mrb[0].mxu0
        %v2410 = vadd.f32 %v2217, %v2409
        %v2411 = vpop.f32.mrb[0].mxu0
        %v2412 = vadd.f32 %v2219, %v2411
        %v2413 = vpop.f32.mrb[0].mxu0
        %v2414 = vadd.f32 %v2221, %v2413
        %2415 = vmatprep.mubr.bf16.mxu0 0
        %2416 = vmatmul.mubr.bf16.gmra.mrb[0].mxu0 %v1673
        %v2417 = vpop.f32.mrb[0].mxu0
        %v2418 = vadd.f32 %v2225, %v2417
        %v2419 = vpop.f32.mrb[0].mxu0
        %v2420 = vadd.f32 %v2227, %v2419
        %v2421 = vpop.f32.mrb[0].mxu0
        %v2422 = vadd.f32 %v2229, %v2421
        %v2423 = vpop.f32.mrb[0].mxu0
        %v2424 = vadd.f32 %v2231, %v2423
        %2425 = vmatprep.mubr.bf16.mxu0 0
        %2426 = vmatmul.mubr.bf16.gmra.mrb[0].mxu0 %v1676
        %v2427 = vpop.f32.mrb[0].mxu0
        %v2428 = vadd.f32 %v2235, %v2427
        %v2429 = vpop.f32.mrb[0].mxu0
        %v2430 = vadd.f32 %v2237, %v2429
        %v2431 = vpop.f32.mrb[0].mxu0
        %v2432 = vadd.f32 %v2239, %v2431
        %v2433 = vpop.f32.mrb[0].mxu0
        %v2434 = vadd.f32 %v2241, %v2433
        %2435 = vmatprep.mubr.bf16.mxu0 0
        %2436 = vmatmul.mubr.bf16.gmra.mrb[0].mxu0 %v1679
        %v2437 = vpop.f32.mrb[0].mxu0
        %v2438 = vadd.f32 %v2245, %v2437
        %v2439 = vpop.f32.mrb[0].mxu0
        %v2440 = vadd.f32 %v2247, %v2439
        %v2441 = vpop.f32.mrb[0].mxu0
        %v2442 = vadd.f32 %v2249, %v2441
        %v2443 = vpop.f32.mrb[0].mxu0
        %v2444 = vadd.f32 %v2251, %v2443
        %2445 = vmatprep.mubr.bf16.mxu0 0
        %2446 = vmatmul.mubr.bf16.gmra.mrb[0].mxu0 %v1682
        %v2447 = vpop.f32.mrb[0].mxu0
        %v2448 = vadd.f32 %v2255, %v2447
        %v2449 = vpop.f32.mrb[0].mxu0
        %v2450 = vadd.f32 %v2257, %v2449
        %v2451 = vpop.f32.mrb[0].mxu0
        %v2452 = vadd.f32 %v2259, %v2451
        %v2453 = vpop.f32.mrb[0].mxu0
        %v2454 = vadd.f32 %v2261, %v2453
        %2455 = vdwg.mxu0
        %vm2456 = vcmp.gt.f32.partialorder %v2298, 0.0
        %vm2457 = vcmp.gt.f32.partialorder %v2300, 0.0
        %vm2458 = vcmp.gt.f32.partialorder %v2302, 0.0
        %vm2459 = vcmp.gt.f32.partialorder %v2304, 0.0
        %vm2460 = vcmp.gt.f32.partialorder %v2308, 0.0
        %vm2461 = vcmp.gt.f32.partialorder %v2310, 0.0
        %vm2462 = vcmp.gt.f32.partialorder %v2312, 0.0
        %vm2463 = vcmp.gt.f32.partialorder %v2314, 0.0
        %vm2464 = vcmp.gt.f32.partialorder %v2318, 0.0
        %vm2465 = vcmp.gt.f32.partialorder %v2320, 0.0
        %vm2466 = vcmp.gt.f32.partialorder %v2322, 0.0
        %vm2467 = vcmp.gt.f32.partialorder %v2324, 0.0
        %vm2468 = vcmp.gt.f32.partialorder %v2328, 0.0
        %vm2469 = vcmp.gt.f32.partialorder %v2330, 0.0
        %vm2470 = vcmp.gt.f32.partialorder %v2332, 0.0
        %vm2471 = vcmp.gt.f32.partialorder %v2334, 0.0
        %vm2472 = vcmp.gt.f32.partialorder %v2338, 0.0
        %vm2473 = vcmp.gt.f32.partialorder %v2340, 0.0
        %vm2474 = vcmp.gt.f32.partialorder %v2342, 0.0
        %vm2475 = vcmp.gt.f32.partialorder %v2344, 0.0
        %vm2476 = vcmp.gt.f32.partialorder %v2348, 0.0
        %vm2477 = vcmp.gt.f32.partialorder %v2350, 0.0
        %vm2478 = vcmp.gt.f32.partialorder %v2352, 0.0
        %vm2479 = vcmp.gt.f32.partialorder %v2354, 0.0
        %vm2480 = vcmp.gt.f32.partialorder %v2358, 0.0
        %vm2481 = vcmp.gt.f32.partialorder %v2360, 0.0
        %vm2482 = vcmp.gt.f32.partialorder %v2362, 0.0
        %vm2483 = vcmp.gt.f32.partialorder %v2364, 0.0
        %vm2484 = vcmp.gt.f32.partialorder %v2368, 0.0
        %vm2485 = vcmp.gt.f32.partialorder %v2370, 0.0
        %vm2486 = vcmp.gt.f32.partialorder %v2372, 0.0
        %vm2487 = vcmp.gt.f32.partialorder %v2374, 0.0
        %vm2488 = vcmp.gt.f32.partialorder %v2378, 0.0
        %vm2489 = vcmp.gt.f32.partialorder %v2380, 0.0
        %vm2490 = vcmp.gt.f32.partialorder %v2382, 0.0
        %vm2491 = vcmp.gt.f32.partialorder %v2384, 0.0
        %vm2492 = vcmp.gt.f32.partialorder %v2388, 0.0
        %vm2493 = vcmp.gt.f32.partialorder %v2390, 0.0
        %vm2494 = vcmp.gt.f32.partialorder %v2392, 0.0
        %vm2495 = vcmp.gt.f32.partialorder %v2394, 0.0
        %vm2496 = vcmp.gt.f32.partialorder %v2398, 0.0
        %vm2497 = vcmp.gt.f32.partialorder %v2400, 0.0
        %vm2498 = vcmp.gt.f32.partialorder %v2402, 0.0
        %vm2499 = vcmp.gt.f32.partialorder %v2404, 0.0
        %vm2500 = vcmp.gt.f32.partialorder %v2408, 0.0
        %vm2501 = vcmp.gt.f32.partialorder %v2410, 0.0
        %vm2502 = vcmp.gt.f32.partialorder %v2412, 0.0
        %vm2503 = vcmp.gt.f32.partialorder %v2414, 0.0
        %vm2504 = vcmp.gt.f32.partialorder %v2418, 0.0
        %vm2505 = vcmp.gt.f32.partialorder %v2420, 0.0
        %vm2506 = vcmp.gt.f32.partialorder %v2422, 0.0
        %vm2507 = vcmp.gt.f32.partialorder %v2424, 0.0
        %vm2508 = vcmp.gt.f32.partialorder %v2428, 0.0
        %vm2509 = vcmp.gt.f32.partialorder %v2430, 0.0
        %vm2510 = vcmp.gt.f32.partialorder %v2432, 0.0
        %vm2511 = vcmp.gt.f32.partialorder %v2434, 0.0
        %vm2512 = vcmp.gt.f32.partialorder %v2438, 0.0
        %vm2513 = vcmp.gt.f32.partialorder %v2440, 0.0
        %vm2514 = vcmp.gt.f32.partialorder %v2442, 0.0
        %vm2515 = vcmp.gt.f32.partialorder %v2444, 0.0
        %vm2516 = vcmp.gt.f32.partialorder %v2448, 0.0
        %vm2517 = vcmp.gt.f32.partialorder %v2450, 0.0
        %vm2518 = vcmp.gt.f32.partialorder %v2452, 0.0
        %vm2519 = vcmp.gt.f32.partialorder %v2454, 0.0
        %v2520 = vmul.f32 %v2298, 0.2
        %v2521 = vmul.f32 %v2300, 0.2
        %v2522 = vmul.f32 %v2302, 0.2
        %v2523 = vmul.f32 %v2304, 0.2
        %v2524 = vmul.f32 %v2308, 0.2
        %v2525 = vmul.f32 %v2310, 0.2
        %v2526 = vmul.f32 %v2312, 0.2
        %v2527 = vmul.f32 %v2314, 0.2
        %v2528 = vmul.f32 %v2318, 0.2
        %v2529 = vmul.f32 %v2320, 0.2
        %v2530 = vmul.f32 %v2322, 0.2
        %v2531 = vmul.f32 %v2324, 0.2
        %v2532 = vmul.f32 %v2328, 0.2
        %v2533 = vmul.f32 %v2330, 0.2
        %v2534 = vmul.f32 %v2332, 0.2
        %v2535 = vmul.f32 %v2334, 0.2
        %v2536 = vmul.f32 %v2338, 0.2
        %v2537 = vmul.f32 %v2340, 0.2
        %v2538 = vmul.f32 %v2342, 0.2
        %v2539 = vmul.f32 %v2344, 0.2
        %v2540 = vmul.f32 %v2348, 0.2
        %v2541 = vmul.f32 %v2350, 0.2
        %v2542 = vmul.f32 %v2352, 0.2
        %v2543 = vmul.f32 %v2354, 0.2
        %v2544 = vmul.f32 %v2358, 0.2
        %v2545 = vmul.f32 %v2360, 0.2
        %v2546 = vmul.f32 %v2362, 0.2
        %v2547 = vmul.f32 %v2364, 0.2
        %v2548 = vmul.f32 %v2368, 0.2
        %v2549 = vmul.f32 %v2370, 0.2
        %v2550 = vmul.f32 %v2372, 0.2
        %v2551 = vmul.f32 %v2374, 0.2
        %v2552 = vmul.f32 %v2378, 0.2
        %v2553 = vmul.f32 %v2380, 0.2
        %v2554 = vmul.f32 %v2382, 0.2
        %v2555 = vmul.f32 %v2384, 0.2
        %v2556 = vmul.f32 %v2388, 0.2
        %v2557 = vmul.f32 %v2390, 0.2
        %v2558 = vmul.f32 %v2392, 0.2
        %v2559 = vmul.f32 %v2394, 0.2
        %v2560 = vmul.f32 %v2398, 0.2
        %v2561 = vmul.f32 %v2400, 0.2
        %v2562 = vmul.f32 %v2402, 0.2
        %v2563 = vmul.f32 %v2404, 0.2
        %v2564 = vmul.f32 %v2408, 0.2
        %v2565 = vmul.f32 %v2410, 0.2
        %v2566 = vmul.f32 %v2412, 0.2
        %v2567 = vmul.f32 %v2414, 0.2
        %v2568 = vmul.f32 %v2418, 0.2
        %v2569 = vmul.f32 %v2420, 0.2
        %v2570 = vmul.f32 %v2422, 0.2
        %v2571 = vmul.f32 %v2424, 0.2
        %v2572 = vmul.f32 %v2428, 0.2
        %v2573 = vmul.f32 %v2430, 0.2
        %v2574 = vmul.f32 %v2432, 0.2
        %v2575 = vmul.f32 %v2434, 0.2
        %v2576 = vmul.f32 %v2438, 0.2
        %v2577 = vmul.f32 %v2440, 0.2
        %v2578 = vmul.f32 %v2442, 0.2
        %v2579 = vmul.f32 %v2444, 0.2
        %v2580 = vmul.f32 %v2448, 0.2
        %v2581 = vmul.f32 %v2450, 0.2
        %v2582 = vmul.f32 %v2452, 0.2
        %v2583 = vmul.f32 %v2454, 0.2
        %v2584 = vsel %vm2456, %v2298, %v2520
        %v2585 = vsel %vm2457, %v2300, %v2521
        %v2586 = vsel %vm2458, %v2302, %v2522
        %v2587 = vsel %vm2459, %v2304, %v2523
        %v2588 = vsel %vm2460, %v2308, %v2524
        %v2589 = vsel %vm2461, %v2310, %v2525
        %v2590 = vsel %vm2462, %v2312, %v2526
        %v2591 = vsel %vm2463, %v2314, %v2527
        %v2592 = vsel %vm2464, %v2318, %v2528
        %v2593 = vsel %vm2465, %v2320, %v2529
        %v2594 = vsel %vm2466, %v2322, %v2530
        %v2595 = vsel %vm2467, %v2324, %v2531
        %v2596 = vsel %vm2468, %v2328, %v2532
        %v2597 = vsel %vm2469, %v2330, %v2533
        %v2598 = vsel %vm2470, %v2332, %v2534
        %v2599 = vsel %vm2471, %v2334, %v2535
        %v2600 = vsel %vm2472, %v2338, %v2536
        %v2601 = vsel %vm2473, %v2340, %v2537
        %v2602 = vsel %vm2474, %v2342, %v2538
        %v2603 = vsel %vm2475, %v2344, %v2539
        %v2604 = vsel %vm2476, %v2348, %v2540
        %v2605 = vsel %vm2477, %v2350, %v2541
        %v2606 = vsel %vm2478, %v2352, %v2542
        %v2607 = vsel %vm2479, %v2354, %v2543
        %v2608 = vsel %vm2480, %v2358, %v2544
        %v2609 = vsel %vm2481, %v2360, %v2545
        %v2610 = vsel %vm2482, %v2362, %v2546
        %v2611 = vsel %vm2483, %v2364, %v2547
        %v2612 = vsel %vm2484, %v2368, %v2548
        %v2613 = vsel %vm2485, %v2370, %v2549
        %v2614 = vsel %vm2486, %v2372, %v2550
        %v2615 = vsel %vm2487, %v2374, %v2551
        %v2616 = vsel %vm2488, %v2378, %v2552
        %v2617 = vsel %vm2489, %v2380, %v2553
        %v2618 = vsel %vm2490, %v2382, %v2554
        %v2619 = vsel %vm2491, %v2384, %v2555
        %v2620 = vsel %vm2492, %v2388, %v2556
        %v2621 = vsel %vm2493, %v2390, %v2557
        %v2622 = vsel %vm2494, %v2392, %v2558
        %v2623 = vsel %vm2495, %v2394, %v2559
        %v2624 = vsel %vm2496, %v2398, %v2560
        %v2625 = vsel %vm2497, %v2400, %v2561
        %v2626 = vsel %vm2498, %v2402, %v2562
        %v2627 = vsel %vm2499, %v2404, %v2563
        %v2628 = vsel %vm2500, %v2408, %v2564
        %v2629 = vsel %vm2501, %v2410, %v2565
        %v2630 = vsel %vm2502, %v2412, %v2566
        %v2631 = vsel %vm2503, %v2414, %v2567
        %v2632 = vsel %vm2504, %v2418, %v2568
        %v2633 = vsel %vm2505, %v2420, %v2569
        %v2634 = vsel %vm2506, %v2422, %v2570
        %v2635 = vsel %vm2507, %v2424, %v2571
        %v2636 = vsel %vm2508, %v2428, %v2572
        %v2637 = vsel %vm2509, %v2430, %v2573
        %v2638 = vsel %vm2510, %v2432, %v2574
        %v2639 = vsel %vm2511, %v2434, %v2575
        %v2640 = vsel %vm2512, %v2438, %v2576
        %v2641 = vsel %vm2513, %v2440, %v2577
        %v2642 = vsel %vm2514, %v2442, %v2578
        %v2643 = vsel %vm2515, %v2444, %v2579
        %v2644 = vsel %vm2516, %v2448, %v2580
        %v2645 = vsel %vm2517, %v2450, %v2581
        %v2646 = vsel %vm2518, %v2452, %v2582
        %v2647 = vsel %vm2519, %v2454, %v2583
        %v2648 = vld [vmem:[%s327] sm:$0xff]
        %v2649 = vld [vmem:[%s327 + $0x8] sm:$0xff]
        %v2650 = vld [vmem:[%s327 + $0x10] sm:$0xff]
        %v2651 = vld [vmem:[%s327 + $0x18] sm:$0xff]
        %v2652 = vld [vmem:[%s327 + $0x20] sm:$0xff]
        %v2653 = vld [vmem:[%s327 + $0x28] sm:$0xff]
        %v2654 = vld [vmem:[%s327 + $0x30] sm:$0xff]
        %v2655 = vld [vmem:[%s327 + $0x38] sm:$0xff]
        %v2656 = vld [vmem:[%s327 + $0x40] sm:$0xff]
        %v2657 = vld [vmem:[%s327 + $0x48] sm:$0xff]
        %v2658 = vld [vmem:[%s327 + $0x50] sm:$0xff]
        %v2659 = vld [vmem:[%s327 + $0x58] sm:$0xff]
        %v2660 = vld [vmem:[%s327 + $0x60] sm:$0xff]
        %v2661 = vld [vmem:[%s327 + $0x68] sm:$0xff]
        %v2662 = vld [vmem:[%s327 + $0x70] sm:$0xff]
        %v2663 = vld [vmem:[%s327 + $0x78] sm:$0xff]
        %v2664 = vld [vmem:[%s327 + $0x80] sm:$0xff]
        %v2665 = vld [vmem:[%s327 + $0x88] sm:$0xff]
        %v2666 = vld [vmem:[%s327 + $0x90] sm:$0xff]
        %v2667 = vld [vmem:[%s327 + $0x98] sm:$0xff]
        %v2668 = vld [vmem:[%s327 + $0xa0] sm:$0xff]
        %v2669 = vld [vmem:[%s327 + $0xa8] sm:$0xff]
        %v2670 = vld [vmem:[%s327 + $0xb0] sm:$0xff]
        %v2671 = vld [vmem:[%s327 + $0xb8] sm:$0xff]
        %v2672 = vld [vmem:[%s327 + $0xc0] sm:$0xff]
        %v2673 = vld [vmem:[%s327 + $0xc8] sm:$0xff]
        %v2674 = vld [vmem:[%s327 + $0xd0] sm:$0xff]
        %v2675 = vld [vmem:[%s327 + $0xd8] sm:$0xff]
        %v2676 = vld [vmem:[%s327 + $0xe0] sm:$0xff]
        %v2677 = vld [vmem:[%s327 + $0xe8] sm:$0xff]
        %v2678 = vld [vmem:[%s327 + $0xf0] sm:$0xff]
        %v2679 = vld [vmem:[%s327 + $0xf8] sm:$0xff]
        %v2680 = vld [vmem:[%s327 + $0x100] sm:$0xff]
        %v2681 = vld [vmem:[%s327 + $0x108] sm:$0xff]
        %v2682 = vld [vmem:[%s327 + $0x110] sm:$0xff]
        %v2683 = vld [vmem:[%s327 + $0x118] sm:$0xff]
        %v2684 = vld [vmem:[%s327 + $0x120] sm:$0xff]
        %v2685 = vld [vmem:[%s327 + $0x128] sm:$0xff]
        %v2686 = vld [vmem:[%s327 + $0x130] sm:$0xff]
        %v2687 = vld [vmem:[%s327 + $0x138] sm:$0xff]
        %v2688 = vld [vmem:[%s327 + $0x140] sm:$0xff]
        %v2689 = vld [vmem:[%s327 + $0x148] sm:$0xff]
        %v2690 = vld [vmem:[%s327 + $0x150] sm:$0xff]
        %v2691 = vld [vmem:[%s327 + $0x158] sm:$0xff]
        %v2692 = vld [vmem:[%s327 + $0x160] sm:$0xff]
        %v2693 = vld [vmem:[%s327 + $0x168] sm:$0xff]
        %v2694 = vld [vmem:[%s327 + $0x170] sm:$0xff]
        %v2695 = vld [vmem:[%s327 + $0x178] sm:$0xff]
        %v2696 = vld [vmem:[%s327 + $0x180] sm:$0xff]
        %v2697 = vld [vmem:[%s327 + $0x188] sm:$0xff]
        %v2698 = vld [vmem:[%s327 + $0x190] sm:$0xff]
        %v2699 = vld [vmem:[%s327 + $0x198] sm:$0xff]
        %v2700 = vld [vmem:[%s327 + $0x1a0] sm:$0xff]
        %v2701 = vld [vmem:[%s327 + $0x1a8] sm:$0xff]
        %v2702 = vld [vmem:[%s327 + $0x1b0] sm:$0xff]
        %v2703 = vld [vmem:[%s327 + $0x1b8] sm:$0xff]
        %v2704 = vld [vmem:[%s327 + $0x1c0] sm:$0xff]
        %v2705 = vld [vmem:[%s327 + $0x1c8] sm:$0xff]
        %v2706 = vld [vmem:[%s327 + $0x1d0] sm:$0xff]
        %v2707 = vld [vmem:[%s327 + $0x1d8] sm:$0xff]
        %v2708 = vld [vmem:[%s327 + $0x1e0] sm:$0xff]
        %v2709 = vld [vmem:[%s327 + $0x1e8] sm:$0xff]
        %v2710 = vld [vmem:[%s327 + $0x1f0] sm:$0xff]
        %v2711 = vld [vmem:[%s327 + $0x1f8] sm:$0xff]
        %v2712 = vmul.f32 %v2584, %v2648
        %v2713 = vmul.f32 %v2585, %v2649
        %v2714 = vmul.f32 %v2586, %v2650
        %v2715 = vmul.f32 %v2587, %v2651
        %v2716 = vmul.f32 %v2588, %v2652
        %v2717 = vmul.f32 %v2589, %v2653
        %v2718 = vmul.f32 %v2590, %v2654
        %v2719 = vmul.f32 %v2591, %v2655
        %v2720 = vmul.f32 %v2592, %v2656
        %v2721 = vmul.f32 %v2593, %v2657
        %v2722 = vmul.f32 %v2594, %v2658
        %v2723 = vmul.f32 %v2595, %v2659
        %v2724 = vmul.f32 %v2596, %v2660
        %v2725 = vmul.f32 %v2597, %v2661
        %v2726 = vmul.f32 %v2598, %v2662
        %v2727 = vmul.f32 %v2599, %v2663
        %v2728 = vmul.f32 %v2600, %v2664
        %v2729 = vmul.f32 %v2601, %v2665
        %v2730 = vmul.f32 %v2602, %v2666
        %v2731 = vmul.f32 %v2603, %v2667
        %v2732 = vmul.f32 %v2604, %v2668
        %v2733 = vmul.f32 %v2605, %v2669
        %v2734 = vmul.f32 %v2606, %v2670
        %v2735 = vmul.f32 %v2607, %v2671
        %v2736 = vmul.f32 %v2608, %v2672
        %v2737 = vmul.f32 %v2609, %v2673
        %v2738 = vmul.f32 %v2610, %v2674
        %v2739 = vmul.f32 %v2611, %v2675
        %v2740 = vmul.f32 %v2612, %v2676
        %v2741 = vmul.f32 %v2613, %v2677
        %v2742 = vmul.f32 %v2614, %v2678
        %v2743 = vmul.f32 %v2615, %v2679
        %v2744 = vmul.f32 %v2616, %v2680
        %v2745 = vmul.f32 %v2617, %v2681
        %v2746 = vmul.f32 %v2618, %v2682
        %v2747 = vmul.f32 %v2619, %v2683
        %v2748 = vmul.f32 %v2620, %v2684
        %v2749 = vmul.f32 %v2621, %v2685
        %v2750 = vmul.f32 %v2622, %v2686
        %v2751 = vmul.f32 %v2623, %v2687
        %v2752 = vmul.f32 %v2624, %v2688
        %v2753 = vmul.f32 %v2625, %v2689
        %v2754 = vmul.f32 %v2626, %v2690
        %v2755 = vmul.f32 %v2627, %v2691
        %v2756 = vmul.f32 %v2628, %v2692
        %v2757 = vmul.f32 %v2629, %v2693
        %v2758 = vmul.f32 %v2630, %v2694
        %v2759 = vmul.f32 %v2631, %v2695
        %v2760 = vmul.f32 %v2632, %v2696
        %v2761 = vmul.f32 %v2633, %v2697
        %v2762 = vmul.f32 %v2634, %v2698
        %v2763 = vmul.f32 %v2635, %v2699
        %v2764 = vmul.f32 %v2636, %v2700
        %v2765 = vmul.f32 %v2637, %v2701
        %v2766 = vmul.f32 %v2638, %v2702
        %v2767 = vmul.f32 %v2639, %v2703
        %v2768 = vmul.f32 %v2640, %v2704
        %v2769 = vmul.f32 %v2641, %v2705
        %v2770 = vmul.f32 %v2642, %v2706
        %v2771 = vmul.f32 %v2643, %v2707
        %v2772 = vmul.f32 %v2644, %v2708
        %v2773 = vmul.f32 %v2645, %v2709
        %v2774 = vmul.f32 %v2646, %v2710
        %v2775 = vmul.f32 %v2647, %v2711
        %v2776 = vpack.c.bf16 %v2714, %v2712
        %v2777 = vpack.c.bf16 %v2715, %v2713
        %v2778 = vpack.c.bf16 %v2718, %v2716
        %v2779 = vpack.c.bf16 %v2719, %v2717
        %v2780 = vpack.c.bf16 %v2722, %v2720
        %v2781 = vpack.c.bf16 %v2723, %v2721
        %v2782 = vpack.c.bf16 %v2726, %v2724
        %v2783 = vpack.c.bf16 %v2727, %v2725
        %v2784 = vpack.c.bf16 %v2730, %v2728
        %v2785 = vpack.c.bf16 %v2731, %v2729
        %v2786 = vpack.c.bf16 %v2734, %v2732
        %v2787 = vpack.c.bf16 %v2735, %v2733
        %v2788 = vpack.c.bf16 %v2738, %v2736
        %v2789 = vpack.c.bf16 %v2739, %v2737
        %v2790 = vpack.c.bf16 %v2742, %v2740
        %v2791 = vpack.c.bf16 %v2743, %v2741
        %v2792 = vpack.c.bf16 %v2746, %v2744
        %v2793 = vpack.c.bf16 %v2747, %v2745
        %v2794 = vpack.c.bf16 %v2750, %v2748
        %v2795 = vpack.c.bf16 %v2751, %v2749
        %v2796 = vpack.c.bf16 %v2754, %v2752
        %v2797 = vpack.c.bf16 %v2755, %v2753
        %v2798 = vpack.c.bf16 %v2758, %v2756
        %v2799 = vpack.c.bf16 %v2759, %v2757
        %v2800 = vpack.c.bf16 %v2762, %v2760
        %v2801 = vpack.c.bf16 %v2763, %v2761
        %v2802 = vpack.c.bf16 %v2766, %v2764
        %v2803 = vpack.c.bf16 %v2767, %v2765
        %v2804 = vpack.c.bf16 %v2770, %v2768
        %v2805 = vpack.c.bf16 %v2771, %v2769
        %v2806 = vpack.c.bf16 %v2774, %v2772
        %v2807 = vpack.c.bf16 %v2775, %v2773
        %v2808 = vld [vmem:[%s4] sm:$0xff]
        %v2809 = vld [vmem:[%s4 + $0x8] sm:$0xff]
        %v2810 = vld [vmem:[%s4 + $0x10] sm:$0xff]
        %v2811 = vld [vmem:[%s4 + $0x18] sm:$0xff]
        %v2812 = vld [vmem:[%s4 + $0x20] sm:$0xff]
        %v2813 = vld [vmem:[%s4 + $0x28] sm:$0xff]
        %v2814 = vld [vmem:[%s4 + $0x30] sm:$0xff]
        %v2815 = vld [vmem:[%s4 + $0x38] sm:$0xff]
        %v2816 = vld [vmem:[%s4 + $0x40] sm:$0xff]
        %v2817 = vld [vmem:[%s4 + $0x48] sm:$0xff]
        %v2818 = vld [vmem:[%s4 + $0x50] sm:$0xff]
        %v2819 = vld [vmem:[%s4 + $0x58] sm:$0xff]
        %v2820 = vld [vmem:[%s4 + $0x60] sm:$0xff]
        %v2821 = vld [vmem:[%s4 + $0x68] sm:$0xff]
        %v2822 = vld [vmem:[%s4 + $0x70] sm:$0xff]
        %v2823 = vld [vmem:[%s4 + $0x78] sm:$0xff]
        %v2824 = vld [vmem:[%s4 + $0x80] sm:$0xff]
        %v2825 = vld [vmem:[%s4 + $0x88] sm:$0xff]
        %v2826 = vld [vmem:[%s4 + $0x90] sm:$0xff]
        %v2827 = vld [vmem:[%s4 + $0x98] sm:$0xff]
        %v2828 = vld [vmem:[%s4 + $0xa0] sm:$0xff]
        %v2829 = vld [vmem:[%s4 + $0xa8] sm:$0xff]
        %v2830 = vld [vmem:[%s4 + $0xb0] sm:$0xff]
        %v2831 = vld [vmem:[%s4 + $0xb8] sm:$0xff]
        %v2832 = vld [vmem:[%s4 + $0xc0] sm:$0xff]
        %v2833 = vld [vmem:[%s4 + $0xc8] sm:$0xff]
        %v2834 = vld [vmem:[%s4 + $0xd0] sm:$0xff]
        %v2835 = vld [vmem:[%s4 + $0xd8] sm:$0xff]
        %v2836 = vld [vmem:[%s4 + $0xe0] sm:$0xff]
        %v2837 = vld [vmem:[%s4 + $0xe8] sm:$0xff]
        %v2838 = vld [vmem:[%s5] sm:$0x3]
        %v2840 = vlaneseq
        %v2841 = vshrl.u32 %v2840, 7
        %v2842 = vsub.s32 0, %v2841
        %v2843 = vrot.slane %v2838, %v2842
        %v2844 = vlaneseq
        %v2845 = vshrl.u32 %v2844, 7
        %v2846 = vsub.s32 1, %v2845
        %v2847 = vrot.slane %v2838, %v2846
        %v2880 = vunpack.c.l.b16 %v2808
        %v2881 = vunpack.c.h.b16 %v2808
        %v2882 = vunpack.c.l.b16 %v2809
        %v2883 = vunpack.c.h.b16 %v2809
        %v2884 = vunpack.c.l.b16 %v2810
        %v2885 = vunpack.c.h.b16 %v2810
        %v2886 = vunpack.c.l.b16 %v2811
        %v2887 = vunpack.c.h.b16 %v2811
        %v2888 = vunpack.c.l.b16 %v2812
        %v2889 = vunpack.c.h.b16 %v2812
        %v2890 = vunpack.c.l.b16 %v2813
        %v2891 = vunpack.c.h.b16 %v2813
        %v2892 = vunpack.c.l.b16 %v2814
        %v2893 = vunpack.c.h.b16 %v2814
        %v2894 = vunpack.c.l.b16 %v2815
        %v2895 = vunpack.c.h.b16 %v2815
        %v2896 = vunpack.c.l.b16 %v2816
        %v2897 = vunpack.c.h.b16 %v2816
        %v2898 = vunpack.c.l.b16 %v2817
        %v2899 = vunpack.c.h.b16 %v2817
        %v2900 = vunpack.c.l.b16 %v2818
        %v2901 = vunpack.c.h.b16 %v2818
        %v2902 = vunpack.c.l.b16 %v2819
        %v2903 = vunpack.c.h.b16 %v2819
        %v2904 = vunpack.c.l.b16 %v2820
        %v2905 = vunpack.c.h.b16 %v2820
        %v2906 = vunpack.c.l.b16 %v2821
        %v2907 = vunpack.c.h.b16 %v2821
        %v2908 = vunpack.c.l.b16 %v2822
        %v2909 = vunpack.c.h.b16 %v2822
        %v2910 = vunpack.c.l.b16 %v2823
        %v2911 = vunpack.c.h.b16 %v2823
        %v2912 = vunpack.c.l.b16 %v2824
        %v2913 = vunpack.c.h.b16 %v2824
        %v2914 = vunpack.c.l.b16 %v2825
        %v2915 = vunpack.c.h.b16 %v2825
        %v2916 = vunpack.c.l.b16 %v2826
        %v2917 = vunpack.c.h.b16 %v2826
        %v2918 = vunpack.c.l.b16 %v2827
        %v2919 = vunpack.c.h.b16 %v2827
        %v2920 = vunpack.c.l.b16 %v2828
        %v2921 = vunpack.c.h.b16 %v2828
        %v2922 = vunpack.c.l.b16 %v2829
        %v2923 = vunpack.c.h.b16 %v2829
        %v2924 = vunpack.c.l.b16 %v2830
        %v2925 = vunpack.c.h.b16 %v2830
        %v2926 = vunpack.c.l.b16 %v2831
        %v2927 = vunpack.c.h.b16 %v2831
        %v2928 = vunpack.c.l.b16 %v2832
        %v2929 = vunpack.c.h.b16 %v2832
        %v2930 = vunpack.c.l.b16 %v2833
        %v2931 = vunpack.c.h.b16 %v2833
        %v2932 = vunpack.c.l.b16 %v2834
        %v2933 = vunpack.c.h.b16 %v2834
        %v2934 = vunpack.c.l.b16 %v2835
        %v2935 = vunpack.c.h.b16 %v2835
        %v2936 = vunpack.c.l.b16 %v2836
        %v2937 = vunpack.c.h.b16 %v2836
        %v2938 = vunpack.c.l.b16 %v2837
        %v2939 = vunpack.c.h.b16 %v2837
        %v2940 = vpack.c.b16 %v2882, %v2880
        %v2941 = vpack.c.b16 %v2883, %v2881
        %v2942 = vpack.c.b16 %v2886, %v2884
        %v2943 = vpack.c.b16 %v2887, %v2885
        %v2944 = vpack.c.b16 %v2890, %v2888
        %v2945 = vpack.c.b16 %v2891, %v2889
        %v2946 = vpack.c.b16 %v2894, %v2892
        %v2947 = vpack.c.b16 %v2895, %v2893
        %v2948 = vpack.c.b16 %v2898, %v2896
        %v2949 = vpack.c.b16 %v2899, %v2897
        %v2950 = vpack.c.b16 %v2902, %v2900
        %v2951 = vpack.c.b16 %v2903, %v2901
        %v2952 = vpack.c.b16 %v2906, %v2904
        %v2953 = vpack.c.b16 %v2907, %v2905
        %v2954 = vpack.c.b16 %v2910, %v2908
        %v2955 = vpack.c.b16 %v2911, %v2909
        %v2956 = vpack.c.b16 %v2914, %v2912
        %v2957 = vpack.c.b16 %v2915, %v2913
        %v2958 = vpack.c.b16 %v2918, %v2916
        %v2959 = vpack.c.b16 %v2919, %v2917
        %v2960 = vpack.c.b16 %v2922, %v2920
        %v2961 = vpack.c.b16 %v2923, %v2921
        %v2962 = vpack.c.b16 %v2926, %v2924
        %v2963 = vpack.c.b16 %v2927, %v2925
        %v2964 = vpack.c.b16 %v2930, %v2928
        %v2965 = vpack.c.b16 %v2931, %v2929
        %v2966 = vpack.c.b16 %v2934, %v2932
        %v2967 = vpack.c.b16 %v2935, %v2933
        %v2968 = vpack.c.b16 %v2938, %v2936
        %v2969 = vpack.c.b16 %v2939, %v2937
        %vm3000 = vcmask 916480
        %v3002 = vsel %vm3000, %v2777, 0
        %v3005 = vsel %vm3000, %v2779, 0
        %v3008 = vsel %vm3000, %v2781, 0
        %v3011 = vsel %vm3000, %v2783, 0
        %v3014 = vsel %vm3000, %v2785, 0
        %v3017 = vsel %vm3000, %v2787, 0
        %v3020 = vsel %vm3000, %v2789, 0
        %v3023 = vsel %vm3000, %v2791, 0
        %v3026 = vsel %vm3000, %v2793, 0
        %v3029 = vsel %vm3000, %v2795, 0
        %v3032 = vsel %vm3000, %v2797, 0
        %v3035 = vsel %vm3000, %v2799, 0
        %v3038 = vsel %vm3000, %v2801, 0
        %v3041 = vsel %vm3000, %v2803, 0
        %v3044 = vsel %vm3000, %v2805, 0
        %v3047 = vsel %vm3000, %v2807, 0
        %3049 = vmatprep.subr.bf16.mxu0 %v2941
        %3050 = vmatpush1.bf16.msra.mxu0 %v2940
        %3051 = vmatprep.subr.bf16.mxu0 %v2943
        %3052 = vmatpush1.bf16.msra.mxu0 %v2942
        %3053 = vmatprep.subr.bf16.mxu0 %v2945
        %3054 = vmatpush1.bf16.msra.mxu0 %v2944
        %3055 = vmatprep.subr.bf16.mxu0 %v2947
        %3056 = vmatpush1.bf16.msra.mxu0 %v2946
        %3057 = vmatprep.subr.bf16.mxu0 %v2949
        %3058 = vmatpush1.bf16.msra.mxu0 %v2948
        %3059 = vmatprep.subr.bf16.mxu0 %v2951
        %3060 = vmatpush1.bf16.msra.mxu0 %v2950
        %3061 = vmatprep.subr.bf16.mxu0 %v2953
        %3062 = vmatpush1.bf16.msra.mxu0 %v2952
        %3063 = vmatprep.subr.bf16.mxu0 %v2955
        %3064 = vmatpush1.bf16.msra.mxu0 %v2954
        %3065 = vmatprep.subr.bf16.mxu0 %v2957
        %3066 = vmatpush1.bf16.msra.mxu0 %v2956
        %3067 = vmatprep.subr.bf16.mxu0 %v2959
        %3068 = vmatpush1.bf16.msra.mxu0 %v2958
        %3069 = vmatprep.subr.bf16.mxu0 %v2961
        %3070 = vmatpush1.bf16.msra.mxu0 %v2960
        %3071 = vmatprep.subr.bf16.mxu0 %v2963
        %3072 = vmatpush1.bf16.msra.mxu0 %v2962
        %3073 = vmatprep.subr.bf16.mxu0 %v2965
        %3074 = vmatpush1.bf16.msra.mxu0 %v2964
        %3075 = vmatprep.subr.bf16.mxu0 %v2967
        %3076 = vmatpush1.bf16.msra.mxu0 %v2966
        %3077 = vmatprep.subr.bf16.mxu0 %v2969
        %3078 = vmatpush1.bf16.msra.mxu0 %v2968
        %3079 = vmatprep.subr.bf16.mxu0 0
        %3080 = vmatpush1.bf16.msra.mxu0 0
        %3081 = vmatprep.mubr.bf16.mxu0 %v3002
        %3082 = vmatmul.mubr.bf16.gmra.mrb[0].mxu0 %v2776
        %v3083 = vpop.f32.mrb[0].mxu0
        %v3084 = vadd.f32 %v2843, %v3083
        %v3085 = vpop.f32.mrb[0].mxu0
        %v3086 = vadd.f32 %v2847, %v3085
        %v3087 = vpop.f32.mrb[0].mxu0
        %v3088 = vadd.f32 %v2843, %v3087
        %v3089 = vpop.f32.mrb[0].mxu0
        %v3090 = vadd.f32 %v2847, %v3089
        %3091 = vmatprep.mubr.bf16.mxu0 %v3005
        %3092 = vmatmul.mubr.bf16.gmra.mrb[0].mxu0 %v2778
        %v3093 = vpop.f32.mrb[0].mxu0
        %v3094 = vadd.f32 %v2843, %v3093
        %v3095 = vpop.f32.mrb[0].mxu0
        %v3096 = vadd.f32 %v2847, %v3095
        %v3097 = vpop.f32.mrb[0].mxu0
        %v3098 = vadd.f32 %v2843, %v3097
        %v3099 = vpop.f32.mrb[0].mxu0
        %v3100 = vadd.f32 %v2847, %v3099
        %3101 = vmatprep.mubr.bf16.mxu0 %v3008
        %3102 = vmatmul.mubr.bf16.gmra.mrb[0].mxu0 %v2780
        %v3103 = vpop.f32.mrb[0].mxu0
        %v3104 = vadd.f32 %v2843, %v3103
        %v3105 = vpop.f32.mrb[0].mxu0
        %v3106 = vadd.f32 %v2847, %v3105
        %v3107 = vpop.f32.mrb[0].mxu0
        %v3108 = vadd.f32 %v2843, %v3107
        %v3109 = vpop.f32.mrb[0].mxu0
        %v3110 = vadd.f32 %v2847, %v3109
        %3111 = vmatprep.mubr.bf16.mxu0 %v3011
        %3112 = vmatmul.mubr.bf16.gmra.mrb[0].mxu0 %v2782
        %v3113 = vpop.f32.mrb[0].mxu0
        %v3114 = vadd.f32 %v2843, %v3113
        %v3115 = vpop.f32.mrb[0].mxu0
        %v3116 = vadd.f32 %v2847, %v3115
        %v3117 = vpop.f32.mrb[0].mxu0
        %v3118 = vadd.f32 %v2843, %v3117
        %v3119 = vpop.f32.mrb[0].mxu0
        %v3120 = vadd.f32 %v2847, %v3119
        %3121 = vmatprep.mubr.bf16.mxu0 %v3014
        %3122 = vmatmul.mubr.bf16.gmra.mrb[0].mxu0 %v2784
        %v3123 = vpop.f32.mrb[0].mxu0
        %v3124 = vadd.f32 %v2843, %v3123
        %v3125 = vpop.f32.mrb[0].mxu0
        %v3126 = vadd.f32 %v2847, %v3125
        %v3127 = vpop.f32.mrb[0].mxu0
        %v3128 = vadd.f32 %v2843, %v3127
        %v3129 = vpop.f32.mrb[0].mxu0
        %v3130 = vadd.f32 %v2847, %v3129
        %3131 = vmatprep.mubr.bf16.mxu0 %v3017
        %3132 = vmatmul.mubr.bf16.gmra.mrb[0].mxu0 %v2786
        %v3133 = vpop.f32.mrb[0].mxu0
        %v3134 = vadd.f32 %v2843, %v3133
        %v3135 = vpop.f32.mrb[0].mxu0
        %v3136 = vadd.f32 %v2847, %v3135
        %v3137 = vpop.f32.mrb[0].mxu0
        %v3138 = vadd.f32 %v2843, %v3137
        %v3139 = vpop.f32.mrb[0].mxu0
        %v3140 = vadd.f32 %v2847, %v3139
        %3141 = vmatprep.mubr.bf16.mxu0 %v3020
        %3142 = vmatmul.mubr.bf16.gmra.mrb[0].mxu0 %v2788
        %v3143 = vpop.f32.mrb[0].mxu0
        %v3144 = vadd.f32 %v2843, %v3143
        %v3145 = vpop.f32.mrb[0].mxu0
        %v3146 = vadd.f32 %v2847, %v3145
        %v3147 = vpop.f32.mrb[0].mxu0
        %v3148 = vadd.f32 %v2843, %v3147
        %v3149 = vpop.f32.mrb[0].mxu0
        %v3150 = vadd.f32 %v2847, %v3149
        %3151 = vmatprep.mubr.bf16.mxu0 %v3023
        %3152 = vmatmul.mubr.bf16.gmra.mrb[0].mxu0 %v2790
        %v3153 = vpop.f32.mrb[0].mxu0
        %v3154 = vadd.f32 %v2843, %v3153
        %v3155 = vpop.f32.mrb[0].mxu0
        %v3156 = vadd.f32 %v2847, %v3155
        %v3157 = vpop.f32.mrb[0].mxu0
        %v3158 = vadd.f32 %v2843, %v3157
        %v3159 = vpop.f32.mrb[0].mxu0
        %v3160 = vadd.f32 %v2847, %v3159
        %3161 = vmatprep.mubr.bf16.mxu0 %v3026
        %3162 = vmatmul.mubr.bf16.gmra.mrb[0].mxu0 %v2792
        %v3163 = vpop.f32.mrb[0].mxu0
        %v3164 = vadd.f32 %v2843, %v3163
        %v3165 = vpop.f32.mrb[0].mxu0
        %v3166 = vadd.f32 %v2847, %v3165
        %v3167 = vpop.f32.mrb[0].mxu0
        %v3168 = vadd.f32 %v2843, %v3167
        %v3169 = vpop.f32.mrb[0].mxu0
        %v3170 = vadd.f32 %v2847, %v3169
        %3171 = vmatprep.mubr.bf16.mxu0 %v3029
        %3172 = vmatmul.mubr.bf16.gmra.mrb[0].mxu0 %v2794
        %v3173 = vpop.f32.mrb[0].mxu0
        %v3174 = vadd.f32 %v2843, %v3173
        %v3175 = vpop.f32.mrb[0].mxu0
        %v3176 = vadd.f32 %v2847, %v3175
        %v3177 = vpop.f32.mrb[0].mxu0
        %v3178 = vadd.f32 %v2843, %v3177
        %v3179 = vpop.f32.mrb[0].mxu0
        %v3180 = vadd.f32 %v2847, %v3179
        %3181 = vmatprep.mubr.bf16.mxu0 %v3032
        %3182 = vmatmul.mubr.bf16.gmra.mrb[0].mxu0 %v2796
        %v3183 = vpop.f32.mrb[0].mxu0
        %v3184 = vadd.f32 %v2843, %v3183
        %v3185 = vpop.f32.mrb[0].mxu0
        %v3186 = vadd.f32 %v2847, %v3185
        %v3187 = vpop.f32.mrb[0].mxu0
        %v3188 = vadd.f32 %v2843, %v3187
        %v3189 = vpop.f32.mrb[0].mxu0
        %v3190 = vadd.f32 %v2847, %v3189
        %3191 = vmatprep.mubr.bf16.mxu0 %v3035
        %3192 = vmatmul.mubr.bf16.gmra.mrb[0].mxu0 %v2798
        %v3193 = vpop.f32.mrb[0].mxu0
        %v3194 = vadd.f32 %v2843, %v3193
        %v3195 = vpop.f32.mrb[0].mxu0
        %v3196 = vadd.f32 %v2847, %v3195
        %v3197 = vpop.f32.mrb[0].mxu0
        %v3198 = vadd.f32 %v2843, %v3197
        %v3199 = vpop.f32.mrb[0].mxu0
        %v3200 = vadd.f32 %v2847, %v3199
        %3201 = vmatprep.mubr.bf16.mxu0 %v3038
        %3202 = vmatmul.mubr.bf16.gmra.mrb[0].mxu0 %v2800
        %v3203 = vpop.f32.mrb[0].mxu0
        %v3204 = vadd.f32 %v2843, %v3203
        %v3205 = vpop.f32.mrb[0].mxu0
        %v3206 = vadd.f32 %v2847, %v3205
        %v3207 = vpop.f32.mrb[0].mxu0
        %v3208 = vadd.f32 %v2843, %v3207
        %v3209 = vpop.f32.mrb[0].mxu0
        %v3210 = vadd.f32 %v2847, %v3209
        %3211 = vmatprep.mubr.bf16.mxu0 %v3041
        %3212 = vmatmul.mubr.bf16.gmra.mrb[0].mxu0 %v2802
        %v3213 = vpop.f32.mrb[0].mxu0
        %v3214 = vadd.f32 %v2843, %v3213
        %v3215 = vpop.f32.mrb[0].mxu0
        %v3216 = vadd.f32 %v2847, %v3215
        %v3217 = vpop.f32.mrb[0].mxu0
        %v3218 = vadd.f32 %v2843, %v3217
        %v3219 = vpop.f32.mrb[0].mxu0
        %v3220 = vadd.f32 %v2847, %v3219
        %3221 = vmatprep.mubr.bf16.mxu0 %v3044
        %3222 = vmatmul.mubr.bf16.gmra.mrb[0].mxu0 %v2804
        %v3223 = vpop.f32.mrb[0].mxu0
        %v3224 = vadd.f32 %v2843, %v3223
        %v3225 = vpop.f32.mrb[0].mxu0
        %v3226 = vadd.f32 %v2847, %v3225
        %v3227 = vpop.f32.mrb[0].mxu0
        %v3228 = vadd.f32 %v2843, %v3227
        %v3229 = vpop.f32.mrb[0].mxu0
        %v3230 = vadd.f32 %v2847, %v3229
        %3231 = vmatprep.mubr.bf16.mxu0 %v3047
        %3232 = vmatmul.mubr.bf16.gmra.mrb[0].mxu0 %v2806
        %v3233 = vpop.f32.mrb[0].mxu0
        %v3234 = vadd.f32 %v2843, %v3233
        %v3235 = vpop.f32.mrb[0].mxu0
        %v3236 = vadd.f32 %v2847, %v3235
        %v3237 = vpop.f32.mrb[0].mxu0
        %v3238 = vadd.f32 %v2843, %v3237
        %v3239 = vpop.f32.mrb[0].mxu0
        %v3240 = vadd.f32 %v2847, %v3239
        %3241 = vdwg.mxu0
        %3242 = vst [vmem:[%s334] sm:$0xff] %v3084
        %3243 = vst.msk [vmem:[%s334 + $0x8] sm:$0xff] %vm3000, %v3086
        %3244 = vst [vmem:[%s334 + $0x10] sm:$0xff] %v3088
        %3245 = vst.msk [vmem:[%s334 + $0x18] sm:$0xff] %vm3000, %v3090
        %3246 = vst [vmem:[%s334 + $0x20] sm:$0xff] %v3094
        %3247 = vst.msk [vmem:[%s334 + $0x28] sm:$0xff] %vm3000, %v3096
        %3248 = vst [vmem:[%s334 + $0x30] sm:$0xff] %v3098
        %3249 = vst.msk [vmem:[%s334 + $0x38] sm:$0xff] %vm3000, %v3100
        %3250 = vst [vmem:[%s334 + $0x40] sm:$0xff] %v3104
        %3251 = vst.msk [vmem:[%s334 + $0x48] sm:$0xff] %vm3000, %v3106
        %3252 = vst [vmem:[%s334 + $0x50] sm:$0xff] %v3108
        %3253 = vst.msk [vmem:[%s334 + $0x58] sm:$0xff] %vm3000, %v3110
        %3254 = vst [vmem:[%s334 + $0x60] sm:$0xff] %v3114
        %3255 = vst.msk [vmem:[%s334 + $0x68] sm:$0xff] %vm3000, %v3116
        %3256 = vst [vmem:[%s334 + $0x70] sm:$0xff] %v3118
        %3257 = vst.msk [vmem:[%s334 + $0x78] sm:$0xff] %vm3000, %v3120
        %3258 = vst [vmem:[%s334 + $0x80] sm:$0xff] %v3124
        %3259 = vst.msk [vmem:[%s334 + $0x88] sm:$0xff] %vm3000, %v3126
        %3260 = vst [vmem:[%s334 + $0x90] sm:$0xff] %v3128
        %3261 = vst.msk [vmem:[%s334 + $0x98] sm:$0xff] %vm3000, %v3130
        %3262 = vst [vmem:[%s334 + $0xa0] sm:$0xff] %v3134
        %3263 = vst.msk [vmem:[%s334 + $0xa8] sm:$0xff] %vm3000, %v3136
        %3264 = vst [vmem:[%s334 + $0xb0] sm:$0xff] %v3138
        %3265 = vst.msk [vmem:[%s334 + $0xb8] sm:$0xff] %vm3000, %v3140
        %3266 = vst [vmem:[%s334 + $0xc0] sm:$0xff] %v3144
        %3267 = vst.msk [vmem:[%s334 + $0xc8] sm:$0xff] %vm3000, %v3146
        %3268 = vst [vmem:[%s334 + $0xd0] sm:$0xff] %v3148
        %3269 = vst.msk [vmem:[%s334 + $0xd8] sm:$0xff] %vm3000, %v3150
        %3270 = vst [vmem:[%s334 + $0xe0] sm:$0xff] %v3154
        %3271 = vst.msk [vmem:[%s334 + $0xe8] sm:$0xff] %vm3000, %v3156
        %3272 = vst [vmem:[%s334 + $0xf0] sm:$0xff] %v3158
        %3273 = vst.msk [vmem:[%s334 + $0xf8] sm:$0xff] %vm3000, %v3160
        %3274 = vst [vmem:[%s334 + $0x100] sm:$0xff] %v3164
        %3275 = vst.msk [vmem:[%s334 + $0x108] sm:$0xff] %vm3000, %v3166
        %3276 = vst [vmem:[%s334 + $0x110] sm:$0xff] %v3168
        %3277 = vst.msk [vmem:[%s334 + $0x118] sm:$0xff] %vm3000, %v3170
        %3278 = vst [vmem:[%s334 + $0x120] sm:$0xff] %v3174
        %3279 = vst.msk [vmem:[%s334 + $0x128] sm:$0xff] %vm3000, %v3176
        %3280 = vst [vmem:[%s334 + $0x130] sm:$0xff] %v3178
        %3281 = vst.msk [vmem:[%s334 + $0x138] sm:$0xff] %vm3000, %v3180
        %3282 = vst [vmem:[%s334 + $0x140] sm:$0xff] %v3184
        %3283 = vst.msk [vmem:[%s334 + $0x148] sm:$0xff] %vm3000, %v3186
        %3284 = vst [vmem:[%s334 + $0x150] sm:$0xff] %v3188
        %3285 = vst.msk [vmem:[%s334 + $0x158] sm:$0xff] %vm3000, %v3190
        %3286 = vst [vmem:[%s334 + $0x160] sm:$0xff] %v3194
        %3287 = vst.msk [vmem:[%s334 + $0x168] sm:$0xff] %vm3000, %v3196
        %3288 = vst [vmem:[%s334 + $0x170] sm:$0xff] %v3198
        %3289 = vst.msk [vmem:[%s334 + $0x178] sm:$0xff] %vm3000, %v3200
        %3290 = vst [vmem:[%s334 + $0x180] sm:$0xff] %v3204
        %3291 = vst.msk [vmem:[%s334 + $0x188] sm:$0xff] %vm3000, %v3206
        %3292 = vst [vmem:[%s334 + $0x190] sm:$0xff] %v3208
        %3293 = vst.msk [vmem:[%s334 + $0x198] sm:$0xff] %vm3000, %v3210
        %3294 = vst [vmem:[%s334 + $0x1a0] sm:$0xff] %v3214
        %3295 = vst.msk [vmem:[%s334 + $0x1a8] sm:$0xff] %vm3000, %v3216
        %3296 = vst [vmem:[%s334 + $0x1b0] sm:$0xff] %v3218
        %3297 = vst.msk [vmem:[%s334 + $0x1b8] sm:$0xff] %vm3000, %v3220
        %3298 = vst [vmem:[%s334 + $0x1c0] sm:$0xff] %v3224
        %3299 = vst.msk [vmem:[%s334 + $0x1c8] sm:$0xff] %vm3000, %v3226
        %3300 = vst [vmem:[%s334 + $0x1d0] sm:$0xff] %v3228
        %3301 = vst.msk [vmem:[%s334 + $0x1d8] sm:$0xff] %vm3000, %v3230
        %3302 = vst [vmem:[%s334 + $0x1e0] sm:$0xff] %v3234
        %3303 = vst.msk [vmem:[%s334 + $0x1e8] sm:$0xff] %vm3000, %v3236
        %3304 = vst [vmem:[%s334 + $0x1f0] sm:$0xff] %v3238
        %3305 = vst.msk [vmem:[%s334 + $0x1f8] sm:$0xff] %vm3000, %v3240
        %v3306 = vlaneseq
        %v3307 = vshrl.u32 %v3306, 7
        %v3308 = vadd.s32 %v3307, 8
        %v3309 = vadd.s32 %v3307, 16
        %v3310 = vadd.s32 %v3307, 24
        %v3311 = vadd.s32 %v3307, 32
        %v3312 = vadd.s32 %v3307, 40
        %v3313 = vadd.s32 %v3307, 48
        %v3314 = vadd.s32 %v3307, 56
        %v3315 = vadd.s32 %v3307, 64
        %v3316 = vadd.s32 %v3307, 72
        %v3317 = vadd.s32 %v3307, 80
        %v3318 = vadd.s32 %v3307, 88
        %v3319 = vadd.s32 %v3307, 96
        %v3320 = vadd.s32 %v3307, 104
        %v3321 = vadd.s32 %v3307, 112
        %v3322 = vadd.s32 %v3307, 120
        %v3323 = vadd.s32 %v3307, 128
        %v3324 = vadd.s32 %v3307, 136
        %v3325 = vadd.s32 %v3307, 144
        %v3326 = vadd.s32 %v3307, 152
        %v3327 = vadd.s32 %v3307, 160
        %v3328 = vadd.s32 %v3307, 168
        %v3329 = vadd.s32 %v3307, 176
        %v3330 = vadd.s32 %v3307, 184
        %v3331 = vadd.s32 %v3307, 192
        %v3332 = vadd.s32 %v3307, 200
        %v3333 = vadd.s32 %v3307, 208
        %v3334 = vadd.s32 %v3307, 216
        %v3335 = vadd.s32 %v3307, 224
        %v3336 = vadd.s32 %v3307, 232
        %v3337 = vadd.s32 %v3307, 240
        %v3338 = vadd.s32 %v3307, 248
        %s3339 = smul.u32 %s22, 256
        %v3340 = vstv %s3339
        %v3341 = vadd.s32 %v3307, %v3340
        %v3342 = vadd.s32 %v3308, %v3340
        %v3343 = vadd.s32 %v3309, %v3340
        %v3344 = vadd.s32 %v3310, %v3340
        %v3345 = vadd.s32 %v3311, %v3340
        %v3346 = vadd.s32 %v3312, %v3340
        %v3347 = vadd.s32 %v3313, %v3340
        %v3348 = vadd.s32 %v3314, %v3340
        %v3349 = vadd.s32 %v3315, %v3340
        %v3350 = vadd.s32 %v3316, %v3340
        %v3351 = vadd.s32 %v3317, %v3340
        %v3352 = vadd.s32 %v3318, %v3340
        %v3353 = vadd.s32 %v3319, %v3340
        %v3354 = vadd.s32 %v3320, %v3340
        %v3355 = vadd.s32 %v3321, %v3340
        %v3356 = vadd.s32 %v3322, %v3340
        %v3357 = vadd.s32 %v3323, %v3340
        %v3358 = vadd.s32 %v3324, %v3340
        %v3359 = vadd.s32 %v3325, %v3340
        %v3360 = vadd.s32 %v3326, %v3340
        %v3361 = vadd.s32 %v3327, %v3340
        %v3362 = vadd.s32 %v3328, %v3340
        %v3363 = vadd.s32 %v3329, %v3340
        %v3364 = vadd.s32 %v3330, %v3340
        %v3365 = vadd.s32 %v3331, %v3340
        %v3366 = vadd.s32 %v3332, %v3340
        %v3367 = vadd.s32 %v3333, %v3340
        %v3368 = vadd.s32 %v3334, %v3340
        %v3369 = vadd.s32 %v3335, %v3340
        %v3370 = vadd.s32 %v3336, %v3340
        %v3371 = vadd.s32 %v3337, %v3340
        %v3372 = vadd.s32 %v3338, %v3340
        %vm3373 = vcmp.lt.s32.totalorder %v3341, 300
        %vm3374 = vcmp.lt.s32.totalorder %v3342, 300
        %vm3375 = vcmp.lt.s32.totalorder %v3343, 300
        %vm3376 = vcmp.lt.s32.totalorder %v3344, 300
        %vm3377 = vcmp.lt.s32.totalorder %v3345, 300
        %vm3378 = vcmp.lt.s32.totalorder %v3346, 300
        %vm3379 = vcmp.lt.s32.totalorder %v3347, 300
        %vm3380 = vcmp.lt.s32.totalorder %v3348, 300
        %vm3381 = vcmp.lt.s32.totalorder %v3349, 300
        %vm3382 = vcmp.lt.s32.totalorder %v3350, 300
        %vm3383 = vcmp.lt.s32.totalorder %v3351, 300
        %vm3384 = vcmp.lt.s32.totalorder %v3352, 300
        %vm3385 = vcmp.lt.s32.totalorder %v3353, 300
        %vm3386 = vcmp.lt.s32.totalorder %v3354, 300
        %vm3387 = vcmp.lt.s32.totalorder %v3355, 300
        %vm3388 = vcmp.lt.s32.totalorder %v3356, 300
        %vm3389 = vcmp.lt.s32.totalorder %v3357, 300
        %vm3390 = vcmp.lt.s32.totalorder %v3358, 300
        %vm3391 = vcmp.lt.s32.totalorder %v3359, 300
        %vm3392 = vcmp.lt.s32.totalorder %v3360, 300
        %vm3393 = vcmp.lt.s32.totalorder %v3361, 300
        %vm3394 = vcmp.lt.s32.totalorder %v3362, 300
        %vm3395 = vcmp.lt.s32.totalorder %v3363, 300
        %vm3396 = vcmp.lt.s32.totalorder %v3364, 300
        %vm3397 = vcmp.lt.s32.totalorder %v3365, 300
        %vm3398 = vcmp.lt.s32.totalorder %v3366, 300
        %vm3399 = vcmp.lt.s32.totalorder %v3367, 300
        %vm3400 = vcmp.lt.s32.totalorder %v3368, 300
        %vm3401 = vcmp.lt.s32.totalorder %v3369, 300
        %vm3402 = vcmp.lt.s32.totalorder %v3370, 300
        %vm3403 = vcmp.lt.s32.totalorder %v3371, 300
        %vm3404 = vcmp.lt.s32.totalorder %v3372, 300
        %v3405 = vsel %vm3373, 1, 0
        %v3406 = vsel %vm3374, 1, 0
        %v3407 = vsel %vm3375, 1, 0
        %v3408 = vsel %vm3376, 1, 0
        %v3409 = vsel %vm3377, 1, 0
        %v3410 = vsel %vm3378, 1, 0
        %v3411 = vsel %vm3379, 1, 0
        %v3412 = vsel %vm3380, 1, 0
        %v3413 = vsel %vm3381, 1, 0
        %v3414 = vsel %vm3382, 1, 0
        %v3415 = vsel %vm3383, 1, 0
        %v3416 = vsel %vm3384, 1, 0
        %v3417 = vsel %vm3385, 1, 0
        %v3418 = vsel %vm3386, 1, 0
        %v3419 = vsel %vm3387, 1, 0
        %v3420 = vsel %vm3388, 1, 0
        %v3421 = vsel %vm3389, 1, 0
        %v3422 = vsel %vm3390, 1, 0
        %v3423 = vsel %vm3391, 1, 0
        %v3424 = vsel %vm3392, 1, 0
        %v3425 = vsel %vm3393, 1, 0
        %v3426 = vsel %vm3394, 1, 0
        %v3427 = vsel %vm3395, 1, 0
        %v3428 = vsel %vm3396, 1, 0
        %v3429 = vsel %vm3397, 1, 0
        %v3430 = vsel %vm3398, 1, 0
        %v3431 = vsel %vm3399, 1, 0
        %v3432 = vsel %vm3400, 1, 0
        %v3433 = vsel %vm3401, 1, 0
        %v3434 = vsel %vm3402, 1, 0
        %v3435 = vsel %vm3403, 1, 0
        %v3436 = vsel %vm3404, 1, 0
        %v3437 = vcvt.s32.f32 %v3405
        %v3438 = vcvt.s32.f32 %v3406
        %v3439 = vcvt.s32.f32 %v3407
        %v3440 = vcvt.s32.f32 %v3408
        %v3441 = vcvt.s32.f32 %v3409
        %v3442 = vcvt.s32.f32 %v3410
        %v3443 = vcvt.s32.f32 %v3411
        %v3444 = vcvt.s32.f32 %v3412
        %v3445 = vcvt.s32.f32 %v3413
        %v3446 = vcvt.s32.f32 %v3414
        %v3447 = vcvt.s32.f32 %v3415
        %v3448 = vcvt.s32.f32 %v3416
        %v3449 = vcvt.s32.f32 %v3417
        %v3450 = vcvt.s32.f32 %v3418
        %v3451 = vcvt.s32.f32 %v3419
        %v3452 = vcvt.s32.f32 %v3420
        %v3453 = vcvt.s32.f32 %v3421
        %v3454 = vcvt.s32.f32 %v3422
        %v3455 = vcvt.s32.f32 %v3423
        %v3456 = vcvt.s32.f32 %v3424
        %v3457 = vcvt.s32.f32 %v3425
        %v3458 = vcvt.s32.f32 %v3426
        %v3459 = vcvt.s32.f32 %v3427
        %v3460 = vcvt.s32.f32 %v3428
        %v3461 = vcvt.s32.f32 %v3429
        %v3462 = vcvt.s32.f32 %v3430
        %v3463 = vcvt.s32.f32 %v3431
        %v3464 = vcvt.s32.f32 %v3432
        %v3465 = vcvt.s32.f32 %v3433
        %v3466 = vcvt.s32.f32 %v3434
        %v3467 = vcvt.s32.f32 %v3435
        %v3468 = vcvt.s32.f32 %v3436
        %v3469 = vmul.f32 %v3084, %v3437
        %v3470 = vmul.f32 %v3086, %v3437
        %v3471 = vmul.f32 %v3088, %v3438
        %v3472 = vmul.f32 %v3090, %v3438
        %v3473 = vmul.f32 %v3094, %v3439
        %v3474 = vmul.f32 %v3096, %v3439
        %v3475 = vmul.f32 %v3098, %v3440
        %v3476 = vmul.f32 %v3100, %v3440
        %v3477 = vmul.f32 %v3104, %v3441
        %v3478 = vmul.f32 %v3106, %v3441
        %v3479 = vmul.f32 %v3108, %v3442
        %v3480 = vmul.f32 %v3110, %v3442
        %v3481 = vmul.f32 %v3114, %v3443
        %v3482 = vmul.f32 %v3116, %v3443
        %v3483 = vmul.f32 %v3118, %v3444
        %v3484 = vmul.f32 %v3120, %v3444
        %v3485 = vmul.f32 %v3124, %v3445
        %v3486 = vmul.f32 %v3126, %v3445
        %v3487 = vmul.f32 %v3128, %v3446
        %v3488 = vmul.f32 %v3130, %v3446
        %v3489 = vmul.f32 %v3134, %v3447
        %v3490 = vmul.f32 %v3136, %v3447
        %v3491 = vmul.f32 %v3138, %v3448
        %v3492 = vmul.f32 %v3140, %v3448
        %v3493 = vmul.f32 %v3144, %v3449
        %v3494 = vmul.f32 %v3146, %v3449
        %v3495 = vmul.f32 %v3148, %v3450
        %v3496 = vmul.f32 %v3150, %v3450
        %v3497 = vmul.f32 %v3154, %v3451
        %v3498 = vmul.f32 %v3156, %v3451
        %v3499 = vmul.f32 %v3158, %v3452
        %v3500 = vmul.f32 %v3160, %v3452
        %v3501 = vmul.f32 %v3164, %v3453
        %v3502 = vmul.f32 %v3166, %v3453
        %v3503 = vmul.f32 %v3168, %v3454
        %v3504 = vmul.f32 %v3170, %v3454
        %v3505 = vmul.f32 %v3174, %v3455
        %v3506 = vmul.f32 %v3176, %v3455
        %v3507 = vmul.f32 %v3178, %v3456
        %v3508 = vmul.f32 %v3180, %v3456
        %v3509 = vmul.f32 %v3184, %v3457
        %v3510 = vmul.f32 %v3186, %v3457
        %v3511 = vmul.f32 %v3188, %v3458
        %v3512 = vmul.f32 %v3190, %v3458
        %v3513 = vmul.f32 %v3194, %v3459
        %v3514 = vmul.f32 %v3196, %v3459
        %v3515 = vmul.f32 %v3198, %v3460
        %v3516 = vmul.f32 %v3200, %v3460
        %v3517 = vmul.f32 %v3204, %v3461
        %v3518 = vmul.f32 %v3206, %v3461
        %v3519 = vmul.f32 %v3208, %v3462
        %v3520 = vmul.f32 %v3210, %v3462
        %v3521 = vmul.f32 %v3214, %v3463
        %v3522 = vmul.f32 %v3216, %v3463
        %v3523 = vmul.f32 %v3218, %v3464
        %v3524 = vmul.f32 %v3220, %v3464
        %v3525 = vmul.f32 %v3224, %v3465
        %v3526 = vmul.f32 %v3226, %v3465
        %v3527 = vmul.f32 %v3228, %v3466
        %v3528 = vmul.f32 %v3230, %v3466
        %v3529 = vmul.f32 %v3234, %v3467
        %v3530 = vmul.f32 %v3236, %v3467
        %v3531 = vmul.f32 %v3238, %v3468
        %v3532 = vmul.f32 %v3240, %v3468
        %v3533 = vld [vmem:[#allocation2] sm:$0x3]
        %v3534 = vadd.f32 %v3469, %v3471
        %v3535 = vadd.f32 %v3534, %v3473
        %v3536 = vadd.f32 %v3535, %v3475
        %v3537 = vadd.f32 %v3536, %v3477
        %v3538 = vadd.f32 %v3537, %v3479
        %v3539 = vadd.f32 %v3538, %v3481
        %v3540 = vadd.f32 %v3539, %v3483
        %v3541 = vadd.f32 %v3540, %v3485
        %v3542 = vadd.f32 %v3541, %v3487
        %v3543 = vadd.f32 %v3542, %v3489
        %v3544 = vadd.f32 %v3543, %v3491
        %v3545 = vadd.f32 %v3544, %v3493
        %v3546 = vadd.f32 %v3545, %v3495
        %v3547 = vadd.f32 %v3546, %v3497
        %v3548 = vadd.f32 %v3547, %v3499
        %v3549 = vadd.f32 %v3548, %v3501
        %v3550 = vadd.f32 %v3549, %v3503
        %v3551 = vadd.f32 %v3550, %v3505
        %v3552 = vadd.f32 %v3551, %v3507
        %v3553 = vadd.f32 %v3552, %v3509
        %v3554 = vadd.f32 %v3553, %v3511
        %v3555 = vadd.f32 %v3554, %v3513
        %v3556 = vadd.f32 %v3555, %v3515
        %v3557 = vadd.f32 %v3556, %v3517
        %v3558 = vadd.f32 %v3557, %v3519
        %v3559 = vadd.f32 %v3558, %v3521
        %v3560 = vadd.f32 %v3559, %v3523
        %v3561 = vadd.f32 %v3560, %v3525
        %v3562 = vadd.f32 %v3561, %v3527
        %v3563 = vadd.f32 %v3562, %v3529
        %v3564 = vadd.f32 %v3563, %v3531
        %v3565 = vrot.slane %v3564, 4
        %v3566 = vadd.f32 %v3564, %v3565
        %v3567 = vrot.slane %v3566, 2
        %v3568 = vadd.f32 %v3566, %v3567
        %v3569 = vrot.slane %v3568, 1
        %v3570 = vadd.f32 %v3568, %v3569
        %v3571 = vsel %vm3000, %v3470, 0.0
        %v3572 = vsel %vm3000, %v3472, 0.0
        %v3573 = vadd.f32 %v3571, %v3572
        %v3574 = vsel %vm3000, %v3474, 0.0
        %v3575 = vadd.f32 %v3573, %v3574
        %v3576 = vsel %vm3000, %v3476, 0.0
        %v3577 = vadd.f32 %v3575, %v3576
        %v3578 = vsel %vm3000, %v3478, 0.0
        %v3579 = vadd.f32 %v3577, %v3578
        %v3580 = vsel %vm3000, %v3480, 0.0
        %v3581 = vadd.f32 %v3579, %v3580
        %v3582 = vsel %vm3000, %v3482, 0.0
        %v3583 = vadd.f32 %v3581, %v3582
        %v3584 = vsel %vm3000, %v3484, 0.0
        %v3585 = vadd.f32 %v3583, %v3584
        %v3586 = vsel %vm3000, %v3486, 0.0
        %v3587 = vadd.f32 %v3585, %v3586
        %v3588 = vsel %vm3000, %v3488, 0.0
        %v3589 = vadd.f32 %v3587, %v3588
        %v3590 = vsel %vm3000, %v3490, 0.0
        %v3591 = vadd.f32 %v3589, %v3590
        %v3592 = vsel %vm3000, %v3492, 0.0
        %v3593 = vadd.f32 %v3591, %v3592
        %v3594 = vsel %vm3000, %v3494, 0.0
        %v3595 = vadd.f32 %v3593, %v3594
        %v3596 = vsel %vm3000, %v3496, 0.0
        %v3597 = vadd.f32 %v3595, %v3596
        %v3598 = vsel %vm3000, %v3498, 0.0
        %v3599 = vadd.f32 %v3597, %v3598
        %v3600 = vsel %vm3000, %v3500, 0.0
        %v3601 = vadd.f32 %v3599, %v3600
        %v3602 = vsel %vm3000, %v3502, 0.0
        %v3603 = vadd.f32 %v3601, %v3602
        %v3604 = vsel %vm3000, %v3504, 0.0
        %v3605 = vadd.f32 %v3603, %v3604
        %v3606 = vsel %vm3000, %v3506, 0.0
        %v3607 = vadd.f32 %v3605, %v3606
        %v3608 = vsel %vm3000, %v3508, 0.0
        %v3609 = vadd.f32 %v3607, %v3608
        %v3610 = vsel %vm3000, %v3510, 0.0
        %v3611 = vadd.f32 %v3609, %v3610
        %v3612 = vsel %vm3000, %v3512, 0.0
        %v3613 = vadd.f32 %v3611, %v3612
        %v3614 = vsel %vm3000, %v3514, 0.0
        %v3615 = vadd.f32 %v3613, %v3614
        %v3616 = vsel %vm3000, %v3516, 0.0
        %v3617 = vadd.f32 %v3615, %v3616
        %v3618 = vsel %vm3000, %v3518, 0.0
        %v3619 = vadd.f32 %v3617, %v3618
        %v3620 = vsel %vm3000, %v3520, 0.0
        %v3621 = vadd.f32 %v3619, %v3620
        %v3622 = vsel %vm3000, %v3522, 0.0
        %v3623 = vadd.f32 %v3621, %v3622
        %v3624 = vsel %vm3000, %v3524, 0.0
        %v3625 = vadd.f32 %v3623, %v3624
        %v3626 = vsel %vm3000, %v3526, 0.0
        %v3627 = vadd.f32 %v3625, %v3626
        %v3628 = vsel %vm3000, %v3528, 0.0
        %v3629 = vadd.f32 %v3627, %v3628
        %v3630 = vsel %vm3000, %v3530, 0.0
        %v3631 = vadd.f32 %v3629, %v3630
        %v3632 = vsel %vm3000, %v3532, 0.0
        %v3633 = vadd.f32 %v3631, %v3632
        %v3634 = vrot.slane %v3633, 4
        %v3635 = vadd.f32 %v3633, %v3634
        %v3636 = vrot.slane %v3635, 2
        %v3637 = vadd.f32 %v3635, %v3636
        %v3638 = vrot.slane %v3637, 1
        %v3639 = vadd.f32 %v3637, %v3638
        %v3642 = vcombine.low %v3570, %v3639
        %v3644 = vunpack.c.l.s4 1966171168
        %v3645 = vunpack.c.0.s8 %v3644
        %v3646 = vlaneseq
        %v3647 = vshrl.u32 %v3646, 7
        %v3648 = vsub.s32 %v3645, %v3647
        %v3649 = vrot.slane %v3642, %v3648
        %v3651 = vunpack.c.l.s4 1966171168
        %v3652 = vunpack.c.0.s8 %v3651
        %v3653 = vlaneseq
        %v3654 = vshrl.u32 %v3653, 7
        %v3655 = vsub.s32 %v3652, %v3654
        %v3656 = vrot.slane %v3649, %v3655
        %v3658 = vadd.f32 %v3533, %v3656
        %v3659 = vlaneseq
        %vm3660 = vcmp.ge.s32.totalorder %v3659, 0
        %vm3661 = vcmp.lt.s32.totalorder %v3659, 240
        %vm3662 = vmand %vm3660, %vm3661
        %3663 = vst.msk [vmem:[#allocation2] sm:$0x3] %vm3662, %v3658
        %v3664 = vld [vmem:[#allocation4] sm:$0x3]
        %v3665 = vmul.f32 %v3469, %v3469
        %v3666 = vmul.f32 %v3470, %v3470
        %v3667 = vmul.f32 %v3471, %v3471
        %v3668 = vmul.f32 %v3472, %v3472
        %v3669 = vmul.f32 %v3473, %v3473
        %v3670 = vmul.f32 %v3474, %v3474
        %v3671 = vmul.f32 %v3475, %v3475
        %v3672 = vmul.f32 %v3476, %v3476
        %v3673 = vmul.f32 %v3477, %v3477
        %v3674 = vmul.f32 %v3478, %v3478
        %v3675 = vmul.f32 %v3479, %v3479
        %v3676 = vmul.f32 %v3480, %v3480
        %v3677 = vmul.f32 %v3481, %v3481
        %v3678 = vmul.f32 %v3482, %v3482
        %v3679 = vmul.f32 %v3483, %v3483
        %v3680 = vmul.f32 %v3484, %v3484
        %v3681 = vmul.f32 %v3485, %v3485
        %v3682 = vmul.f32 %v3486, %v3486
        %v3683 = vmul.f32 %v3487, %v3487
        %v3684 = vmul.f32 %v3488, %v3488
        %v3685 = vmul.f32 %v3489, %v3489
        %v3686 = vmul.f32 %v3490, %v3490
        %v3687 = vmul.f32 %v3491, %v3491
        %v3688 = vmul.f32 %v3492, %v3492
        %v3689 = vmul.f32 %v3493, %v3493
        %v3690 = vmul.f32 %v3494, %v3494
        %v3691 = vmul.f32 %v3495, %v3495
        %v3692 = vmul.f32 %v3496, %v3496
        %v3693 = vmul.f32 %v3497, %v3497
        %v3694 = vmul.f32 %v3498, %v3498
        %v3695 = vmul.f32 %v3499, %v3499
        %v3696 = vmul.f32 %v3500, %v3500
        %v3697 = vmul.f32 %v3501, %v3501
        %v3698 = vmul.f32 %v3502, %v3502
        %v3699 = vmul.f32 %v3503, %v3503
        %v3700 = vmul.f32 %v3504, %v3504
        %v3701 = vmul.f32 %v3505, %v3505
        %v3702 = vmul.f32 %v3506, %v3506
        %v3703 = vmul.f32 %v3507, %v3507
        %v3704 = vmul.f32 %v3508, %v3508
        %v3705 = vmul.f32 %v3509, %v3509
        %v3706 = vmul.f32 %v3510, %v3510
        %v3707 = vmul.f32 %v3511, %v3511
        %v3708 = vmul.f32 %v3512, %v3512
        %v3709 = vmul.f32 %v3513, %v3513
        %v3710 = vmul.f32 %v3514, %v3514
        %v3711 = vmul.f32 %v3515, %v3515
        %v3712 = vmul.f32 %v3516, %v3516
        %v3713 = vmul.f32 %v3517, %v3517
        %v3714 = vmul.f32 %v3518, %v3518
        %v3715 = vmul.f32 %v3519, %v3519
        %v3716 = vmul.f32 %v3520, %v3520
        %v3717 = vmul.f32 %v3521, %v3521
        %v3718 = vmul.f32 %v3522, %v3522
        %v3719 = vmul.f32 %v3523, %v3523
        %v3720 = vmul.f32 %v3524, %v3524
        %v3721 = vmul.f32 %v3525, %v3525
        %v3722 = vmul.f32 %v3526, %v3526
        %v3723 = vmul.f32 %v3527, %v3527
        %v3724 = vmul.f32 %v3528, %v3528
        %v3725 = vmul.f32 %v3529, %v3529
        %v3726 = vmul.f32 %v3530, %v3530
        %v3727 = vmul.f32 %v3531, %v3531
        %v3728 = vmul.f32 %v3532, %v3532
        %v3729 = vadd.f32 %v3665, %v3667
        %v3730 = vadd.f32 %v3729, %v3669
        %v3731 = vadd.f32 %v3730, %v3671
        %v3732 = vadd.f32 %v3731, %v3673
        %v3733 = vadd.f32 %v3732, %v3675
        %v3734 = vadd.f32 %v3733, %v3677
        %v3735 = vadd.f32 %v3734, %v3679
        %v3736 = vadd.f32 %v3735, %v3681
        %v3737 = vadd.f32 %v3736, %v3683
        %v3738 = vadd.f32 %v3737, %v3685
        %v3739 = vadd.f32 %v3738, %v3687
        %v3740 = vadd.f32 %v3739, %v3689
        %v3741 = vadd.f32 %v3740, %v3691
        %v3742 = vadd.f32 %v3741, %v3693
        %v3743 = vadd.f32 %v3742, %v3695
        %v3744 = vadd.f32 %v3743, %v3697
        %v3745 = vadd.f32 %v3744, %v3699
        %v3746 = vadd.f32 %v3745, %v3701
        %v3747 = vadd.f32 %v3746, %v3703
        %v3748 = vadd.f32 %v3747, %v3705
        %v3749 = vadd.f32 %v3748, %v3707
        %v3750 = vadd.f32 %v3749, %v3709
        %v3751 = vadd.f32 %v3750, %v3711
        %v3752 = vadd.f32 %v3751, %v3713
        %v3753 = vadd.f32 %v3752, %v3715
        %v3754 = vadd.f32 %v3753, %v3717
        %v3755 = vadd.f32 %v3754, %v3719
        %v3756 = vadd.f32 %v3755, %v3721
        %v3757 = vadd.f32 %v3756, %v3723
        %v3758 = vadd.f32 %v3757, %v3725
        %v3759 = vadd.f32 %v3758, %v3727
        %v3760 = vrot.slane %v3759, 4
        %v3761 = vadd.f32 %v3759, %v3760
        %v3762 = vrot.slane %v3761, 2
        %v3763 = vadd.f32 %v3761, %v3762
        %v3764 = vrot.slane %v3763, 1
        %v3765 = vadd.f32 %v3763, %v3764
        %v3766 = vsel %vm3000, %v3666, 0.0
        %v3767 = vsel %vm3000, %v3668, 0.0
        %v3768 = vadd.f32 %v3766, %v3767
        %v3769 = vsel %vm3000, %v3670, 0.0
        %v3770 = vadd.f32 %v3768, %v3769
        %v3771 = vsel %vm3000, %v3672, 0.0
        %v3772 = vadd.f32 %v3770, %v3771
        %v3773 = vsel %vm3000, %v3674, 0.0
        %v3774 = vadd.f32 %v3772, %v3773
        %v3775 = vsel %vm3000, %v3676, 0.0
        %v3776 = vadd.f32 %v3774, %v3775
        %v3777 = vsel %vm3000, %v3678, 0.0
        %v3778 = vadd.f32 %v3776, %v3777
        %v3779 = vsel %vm3000, %v3680, 0.0
        %v3780 = vadd.f32 %v3778, %v3779
        %v3781 = vsel %vm3000, %v3682, 0.0
        %v3782 = vadd.f32 %v3780, %v3781
        %v3783 = vsel %vm3000, %v3684, 0.0
        %v3784 = vadd.f32 %v3782, %v3783
        %v3785 = vsel %vm3000, %v3686, 0.0
        %v3786 = vadd.f32 %v3784, %v3785
        %v3787 = vsel %vm3000, %v3688, 0.0
        %v3788 = vadd.f32 %v3786, %v3787
        %v3789 = vsel %vm3000, %v3690, 0.0
        %v3790 = vadd.f32 %v3788, %v3789
        %v3791 = vsel %vm3000, %v3692, 0.0
        %v3792 = vadd.f32 %v3790, %v3791
        %v3793 = vsel %vm3000, %v3694, 0.0
        %v3794 = vadd.f32 %v3792, %v3793
        %v3795 = vsel %vm3000, %v3696, 0.0
        %v3796 = vadd.f32 %v3794, %v3795
        %v3797 = vsel %vm3000, %v3698, 0.0
        %v3798 = vadd.f32 %v3796, %v3797
        %v3799 = vsel %vm3000, %v3700, 0.0
        %v3800 = vadd.f32 %v3798, %v3799
        %v3801 = vsel %vm3000, %v3702, 0.0
        %v3802 = vadd.f32 %v3800, %v3801
        %v3803 = vsel %vm3000, %v3704, 0.0
        %v3804 = vadd.f32 %v3802, %v3803
        %v3805 = vsel %vm3000, %v3706, 0.0
        %v3806 = vadd.f32 %v3804, %v3805
        %v3807 = vsel %vm3000, %v3708, 0.0
        %v3808 = vadd.f32 %v3806, %v3807
        %v3809 = vsel %vm3000, %v3710, 0.0
        %v3810 = vadd.f32 %v3808, %v3809
        %v3811 = vsel %vm3000, %v3712, 0.0
        %v3812 = vadd.f32 %v3810, %v3811
        %v3813 = vsel %vm3000, %v3714, 0.0
        %v3814 = vadd.f32 %v3812, %v3813
        %v3815 = vsel %vm3000, %v3716, 0.0
        %v3816 = vadd.f32 %v3814, %v3815
        %v3817 = vsel %vm3000, %v3718, 0.0
        %v3818 = vadd.f32 %v3816, %v3817
        %v3819 = vsel %vm3000, %v3720, 0.0
        %v3820 = vadd.f32 %v3818, %v3819
        %v3821 = vsel %vm3000, %v3722, 0.0
        %v3822 = vadd.f32 %v3820, %v3821
        %v3823 = vsel %vm3000, %v3724, 0.0
        %v3824 = vadd.f32 %v3822, %v3823
        %v3825 = vsel %vm3000, %v3726, 0.0
        %v3826 = vadd.f32 %v3824, %v3825
        %v3827 = vsel %vm3000, %v3728, 0.0
        %v3828 = vadd.f32 %v3826, %v3827
        %v3829 = vrot.slane %v3828, 4
        %v3830 = vadd.f32 %v3828, %v3829
        %v3831 = vrot.slane %v3830, 2
        %v3832 = vadd.f32 %v3830, %v3831
        %v3833 = vrot.slane %v3832, 1
        %v3834 = vadd.f32 %v3832, %v3833
        %v3837 = vcombine.low %v3765, %v3834
        %v3839 = vunpack.c.l.s4 1966171168
        %v3840 = vunpack.c.0.s8 %v3839
        %v3841 = vlaneseq
        %v3842 = vshrl.u32 %v3841, 7
        %v3843 = vsub.s32 %v3840, %v3842
        %v3844 = vrot.slane %v3837, %v3843
        %v3846 = vunpack.c.l.s4 1966171168
        %v3847 = vunpack.c.0.s8 %v3846
        %v3848 = vlaneseq
        %v3849 = vshrl.u32 %v3848, 7
        %v3850 = vsub.s32 %v3847, %v3849
        %v3851 = vrot.slane %v3844, %v3850
        %v3853 = vadd.f32 %v3664, %v3851
        %3854 = vst.msk [vmem:[#allocation4] sm:$0x3] %vm3662, %v3853
        %s3855 = smul.u32 32, %s22
        %p3856 = scmp.lt.s32.totalorder %s3855, 63
        %s3857 = scalar_select %p3856, %s3855, 63
        %s3858 = smul.addr %s3857, 2
        %s3859 = smul.addr %s3858, 8
        %s3860 = scalar_lea.vmem %s6, %s3859
        // Predicated region
        $region49: #{tpu_custom_call.1} parent=43 // pred_check
          %p3861 = pneg %p176
        $region50: #{tpu_custom_call.1} parent=43 // pred_check_branch
          %3863 = sbr.rel (%p3861) target = $region52
        $region51: #{tpu_custom_call.1} parent=43 // pred_region
          %s3864 = smul.u32 32, %s22
        $region52: #{tpu_custom_call.1} parent=43 // pred_fallthru
          _
        // Predicated region
        $region53: #{tpu_custom_call.1} parent=43 // pred_check
          %p3865 = pneg %p197
        $region54: #{tpu_custom_call.1} parent=43 // pred_check_branch
          %3867 = sbr.rel (%p3865) target = $region56
        $region55: #{tpu_custom_call.1} parent=43 // pred_region
          %s3869 = ssub.s32 32, 32
          %3870 = vsyncadd [#allocation3], %s3869
          %s3872 = sshll.u32 [#allocation2], 4
          %s3873 = int_to_ptr.vmem [resolvable:$true] %s3872
          %3875 = dma.vmem_to_hbm [thread:$0]  %s3873, 32, %s7, [#allocation3]
        $region56: #{tpu_custom_call.1} parent=43 // pred_fallthru
          _
        // Predicated region
        $region57: #{tpu_custom_call.1} parent=43 // pred_check
          %p3876 = pneg %p218
        $region58: #{tpu_custom_call.1} parent=43 // pred_check_branch
          %3878 = sbr.rel (%p3876) target = $region60
        $region59: #{tpu_custom_call.1} parent=43 // pred_region
          %s3880 = ssub.s32 32, 32
          %3881 = vsyncadd [#allocation5], %s3880
          %s3883 = sshll.u32 [#allocation4], 4
          %s3884 = int_to_ptr.vmem [resolvable:$true] %s3883
          %3886 = dma.vmem_to_hbm [thread:$0]  %s3884, 32, %s8, [#allocation5]
        $region60: #{tpu_custom_call.1} parent=43 // pred_fallthru
          _
        // Predicated region
        $region61: #{tpu_custom_call.1} parent=43 // pred_check
          %p3887 = pneg %p197
        $region62: #{tpu_custom_call.1} parent=43 // pred_check_branch
          %3889 = sbr.rel (%p3887) target = $region64
        $region63: #{tpu_custom_call.1} parent=43 // pred_region
          %3890 = dma.done [#allocation3], 32
        $region64: #{tpu_custom_call.1} parent=43 // pred_fallthru
          _
        // Predicated region
        $region65: #{tpu_custom_call.1} parent=43 // pred_check
          %p3891 = pneg %p218
        $region66: #{tpu_custom_call.1} parent=43 // pred_check_branch
          %3893 = sbr.rel (%p3891) target = $region68
        $region67: #{tpu_custom_call.1} parent=43 // pred_region
          %3894 = dma.done [#allocation5], 32
        $region68: #{tpu_custom_call.1} parent=43 // pred_fallthru
          _
      $region44: #{tpu_custom_call.1} parent=5 // pred_fallthru
        _
      %p3895 = scmp.le.s32.totalorder 2, %s17
      // Predicated region
      $region69: #{tpu_custom_call.1} parent=5 // pred_check
        %p3896 = pneg %p3895
      $region70: #{tpu_custom_call.1} parent=5 // pred_check_branch
        %3898 = sbr.rel (%p3896) target = $region72
      $region71: #{tpu_custom_call.1} parent=5 // pred_region
        %s3899 = ssub.s32 %s17, 2
        // Predicated region
        $region73: #{tpu_custom_call.1} parent=71 // pred_check
          %p3900 = pneg %p182
        $region74: #{tpu_custom_call.1} parent=71 // pred_check_branch
          %3902 = sbr.rel (%p3900) target = $region76
        $region75: #{tpu_custom_call.1} parent=71 // pred_region
          %s3903 = smul.u32 32, %s23
          %p3904 = scmp.lt.s32.totalorder %s3903, 63
          %s3905 = scalar_select %p3904, %s3903, 63
          %s3906 = smul.addr %s3905, 2
          %s3907 = smul.addr %s3906, 8
          %s3908 = scalar_lea.vmem %s6, %s3907
        $region76: #{tpu_custom_call.1} parent=71 // pred_fallthru
          _
      $region72: #{tpu_custom_call.1} parent=5 // pred_fallthru
        _
    $region6: #{tpu_custom_call.1} parent=1 // loop_footer
      %s21 = sadd.s32 1, %s17
    $region7: #{tpu_custom_call.1} parent=1 // loop_footer_branch
      %16 = sbr.rel target = $region3
    $region8: #{tpu_custom_call.1} parent=1 // loop_exit
      _
    %3909 = vsyncpa [#allocation3], 1
    %s3910 = scalar_lea.sflag [#allocation3], 1
    %3911 = vsyncpa %s3910, 1
    %3912 = vsyncpa [#allocation5], 1

</llo_original>
